<compile_context>
chip_gen: v7x
topology: tpu7x:2x2x1
jax: 0.10.0
libtpu: 0.0.40
codegen_flags: <defaults>
</compile_context>

<pallas_src>
import jax
import jax.numpy as jnp
from jax.experimental import pallas as pl
from jax.experimental.pallas import tpu as pltpu


def _tree(vals, op):
    """Balanced (log-depth) reduction over a static Python list of arrays."""
    vals = list(vals)
    while len(vals) > 1:
        nxt = [op(vals[i], vals[i + 1]) for i in range(0, len(vals) - 1, 2)]
        if len(vals) % 2:
            nxt.append(vals[-1])
        vals = nxt
    return vals[0]


# --------------------------- fused forward kernel ----------------------------
def dat_gru_kernel(
    x_ref, asp_ref, maskT_ref,
    wir_ref, wiz_ref, win_ref,
    whr_ref, whz_ref, whn_ref,
    br_ref, bz_ref, bin_ref, bhn_ref,
    waco_ref, waas_ref, ba_ref, wblk_ref,
    wsco_ref, wsas_ref, bs_ref,
    logits_ref, loss_ref,
):
    f32 = jnp.float32
    L, B, E = x_ref.shape
    H = whr_ref.shape[0]

    # ---- hoisted, time-independent input projections (one matmul per gate) ----
    x_flat = x_ref[...].reshape(L * B, E)
    gi_r = (jnp.dot(x_flat, wir_ref[...], preferred_element_type=f32)
            + br_ref[...]).reshape(L, B, H)
    gi_z = (jnp.dot(x_flat, wiz_ref[...], preferred_element_type=f32)
            + bz_ref[...]).reshape(L, B, H)
    gi_n = (jnp.dot(x_flat, win_ref[...], preferred_element_type=f32)
            + bin_ref[...]).reshape(L, B, H)

    # ---- weights loaded once (no per-iteration ref re-reads) ----
    whr = whr_ref[...]
    whz = whz_ref[...]
    whn = whn_ref[...]
    bhn = bhn_ref[...]
    waco = waco_ref[...]          # (H, 2H)  both attention heads stacked
    wblk = wblk_ref[...]          # (2H, 2)  block-diagonal score vectors w / w2
    wsco = wsco_ref[...]          # (H, 2)   classifier content rows, both heads
    asp = asp_ref[...]            # (B, Ea)

    # aspect part of the attention projection, shared by every timestep
    asp_proj = (jnp.dot(asp, waas_ref[...], preferred_element_type=f32)
                + ba_ref[...])                                          # (B, 2H)

    # ---- fully unrolled GRU recurrence, fused with per-step attention work ----
    scores = []   # per-t (B, 2): masked pre-softmax scores (head1, head2)
    hproj = []    # per-t (B, 2): h_t projected on both classifier content rows
    h = None
    for t in range(L):            # L is static -> straight-line code
        if t == 0:
            # h0 = 0: all h-matmuls vanish -> specialize (shorter serial chain)
            r = jax.nn.sigmoid(gi_r[0])
            z = jax.nn.sigmoid(gi_z[0])
            n = jnp.tanh(gi_n[0] + r * bhn)
            h = (1.0 - z) * n
        else:
            r = jax.nn.sigmoid(gi_r[t] + jnp.dot(h, whr, preferred_element_type=f32))
            z = jax.nn.sigmoid(gi_z[t] + jnp.dot(h, whz, preferred_element_type=f32))
            n = jnp.tanh(gi_n[t]
                         + r * (jnp.dot(h, whn, preferred_element_type=f32) + bhn))
            h = (1.0 - z) * n + z * h

        # attention + classifier projections (off the recurrence critical path)
        m_t = jnp.tanh(jnp.dot(h, waco, preferred_element_type=f32) + asp_proj)  # (B,2H)
        scores.append(jnp.dot(m_t, wblk, preferred_element_type=f32)
                      + maskT_ref[t])                                             # (B, 2)
        hproj.append(jnp.dot(h, wsco, preferred_element_type=f32))               # (B, 2)

    # ---- masked softmax over time (per batch, per head), log-depth trees ----
    s_max = _tree(scores, jnp.maximum)                                  # (B, 2)
    es = [jnp.exp(s - s_max) for s in scores]
    denom = _tree(es, lambda a, b: a + b)                               # (B, 2)
    inv = pl.reciprocal(denom, approx=True)                             # (B, 2)
    ws = [e * inv for e in es]                                          # attention weights

    # ---- readout folded into classifier + Gram-matrix orthogonal loss ----
    logit_acc = _tree([w * hp for w, hp in zip(ws, hproj)],
                      lambda a, b: a + b)                               # (B, 2)
    sq = _tree([w * w for w in ws], lambda a, b: a + b)                 # (B, 2)
    gram = _tree([w[:, :, None] * w[:, None, :] for w in ws],
                 lambda a, b: a + b)                                    # (B, 2, 2) = A A^T

    logits = (logit_acc
              + jnp.dot(asp, wsas_ref[...], preferred_element_type=f32)
              + bs_ref[...])                                            # (B, 2)
    logits_ref[...] = logits

    # sum_b ||A_b^T A_b - I_L||_F^2 = sum(gram^2) - 2*sum(w^2) + B*L
    fro2 = jnp.sum(gram * gram) - 2.0 * jnp.sum(sq) + jnp.float32(B * L)
    fro2 = jnp.maximum(fro2, 0.0)
    loss_ref[...] = (jnp.sqrt(fro2) / L).reshape(1, 1)


# ------------------------------- wrappers -------------------------------------
def dat_gru_pallas(x, asp, maskT, p):
    _, B, _ = x.shape
    vmem = pl.BlockSpec(memory_space=pltpu.MemorySpace.VMEM)
    logits, loss = pl.pallas_call(
        dat_gru_kernel,
        out_shape=(jax.ShapeDtypeStruct((B, 2), jnp.float32),
                   jax.ShapeDtypeStruct((1, 1), jnp.float32)),
        in_specs=[vmem] * 20,
        out_specs=(vmem, vmem),
    )(x, asp, maskT,
      p['wi_r'], p['wi_z'], p['wi_n'],
      p['wh_r'], p['wh_z'], p['wh_n'],
      p['b_r'], p['b_z'], p['b_in'], p['b_hn'],
      p['wa_co'], p['wa_as'], p['ba'], p['w_blk'],
      p['ws_co'], p['ws_as'], p['bs'])
    return logits, loss[0, 0]


def prepare_params(params):
    """One-time parameter re-layout (transposes / gate splits / head stacking).

    Done once, outside the jitted forward, so no per-call XLA transposes remain.
    """
    H = params['w_hh'].shape[1]
    w_ih, w_hh = params['w_ih'], params['w_hh']
    b_ih, b_hh = params['b_ih'], params['b_hh']

    w_blk = jnp.zeros((2 * H, 2), jnp.float32)
    w_blk = w_blk.at[:H, 0].set(params['w'][0]).at[H:, 1].set(params['w2'][0])

    p = dict(
        word_embedding=params['word_embedding'],
        aspect_embedding=params['aspect_embedding'],
        # per-gate GRU weights (PyTorch gate order: r, z, n), pre-transposed
        wi_r=w_ih[0:H].T, wi_z=w_ih[H:2 * H].T, wi_n=w_ih[2 * H:3 * H].T,
        wh_r=w_hh[0:H].T, wh_z=w_hh[H:2 * H].T, wh_n=w_hh[2 * H:3 * H].T,
        b_r=(b_ih[0:H] + b_hh[0:H]).reshape(1, H),
        b_z=(b_ih[H:2 * H] + b_hh[H:2 * H]).reshape(1, H),
        b_in=b_ih[2 * H:3 * H].reshape(1, H),
        b_hn=b_hh[2 * H:3 * H].reshape(1, H),
        # dual attention, heads stacked on the lane axis
        wa_co=jnp.concatenate([params['W_a'][:, :H].T, params['W_a2'][:, :H].T], axis=1),
        wa_as=jnp.concatenate([params['W_a'][:, H:].T, params['W_a2'][:, H:].T], axis=1),
        ba=jnp.concatenate([params['b_a'], params['b_a2']]).reshape(1, 2 * H),
        w_blk=w_blk,
        # classifier heads stacked into lane-dense (., 2) matrices
        ws_co=jnp.stack([params['W_s'][0, :H], params['W_s2'][0, :H]], axis=1),
        ws_as=jnp.stack([params['W_s'][0, H:], params['W_s2'][0, H:]], axis=1),
        bs=jnp.concatenate([params['b_s'].reshape(1, 1),
                            params['b_s2'].reshape(1, 1)], axis=1),
    )
    return jax.tree_util.tree_map(lambda a: jnp.asarray(a, jnp.float32), p)


def dat_gru_forward(content, aspect, mask, prepped):
    """content: (L, B) int32, aspect: (B, 1) int32, mask: (B, L) additive f32."""
    # Embedding lookups are glue (plain JAX gathers); everything else is the kernel.
    x = prepped['word_embedding'][content]                # (L, B, E)
    asp = prepped['aspect_embedding'][aspect[:, 0]]       # (B, Ea)
    maskT = jnp.transpose(mask)[:, :, None]               # (L, B, 1)
    return dat_gru_pallas(x, asp, maskT, prepped)


# --------------------------------- demo ---------------------------------------
if __name__ == "__main__":
    L, B = 8, 2
    E = H = Ea = 32          # embed_dim == hidden_size == aspect_embed_dim
    V, A = 50, 5

    key = jax.random.PRNGKey(0)
    ks = jax.random.split(key, 20)
    nrm = lambda k, shape: 0.01 * jax.random.normal(k, shape, dtype=jnp.float32)

    params = dict(
        word_embedding=nrm(ks[0], (V, E)),
        aspect_embedding=nrm(ks[1], (A, Ea)),
        w_ih=nrm(ks[2], (3 * H, E)),
        w_hh=nrm(ks[3], (3 * H, H)),
        b_ih=nrm(ks[4], (3 * H,)),
        b_hh=nrm(ks[5], (3 * H,)),
        W_a=nrm(ks[6], (H, H + Ea)),
        b_a=nrm(ks[7], (H,)),
        w=nrm(ks[8], (1, H)),
        W_a2=nrm(ks[9], (H, H + Ea)),
        b_a2=nrm(ks[10], (H,)),
        w2=nrm(ks[11], (1, H)),
        W_s=nrm(ks[12], (1, H + Ea)),
        b_s=nrm(ks[13], (1, 1)),
        W_s2=nrm(ks[14], (1, H + Ea)),
        b_s2=nrm(ks[15], (1, 1)),
    )

    content = jax.random.randint(ks[16], (L, B), 0, V, dtype=jnp.int32)   # (seq, batch)
    aspect = jax.random.randint(ks[17], (B, 1), 0, A, dtype=jnp.int32)    # (batch, 1)
    mask = jnp.zeros((B, L), jnp.float32).at[1, 6:].set(-1e9)             # (batch, seq)

    prepped = prepare_params(params)        # one-time re-layout, outside jit
    fwd = jax.jit(dat_gru_forward)

    logits, orth_loss = fwd(content, aspect, mask, prepped)
    jax.block_until_ready((logits, orth_loss))
    assert logits.shape == (B, 2)
    assert orth_loss.shape == ()
    print("KERNEL_OK")
</pallas_src>

<mosaic_0001>
module attributes {stable_mosaic.version = 11 : i64} {
  func.func @dat_gru_kernel(%arg0: memref<8x2x32xf32, #tpu.memory_space<vmem>>, %arg1: memref<2x32xf32, #tpu.memory_space<vmem>>, %arg2: memref<8x2x1xf32, #tpu.memory_space<vmem>>, %arg3: memref<32x32xf32, #tpu.memory_space<vmem>>, %arg4: memref<32x32xf32, #tpu.memory_space<vmem>>, %arg5: memref<32x32xf32, #tpu.memory_space<vmem>>, %arg6: memref<32x32xf32, #tpu.memory_space<vmem>>, %arg7: memref<32x32xf32, #tpu.memory_space<vmem>>, %arg8: memref<32x32xf32, #tpu.memory_space<vmem>>, %arg9: memref<1x32xf32, #tpu.memory_space<vmem>>, %arg10: memref<1x32xf32, #tpu.memory_space<vmem>>, %arg11: memref<1x32xf32, #tpu.memory_space<vmem>>, %arg12: memref<1x32xf32, #tpu.memory_space<vmem>>, %arg13: memref<32x64xf32, #tpu.memory_space<vmem>>, %arg14: memref<32x64xf32, #tpu.memory_space<vmem>>, %arg15: memref<1x64xf32, #tpu.memory_space<vmem>>, %arg16: memref<64x2xf32, #tpu.memory_space<vmem>>, %arg17: memref<32x2xf32, #tpu.memory_space<vmem>>, %arg18: memref<32x2xf32, #tpu.memory_space<vmem>>, %arg19: memref<1x2xf32, #tpu.memory_space<vmem>>, %arg20: memref<2x2xf32, #tpu.memory_space<vmem>>, %arg21: memref<1x1xf32, #tpu.memory_space<vmem>>) attributes {dimension_semantics = [], scalar_prefetch = 0 : i64, scratch_operands = 0 : i64, tpu.core_type = #tpu.core_type<tc>} {
    %c0 = arith.constant 0 : index
    %c0_0 = arith.constant 0 : index
    %c0_1 = arith.constant 0 : index
    %0 = vector.load %arg0[%c0, %c0_0, %c0_1] : memref<8x2x32xf32, #tpu.memory_space<vmem>>, vector<8x2x32xf32>
    %1 = vector.shape_cast %0 : vector<8x2x32xf32> to vector<16x32xf32>
    %c0_2 = arith.constant 0 : index
    %c0_3 = arith.constant 0 : index
    %2 = vector.load %arg3[%c0_2, %c0_3] : memref<32x32xf32, #tpu.memory_space<vmem>>, vector<32x32xf32>
    %cst = arith.constant dense<0.000000e+00> : vector<16x32xf32>
    %3 = tpu.matmul %1, %2, %cst {dimension_numbers = #tpu.dot_dimension_numbers<[1], [0], [0], [1], [0, 0, 1, 1], [], []>} : vector<16x32xf32>, vector<32x32xf32>, vector<16x32xf32> -> vector<16x32xf32>
    %c0_4 = arith.constant 0 : index
    %c0_5 = arith.constant 0 : index
    %4 = vector.load %arg9[%c0_4, %c0_5] : memref<1x32xf32, #tpu.memory_space<vmem>>, vector<1x32xf32>
    %5 = vector.broadcast %4 : vector<1x32xf32> to vector<16x32xf32>
    %6 = arith.addf %3, %5 : vector<16x32xf32>
    %7 = vector.shape_cast %6 : vector<16x32xf32> to vector<8x2x32xf32>
    %c0_6 = arith.constant 0 : index
    %c0_7 = arith.constant 0 : index
    %8 = vector.load %arg4[%c0_6, %c0_7] : memref<32x32xf32, #tpu.memory_space<vmem>>, vector<32x32xf32>
    %cst_8 = arith.constant dense<0.000000e+00> : vector<16x32xf32>
    %9 = tpu.matmul %1, %8, %cst_8 {dimension_numbers = #tpu.dot_dimension_numbers<[1], [0], [0], [1], [0, 0, 1, 1], [], []>} : vector<16x32xf32>, vector<32x32xf32>, vector<16x32xf32> -> vector<16x32xf32>
    %c0_9 = arith.constant 0 : index
    %c0_10 = arith.constant 0 : index
    %10 = vector.load %arg10[%c0_9, %c0_10] : memref<1x32xf32, #tpu.memory_space<vmem>>, vector<1x32xf32>
    %11 = vector.broadcast %10 : vector<1x32xf32> to vector<16x32xf32>
    %12 = arith.addf %9, %11 : vector<16x32xf32>
    %13 = vector.shape_cast %12 : vector<16x32xf32> to vector<8x2x32xf32>
    %c0_11 = arith.constant 0 : index
    %c0_12 = arith.constant 0 : index
    %14 = vector.load %arg5[%c0_11, %c0_12] : memref<32x32xf32, #tpu.memory_space<vmem>>, vector<32x32xf32>
    %cst_13 = arith.constant dense<0.000000e+00> : vector<16x32xf32>
    %15 = tpu.matmul %1, %14, %cst_13 {dimension_numbers = #tpu.dot_dimension_numbers<[1], [0], [0], [1], [0, 0, 1, 1], [], []>} : vector<16x32xf32>, vector<32x32xf32>, vector<16x32xf32> -> vector<16x32xf32>
    %c0_14 = arith.constant 0 : index
    %c0_15 = arith.constant 0 : index
    %16 = vector.load %arg11[%c0_14, %c0_15] : memref<1x32xf32, #tpu.memory_space<vmem>>, vector<1x32xf32>
    %17 = vector.broadcast %16 : vector<1x32xf32> to vector<16x32xf32>
    %18 = arith.addf %15, %17 : vector<16x32xf32>
    %19 = vector.shape_cast %18 : vector<16x32xf32> to vector<8x2x32xf32>
    %c0_16 = arith.constant 0 : index
    %c0_17 = arith.constant 0 : index
    %20 = vector.load %arg6[%c0_16, %c0_17] : memref<32x32xf32, #tpu.memory_space<vmem>>, vector<32x32xf32>
    %c0_18 = arith.constant 0 : index
    %c0_19 = arith.constant 0 : index
    %21 = vector.load %arg7[%c0_18, %c0_19] : memref<32x32xf32, #tpu.memory_space<vmem>>, vector<32x32xf32>
    %c0_20 = arith.constant 0 : index
    %c0_21 = arith.constant 0 : index
    %22 = vector.load %arg8[%c0_20, %c0_21] : memref<32x32xf32, #tpu.memory_space<vmem>>, vector<32x32xf32>
    %c0_22 = arith.constant 0 : index
    %c0_23 = arith.constant 0 : index
    %23 = vector.load %arg12[%c0_22, %c0_23] : memref<1x32xf32, #tpu.memory_space<vmem>>, vector<1x32xf32>
    %c0_24 = arith.constant 0 : index
    %c0_25 = arith.constant 0 : index
    %24 = vector.load %arg13[%c0_24, %c0_25] : memref<32x64xf32, #tpu.memory_space<vmem>>, vector<32x64xf32>
    %c0_26 = arith.constant 0 : index
    %c0_27 = arith.constant 0 : index
    %25 = vector.load %arg16[%c0_26, %c0_27] : memref<64x2xf32, #tpu.memory_space<vmem>>, vector<64x2xf32>
    %c0_28 = arith.constant 0 : index
    %c0_29 = arith.constant 0 : index
    %26 = vector.load %arg17[%c0_28, %c0_29] : memref<32x2xf32, #tpu.memory_space<vmem>>, vector<32x2xf32>
    %c0_30 = arith.constant 0 : index
    %c0_31 = arith.constant 0 : index
    %27 = vector.load %arg1[%c0_30, %c0_31] : memref<2x32xf32, #tpu.memory_space<vmem>>, vector<2x32xf32>
    %c0_32 = arith.constant 0 : index
    %c0_33 = arith.constant 0 : index
    %28 = vector.load %arg14[%c0_32, %c0_33] : memref<32x64xf32, #tpu.memory_space<vmem>>, vector<32x64xf32>
    %cst_34 = arith.constant dense<0.000000e+00> : vector<2x64xf32>
    %29 = tpu.matmul %27, %28, %cst_34 {dimension_numbers = #tpu.dot_dimension_numbers<[1], [0], [0], [1], [0, 0, 1, 1], [], []>} : vector<2x32xf32>, vector<32x64xf32>, vector<2x64xf32> -> vector<2x64xf32>
    %c0_35 = arith.constant 0 : index
    %c0_36 = arith.constant 0 : index
    %30 = vector.load %arg15[%c0_35, %c0_36] : memref<1x64xf32, #tpu.memory_space<vmem>>, vector<1x64xf32>
    %31 = vector.broadcast %30 : vector<1x64xf32> to vector<2x64xf32>
    %32 = arith.addf %29, %31 : vector<2x64xf32>
    %33 = vector.extract_strided_slice %7 {offsets = [0, 0, 0], sizes = [1, 2, 32], strides = [1, 1, 1]} : vector<8x2x32xf32> to vector<1x2x32xf32>
    %34 = vector.shape_cast %33 : vector<1x2x32xf32> to vector<2x32xf32>
    %35 = arith.negf %34 : vector<2x32xf32>
    %36 = math.exp %35 : vector<2x32xf32>
    %cst_37 = arith.constant 1.000000e+00 : f32
    %37 = vector.broadcast %cst_37 : f32 to vector<2x32xf32>
    %38 = arith.addf %37, %36 : vector<2x32xf32>
    %39 = arith.divf %37, %38 : vector<2x32xf32>
    %40 = vector.extract_strided_slice %13 {offsets = [0, 0, 0], sizes = [1, 2, 32], strides = [1, 1, 1]} : vector<8x2x32xf32> to vector<1x2x32xf32>
    %41 = vector.shape_cast %40 : vector<1x2x32xf32> to vector<2x32xf32>
    %42 = arith.negf %41 : vector<2x32xf32>
    %43 = math.exp %42 : vector<2x32xf32>
    %cst_38 = arith.constant 1.000000e+00 : f32
    %44 = vector.broadcast %cst_38 : f32 to vector<2x32xf32>
    %45 = arith.addf %44, %43 : vector<2x32xf32>
    %46 = arith.divf %44, %45 : vector<2x32xf32>
    %47 = vector.extract_strided_slice %19 {offsets = [0, 0, 0], sizes = [1, 2, 32], strides = [1, 1, 1]} : vector<8x2x32xf32> to vector<1x2x32xf32>
    %48 = vector.shape_cast %47 : vector<1x2x32xf32> to vector<2x32xf32>
    %49 = vector.broadcast %23 : vector<1x32xf32> to vector<2x32xf32>
    %50 = arith.mulf %39, %49 : vector<2x32xf32>
    %51 = arith.addf %48, %50 : vector<2x32xf32>
    %52 = math.tanh %51 : vector<2x32xf32>
    %cst_39 = arith.constant 1.000000e+00 : f32
    %53 = vector.broadcast %cst_39 : f32 to vector<2x32xf32>
    %54 = arith.subf %53, %46 : vector<2x32xf32>
    %55 = arith.mulf %54, %52 : vector<2x32xf32>
    %cst_40 = arith.constant dense<0.000000e+00> : vector<2x64xf32>
    %56 = tpu.matmul %55, %24, %cst_40 {dimension_numbers = #tpu.dot_dimension_numbers<[1], [0], [0], [1], [0, 0, 1, 1], [], []>} : vector<2x32xf32>, vector<32x64xf32>, vector<2x64xf32> -> vector<2x64xf32>
    %57 = arith.addf %56, %32 : vector<2x64xf32>
    %58 = math.tanh %57 : vector<2x64xf32>
    %cst_41 = arith.constant dense<0.000000e+00> : vector<2x2xf32>
    %59 = tpu.matmul %58, %25, %cst_41 {dimension_numbers = #tpu.dot_dimension_numbers<[1], [0], [0], [1], [0, 0, 1, 1], [], []>} : vector<2x64xf32>, vector<64x2xf32>, vector<2x2xf32> -> vector<2x2xf32>
    %c0_42 = arith.constant 0 : index
    %c0_43 = arith.constant 0 : index
    %c0_44 = arith.constant 0 : index
    %60 = vector.load %arg2[%c0_42, %c0_43, %c0_44] : memref<8x2x1xf32, #tpu.memory_space<vmem>>, vector<1x2x1xf32>
    %61 = vector.shape_cast %60 : vector<1x2x1xf32> to vector<2x1xf32>
    %62 = vector.broadcast %61 : vector<2x1xf32> to vector<2x2xf32>
    %63 = arith.addf %59, %62 : vector<2x2xf32>
    %cst_45 = arith.constant dense<0.000000e+00> : vector<2x2xf32>
    %64 = tpu.matmul %55, %26, %cst_45 {dimension_numbers = #tpu.dot_dimension_numbers<[1], [0], [0], [1], [0, 0, 1, 1], [], []>} : vector<2x32xf32>, vector<32x2xf32>, vector<2x2xf32> -> vector<2x2xf32>
    %65 = vector.extract_strided_slice %7 {offsets = [1, 0, 0], sizes = [1, 2, 32], strides = [1, 1, 1]} : vector<8x2x32xf32> to vector<1x2x32xf32>
    %66 = vector.shape_cast %65 : vector<1x2x32xf32> to vector<2x32xf32>
    %cst_46 = arith.constant dense<0.000000e+00> : vector<2x32xf32>
    %67 = tpu.matmul %55, %20, %cst_46 {dimension_numbers = #tpu.dot_dimension_numbers<[1], [0], [0], [1], [0, 0, 1, 1], [], []>} : vector<2x32xf32>, vector<32x32xf32>, vector<2x32xf32> -> vector<2x32xf32>
    %68 = arith.addf %66, %67 : vector<2x32xf32>
    %69 = arith.negf %68 : vector<2x32xf32>
    %70 = math.exp %69 : vector<2x32xf32>
    %cst_47 = arith.constant 1.000000e+00 : f32
    %71 = vector.broadcast %cst_47 : f32 to vector<2x32xf32>
    %72 = arith.addf %71, %70 : vector<2x32xf32>
    %73 = arith.divf %71, %72 : vector<2x32xf32>
    %74 = vector.extract_strided_slice %13 {offsets = [1, 0, 0], sizes = [1, 2, 32], strides = [1, 1, 1]} : vector<8x2x32xf32> to vector<1x2x32xf32>
    %75 = vector.shape_cast %74 : vector<1x2x32xf32> to vector<2x32xf32>
    %cst_48 = arith.constant dense<0.000000e+00> : vector<2x32xf32>
    %76 = tpu.matmul %55, %21, %cst_48 {dimension_numbers = #tpu.dot_dimension_numbers<[1], [0], [0], [1], [0, 0, 1, 1], [], []>} : vector<2x32xf32>, vector<32x32xf32>, vector<2x32xf32> -> vector<2x32xf32>
    %77 = arith.addf %75, %76 : vector<2x32xf32>
    %78 = arith.negf %77 : vector<2x32xf32>
    %79 = math.exp %78 : vector<2x32xf32>
    %cst_49 = arith.constant 1.000000e+00 : f32
    %80 = vector.broadcast %cst_49 : f32 to vector<2x32xf32>
    %81 = arith.addf %80, %79 : vector<2x32xf32>
    %82 = arith.divf %80, %81 : vector<2x32xf32>
    %83 = vector.extract_strided_slice %19 {offsets = [1, 0, 0], sizes = [1, 2, 32], strides = [1, 1, 1]} : vector<8x2x32xf32> to vector<1x2x32xf32>
    %84 = vector.shape_cast %83 : vector<1x2x32xf32> to vector<2x32xf32>
    %cst_50 = arith.constant dense<0.000000e+00> : vector<2x32xf32>
    %85 = tpu.matmul %55, %22, %cst_50 {dimension_numbers = #tpu.dot_dimension_numbers<[1], [0], [0], [1], [0, 0, 1, 1], [], []>} : vector<2x32xf32>, vector<32x32xf32>, vector<2x32xf32> -> vector<2x32xf32>
    %86 = vector.broadcast %23 : vector<1x32xf32> to vector<2x32xf32>
    %87 = arith.addf %85, %86 : vector<2x32xf32>
    %88 = arith.mulf %73, %87 : vector<2x32xf32>
    %89 = arith.addf %84, %88 : vector<2x32xf32>
    %90 = math.tanh %89 : vector<2x32xf32>
    %cst_51 = arith.constant 1.000000e+00 : f32
    %91 = vector.broadcast %cst_51 : f32 to vector<2x32xf32>
    %92 = arith.subf %91, %82 : vector<2x32xf32>
    %93 = arith.mulf %92, %90 : vector<2x32xf32>
    %94 = arith.mulf %82, %55 : vector<2x32xf32>
    %95 = arith.addf %93, %94 : vector<2x32xf32>
    %cst_52 = arith.constant dense<0.000000e+00> : vector<2x64xf32>
    %96 = tpu.matmul %95, %24, %cst_52 {dimension_numbers = #tpu.dot_dimension_numbers<[1], [0], [0], [1], [0, 0, 1, 1], [], []>} : vector<2x32xf32>, vector<32x64xf32>, vector<2x64xf32> -> vector<2x64xf32>
    %97 = arith.addf %96, %32 : vector<2x64xf32>
    %98 = math.tanh %97 : vector<2x64xf32>
    %cst_53 = arith.constant dense<0.000000e+00> : vector<2x2xf32>
    %99 = tpu.matmul %98, %25, %cst_53 {dimension_numbers = #tpu.dot_dimension_numbers<[1], [0], [0], [1], [0, 0, 1, 1], [], []>} : vector<2x64xf32>, vector<64x2xf32>, vector<2x2xf32> -> vector<2x2xf32>
    %c1 = arith.constant 1 : index
    %c0_54 = arith.constant 0 : index
    %c0_55 = arith.constant 0 : index
    %100 = vector.load %arg2[%c1, %c0_54, %c0_55] : memref<8x2x1xf32, #tpu.memory_space<vmem>>, vector<1x2x1xf32>
    %101 = vector.shape_cast %100 : vector<1x2x1xf32> to vector<2x1xf32>
    %102 = vector.broadcast %101 : vector<2x1xf32> to vector<2x2xf32>
    %103 = arith.addf %99, %102 : vector<2x2xf32>
    %cst_56 = arith.constant dense<0.000000e+00> : vector<2x2xf32>
    %104 = tpu.matmul %95, %26, %cst_56 {dimension_numbers = #tpu.dot_dimension_numbers<[1], [0], [0], [1], [0, 0, 1, 1], [], []>} : vector<2x32xf32>, vector<32x2xf32>, vector<2x2xf32> -> vector<2x2xf32>
    %105 = vector.extract_strided_slice %7 {offsets = [2, 0, 0], sizes = [1, 2, 32], strides = [1, 1, 1]} : vector<8x2x32xf32> to vector<1x2x32xf32>
    %106 = vector.shape_cast %105 : vector<1x2x32xf32> to vector<2x32xf32>
    %cst_57 = arith.constant dense<0.000000e+00> : vector<2x32xf32>
    %107 = tpu.matmul %95, %20, %cst_57 {dimension_numbers = #tpu.dot_dimension_numbers<[1], [0], [0], [1], [0, 0, 1, 1], [], []>} : vector<2x32xf32>, vector<32x32xf32>, vector<2x32xf32> -> vector<2x32xf32>
    %108 = arith.addf %106, %107 : vector<2x32xf32>
    %109 = arith.negf %108 : vector<2x32xf32>
    %110 = math.exp %109 : vector<2x32xf32>
    %cst_58 = arith.constant 1.000000e+00 : f32
    %111 = vector.broadcast %cst_58 : f32 to vector<2x32xf32>
    %112 = arith.addf %111, %110 : vector<2x32xf32>
    %113 = arith.divf %111, %112 : vector<2x32xf32>
    %114 = vector.extract_strided_slice %13 {offsets = [2, 0, 0], sizes = [1, 2, 32], strides = [1, 1, 1]} : vector<8x2x32xf32> to vector<1x2x32xf32>
    %115 = vector.shape_cast %114 : vector<1x2x32xf32> to vector<2x32xf32>
    %cst_59 = arith.constant dense<0.000000e+00> : vector<2x32xf32>
    %116 = tpu.matmul %95, %21, %cst_59 {dimension_numbers = #tpu.dot_dimension_numbers<[1], [0], [0], [1], [0, 0, 1, 1], [], []>} : vector<2x32xf32>, vector<32x32xf32>, vector<2x32xf32> -> vector<2x32xf32>
    %117 = arith.addf %115, %116 : vector<2x32xf32>
    %118 = arith.negf %117 : vector<2x32xf32>
    %119 = math.exp %118 : vector<2x32xf32>
    %cst_60 = arith.constant 1.000000e+00 : f32
    %120 = vector.broadcast %cst_60 : f32 to vector<2x32xf32>
    %121 = arith.addf %120, %119 : vector<2x32xf32>
    %122 = arith.divf %120, %121 : vector<2x32xf32>
    %123 = vector.extract_strided_slice %19 {offsets = [2, 0, 0], sizes = [1, 2, 32], strides = [1, 1, 1]} : vector<8x2x32xf32> to vector<1x2x32xf32>
    %124 = vector.shape_cast %123 : vector<1x2x32xf32> to vector<2x32xf32>
    %cst_61 = arith.constant dense<0.000000e+00> : vector<2x32xf32>
    %125 = tpu.matmul %95, %22, %cst_61 {dimension_numbers = #tpu.dot_dimension_numbers<[1], [0], [0], [1], [0, 0, 1, 1], [], []>} : vector<2x32xf32>, vector<32x32xf32>, vector<2x32xf32> -> vector<2x32xf32>
    %126 = vector.broadcast %23 : vector<1x32xf32> to vector<2x32xf32>
    %127 = arith.addf %125, %126 : vector<2x32xf32>
    %128 = arith.mulf %113, %127 : vector<2x32xf32>
    %129 = arith.addf %124, %128 : vector<2x32xf32>
    %130 = math.tanh %129 : vector<2x32xf32>
    %cst_62 = arith.constant 1.000000e+00 : f32
    %131 = vector.broadcast %cst_62 : f32 to vector<2x32xf32>
    %132 = arith.subf %131, %122 : vector<2x32xf32>
    %133 = arith.mulf %132, %130 : vector<2x32xf32>
    %134 = arith.mulf %122, %95 : vector<2x32xf32>
    %135 = arith.addf %133, %134 : vector<2x32xf32>
    %cst_63 = arith.constant dense<0.000000e+00> : vector<2x64xf32>
    %136 = tpu.matmul %135, %24, %cst_63 {dimension_numbers = #tpu.dot_dimension_numbers<[1], [0], [0], [1], [0, 0, 1, 1], [], []>} : vector<2x32xf32>, vector<32x64xf32>, vector<2x64xf32> -> vector<2x64xf32>
    %137 = arith.addf %136, %32 : vector<2x64xf32>
    %138 = math.tanh %137 : vector<2x64xf32>
    %cst_64 = arith.constant dense<0.000000e+00> : vector<2x2xf32>
    %139 = tpu.matmul %138, %25, %cst_64 {dimension_numbers = #tpu.dot_dimension_numbers<[1], [0], [0], [1], [0, 0, 1, 1], [], []>} : vector<2x64xf32>, vector<64x2xf32>, vector<2x2xf32> -> vector<2x2xf32>
    %c2 = arith.constant 2 : index
    %c0_65 = arith.constant 0 : index
    %c0_66 = arith.constant 0 : index
    %140 = vector.load %arg2[%c2, %c0_65, %c0_66] : memref<8x2x1xf32, #tpu.memory_space<vmem>>, vector<1x2x1xf32>
    %141 = vector.shape_cast %140 : vector<1x2x1xf32> to vector<2x1xf32>
    %142 = vector.broadcast %141 : vector<2x1xf32> to vector<2x2xf32>
    %143 = arith.addf %139, %142 : vector<2x2xf32>
    %cst_67 = arith.constant dense<0.000000e+00> : vector<2x2xf32>
    %144 = tpu.matmul %135, %26, %cst_67 {dimension_numbers = #tpu.dot_dimension_numbers<[1], [0], [0], [1], [0, 0, 1, 1], [], []>} : vector<2x32xf32>, vector<32x2xf32>, vector<2x2xf32> -> vector<2x2xf32>
    %145 = vector.extract_strided_slice %7 {offsets = [3, 0, 0], sizes = [1, 2, 32], strides = [1, 1, 1]} : vector<8x2x32xf32> to vector<1x2x32xf32>
    %146 = vector.shape_cast %145 : vector<1x2x32xf32> to vector<2x32xf32>
    %cst_68 = arith.constant dense<0.000000e+00> : vector<2x32xf32>
    %147 = tpu.matmul %135, %20, %cst_68 {dimension_numbers = #tpu.dot_dimension_numbers<[1], [0], [0], [1], [0, 0, 1, 1], [], []>} : vector<2x32xf32>, vector<32x32xf32>, vector<2x32xf32> -> vector<2x32xf32>
    %148 = arith.addf %146, %147 : vector<2x32xf32>
    %149 = arith.negf %148 : vector<2x32xf32>
    %150 = math.exp %149 : vector<2x32xf32>
    %cst_69 = arith.constant 1.000000e+00 : f32
    %151 = vector.broadcast %cst_69 : f32 to vector<2x32xf32>
    %152 = arith.addf %151, %150 : vector<2x32xf32>
    %153 = arith.divf %151, %152 : vector<2x32xf32>
    %154 = vector.extract_strided_slice %13 {offsets = [3, 0, 0], sizes = [1, 2, 32], strides = [1, 1, 1]} : vector<8x2x32xf32> to vector<1x2x32xf32>
    %155 = vector.shape_cast %154 : vector<1x2x32xf32> to vector<2x32xf32>
    %cst_70 = arith.constant dense<0.000000e+00> : vector<2x32xf32>
    %156 = tpu.matmul %135, %21, %cst_70 {dimension_numbers = #tpu.dot_dimension_numbers<[1], [0], [0], [1], [0, 0, 1, 1], [], []>} : vector<2x32xf32>, vector<32x32xf32>, vector<2x32xf32> -> vector<2x32xf32>
    %157 = arith.addf %155, %156 : vector<2x32xf32>
    %158 = arith.negf %157 : vector<2x32xf32>
    %159 = math.exp %158 : vector<2x32xf32>
    %cst_71 = arith.constant 1.000000e+00 : f32
    %160 = vector.broadcast %cst_71 : f32 to vector<2x32xf32>
    %161 = arith.addf %160, %159 : vector<2x32xf32>
    %162 = arith.divf %160, %161 : vector<2x32xf32>
    %163 = vector.extract_strided_slice %19 {offsets = [3, 0, 0], sizes = [1, 2, 32], strides = [1, 1, 1]} : vector<8x2x32xf32> to vector<1x2x32xf32>
    %164 = vector.shape_cast %163 : vector<1x2x32xf32> to vector<2x32xf32>
    %cst_72 = arith.constant dense<0.000000e+00> : vector<2x32xf32>
    %165 = tpu.matmul %135, %22, %cst_72 {dimension_numbers = #tpu.dot_dimension_numbers<[1], [0], [0], [1], [0, 0, 1, 1], [], []>} : vector<2x32xf32>, vector<32x32xf32>, vector<2x32xf32> -> vector<2x32xf32>
    %166 = vector.broadcast %23 : vector<1x32xf32> to vector<2x32xf32>
    %167 = arith.addf %165, %166 : vector<2x32xf32>
    %168 = arith.mulf %153, %167 : vector<2x32xf32>
    %169 = arith.addf %164, %168 : vector<2x32xf32>
    %170 = math.tanh %169 : vector<2x32xf32>
    %cst_73 = arith.constant 1.000000e+00 : f32
    %171 = vector.broadcast %cst_73 : f32 to vector<2x32xf32>
    %172 = arith.subf %171, %162 : vector<2x32xf32>
    %173 = arith.mulf %172, %170 : vector<2x32xf32>
    %174 = arith.mulf %162, %135 : vector<2x32xf32>
    %175 = arith.addf %173, %174 : vector<2x32xf32>
    %cst_74 = arith.constant dense<0.000000e+00> : vector<2x64xf32>
    %176 = tpu.matmul %175, %24, %cst_74 {dimension_numbers = #tpu.dot_dimension_numbers<[1], [0], [0], [1], [0, 0, 1, 1], [], []>} : vector<2x32xf32>, vector<32x64xf32>, vector<2x64xf32> -> vector<2x64xf32>
    %177 = arith.addf %176, %32 : vector<2x64xf32>
    %178 = math.tanh %177 : vector<2x64xf32>
    %cst_75 = arith.constant dense<0.000000e+00> : vector<2x2xf32>
    %179 = tpu.matmul %178, %25, %cst_75 {dimension_numbers = #tpu.dot_dimension_numbers<[1], [0], [0], [1], [0, 0, 1, 1], [], []>} : vector<2x64xf32>, vector<64x2xf32>, vector<2x2xf32> -> vector<2x2xf32>
    %c3 = arith.constant 3 : index
    %c0_76 = arith.constant 0 : index
    %c0_77 = arith.constant 0 : index
    %180 = vector.load %arg2[%c3, %c0_76, %c0_77] : memref<8x2x1xf32, #tpu.memory_space<vmem>>, vector<1x2x1xf32>
    %181 = vector.shape_cast %180 : vector<1x2x1xf32> to vector<2x1xf32>
    %182 = vector.broadcast %181 : vector<2x1xf32> to vector<2x2xf32>
    %183 = arith.addf %179, %182 : vector<2x2xf32>
    %cst_78 = arith.constant dense<0.000000e+00> : vector<2x2xf32>
    %184 = tpu.matmul %175, %26, %cst_78 {dimension_numbers = #tpu.dot_dimension_numbers<[1], [0], [0], [1], [0, 0, 1, 1], [], []>} : vector<2x32xf32>, vector<32x2xf32>, vector<2x2xf32> -> vector<2x2xf32>
    %185 = vector.extract_strided_slice %7 {offsets = [4, 0, 0], sizes = [1, 2, 32], strides = [1, 1, 1]} : vector<8x2x32xf32> to vector<1x2x32xf32>
    %186 = vector.shape_cast %185 : vector<1x2x32xf32> to vector<2x32xf32>
    %cst_79 = arith.constant dense<0.000000e+00> : vector<2x32xf32>
    %187 = tpu.matmul %175, %20, %cst_79 {dimension_numbers = #tpu.dot_dimension_numbers<[1], [0], [0], [1], [0, 0, 1, 1], [], []>} : vector<2x32xf32>, vector<32x32xf32>, vector<2x32xf32> -> vector<2x32xf32>
    %188 = arith.addf %186, %187 : vector<2x32xf32>
    %189 = arith.negf %188 : vector<2x32xf32>
    %190 = math.exp %189 : vector<2x32xf32>
    %cst_80 = arith.constant 1.000000e+00 : f32
    %191 = vector.broadcast %cst_80 : f32 to vector<2x32xf32>
    %192 = arith.addf %191, %190 : vector<2x32xf32>
    %193 = arith.divf %191, %192 : vector<2x32xf32>
    %194 = vector.extract_strided_slice %13 {offsets = [4, 0, 0], sizes = [1, 2, 32], strides = [1, 1, 1]} : vector<8x2x32xf32> to vector<1x2x32xf32>
    %195 = vector.shape_cast %194 : vector<1x2x32xf32> to vector<2x32xf32>
    %cst_81 = arith.constant dense<0.000000e+00> : vector<2x32xf32>
    %196 = tpu.matmul %175, %21, %cst_81 {dimension_numbers = #tpu.dot_dimension_numbers<[1], [0], [0], [1], [0, 0, 1, 1], [], []>} : vector<2x32xf32>, vector<32x32xf32>, vector<2x32xf32> -> vector<2x32xf32>
    %197 = arith.addf %195, %196 : vector<2x32xf32>
    %198 = arith.negf %197 : vector<2x32xf32>
    %199 = math.exp %198 : vector<2x32xf32>
    %cst_82 = arith.constant 1.000000e+00 : f32
    %200 = vector.broadcast %cst_82 : f32 to vector<2x32xf32>
    %201 = arith.addf %200, %199 : vector<2x32xf32>
    %202 = arith.divf %200, %201 : vector<2x32xf32>
    %203 = vector.extract_strided_slice %19 {offsets = [4, 0, 0], sizes = [1, 2, 32], strides = [1, 1, 1]} : vector<8x2x32xf32> to vector<1x2x32xf32>
    %204 = vector.shape_cast %203 : vector<1x2x32xf32> to vector<2x32xf32>
    %cst_83 = arith.constant dense<0.000000e+00> : vector<2x32xf32>
    %205 = tpu.matmul %175, %22, %cst_83 {dimension_numbers = #tpu.dot_dimension_numbers<[1], [0], [0], [1], [0, 0, 1, 1], [], []>} : vector<2x32xf32>, vector<32x32xf32>, vector<2x32xf32> -> vector<2x32xf32>
    %206 = vector.broadcast %23 : vector<1x32xf32> to vector<2x32xf32>
    %207 = arith.addf %205, %206 : vector<2x32xf32>
    %208 = arith.mulf %193, %207 : vector<2x32xf32>
    %209 = arith.addf %204, %208 : vector<2x32xf32>
    %210 = math.tanh %209 : vector<2x32xf32>
    %cst_84 = arith.constant 1.000000e+00 : f32
    %211 = vector.broadcast %cst_84 : f32 to vector<2x32xf32>
    %212 = arith.subf %211, %202 : vector<2x32xf32>
    %213 = arith.mulf %212, %210 : vector<2x32xf32>
    %214 = arith.mulf %202, %175 : vector<2x32xf32>
    %215 = arith.addf %213, %214 : vector<2x32xf32>
    %cst_85 = arith.constant dense<0.000000e+00> : vector<2x64xf32>
    %216 = tpu.matmul %215, %24, %cst_85 {dimension_numbers = #tpu.dot_dimension_numbers<[1], [0], [0], [1], [0, 0, 1, 1], [], []>} : vector<2x32xf32>, vector<32x64xf32>, vector<2x64xf32> -> vector<2x64xf32>
    %217 = arith.addf %216, %32 : vector<2x64xf32>
    %218 = math.tanh %217 : vector<2x64xf32>
    %cst_86 = arith.constant dense<0.000000e+00> : vector<2x2xf32>
    %219 = tpu.matmul %218, %25, %cst_86 {dimension_numbers = #tpu.dot_dimension_numbers<[1], [0], [0], [1], [0, 0, 1, 1], [], []>} : vector<2x64xf32>, vector<64x2xf32>, vector<2x2xf32> -> vector<2x2xf32>
    %c4 = arith.constant 4 : index
    %c0_87 = arith.constant 0 : index
    %c0_88 = arith.constant 0 : index
    %220 = vector.load %arg2[%c4, %c0_87, %c0_88] : memref<8x2x1xf32, #tpu.memory_space<vmem>>, vector<1x2x1xf32>
    %221 = vector.shape_cast %220 : vector<1x2x1xf32> to vector<2x1xf32>
    %222 = vector.broadcast %221 : vector<2x1xf32> to vector<2x2xf32>
    %223 = arith.addf %219, %222 : vector<2x2xf32>
    %cst_89 = arith.constant dense<0.000000e+00> : vector<2x2xf32>
    %224 = tpu.matmul %215, %26, %cst_89 {dimension_numbers = #tpu.dot_dimension_numbers<[1], [0], [0], [1], [0, 0, 1, 1], [], []>} : vector<2x32xf32>, vector<32x2xf32>, vector<2x2xf32> -> vector<2x2xf32>
    %225 = vector.extract_strided_slice %7 {offsets = [5, 0, 0], sizes = [1, 2, 32], strides = [1, 1, 1]} : vector<8x2x32xf32> to vector<1x2x32xf32>
    %226 = vector.shape_cast %225 : vector<1x2x32xf32> to vector<2x32xf32>
    %cst_90 = arith.constant dense<0.000000e+00> : vector<2x32xf32>
    %227 = tpu.matmul %215, %20, %cst_90 {dimension_numbers = #tpu.dot_dimension_numbers<[1], [0], [0], [1], [0, 0, 1, 1], [], []>} : vector<2x32xf32>, vector<32x32xf32>, vector<2x32xf32> -> vector<2x32xf32>
    %228 = arith.addf %226, %227 : vector<2x32xf32>
    %229 = arith.negf %228 : vector<2x32xf32>
    %230 = math.exp %229 : vector<2x32xf32>
    %cst_91 = arith.constant 1.000000e+00 : f32
    %231 = vector.broadcast %cst_91 : f32 to vector<2x32xf32>
    %232 = arith.addf %231, %230 : vector<2x32xf32>
    %233 = arith.divf %231, %232 : vector<2x32xf32>
    %234 = vector.extract_strided_slice %13 {offsets = [5, 0, 0], sizes = [1, 2, 32], strides = [1, 1, 1]} : vector<8x2x32xf32> to vector<1x2x32xf32>
    %235 = vector.shape_cast %234 : vector<1x2x32xf32> to vector<2x32xf32>
    %cst_92 = arith.constant dense<0.000000e+00> : vector<2x32xf32>
    %236 = tpu.matmul %215, %21, %cst_92 {dimension_numbers = #tpu.dot_dimension_numbers<[1], [0], [0], [1], [0, 0, 1, 1], [], []>} : vector<2x32xf32>, vector<32x32xf32>, vector<2x32xf32> -> vector<2x32xf32>
    %237 = arith.addf %235, %236 : vector<2x32xf32>
    %238 = arith.negf %237 : vector<2x32xf32>
    %239 = math.exp %238 : vector<2x32xf32>
    %cst_93 = arith.constant 1.000000e+00 : f32
    %240 = vector.broadcast %cst_93 : f32 to vector<2x32xf32>
    %241 = arith.addf %240, %239 : vector<2x32xf32>
    %242 = arith.divf %240, %241 : vector<2x32xf32>
    %243 = vector.extract_strided_slice %19 {offsets = [5, 0, 0], sizes = [1, 2, 32], strides = [1, 1, 1]} : vector<8x2x32xf32> to vector<1x2x32xf32>
    %244 = vector.shape_cast %243 : vector<1x2x32xf32> to vector<2x32xf32>
    %cst_94 = arith.constant dense<0.000000e+00> : vector<2x32xf32>
    %245 = tpu.matmul %215, %22, %cst_94 {dimension_numbers = #tpu.dot_dimension_numbers<[1], [0], [0], [1], [0, 0, 1, 1], [], []>} : vector<2x32xf32>, vector<32x32xf32>, vector<2x32xf32> -> vector<2x32xf32>
    %246 = vector.broadcast %23 : vector<1x32xf32> to vector<2x32xf32>
    %247 = arith.addf %245, %246 : vector<2x32xf32>
    %248 = arith.mulf %233, %247 : vector<2x32xf32>
    %249 = arith.addf %244, %248 : vector<2x32xf32>
    %250 = math.tanh %249 : vector<2x32xf32>
    %cst_95 = arith.constant 1.000000e+00 : f32
    %251 = vector.broadcast %cst_95 : f32 to vector<2x32xf32>
    %252 = arith.subf %251, %242 : vector<2x32xf32>
    %253 = arith.mulf %252, %250 : vector<2x32xf32>
    %254 = arith.mulf %242, %215 : vector<2x32xf32>
    %255 = arith.addf %253, %254 : vector<2x32xf32>
    %cst_96 = arith.constant dense<0.000000e+00> : vector<2x64xf32>
    %256 = tpu.matmul %255, %24, %cst_96 {dimension_numbers = #tpu.dot_dimension_numbers<[1], [0], [0], [1], [0, 0, 1, 1], [], []>} : vector<2x32xf32>, vector<32x64xf32>, vector<2x64xf32> -> vector<2x64xf32>
    %257 = arith.addf %256, %32 : vector<2x64xf32>
    %258 = math.tanh %257 : vector<2x64xf32>
    %cst_97 = arith.constant dense<0.000000e+00> : vector<2x2xf32>
    %259 = tpu.matmul %258, %25, %cst_97 {dimension_numbers = #tpu.dot_dimension_numbers<[1], [0], [0], [1], [0, 0, 1, 1], [], []>} : vector<2x64xf32>, vector<64x2xf32>, vector<2x2xf32> -> vector<2x2xf32>
    %c5 = arith.constant 5 : index
    %c0_98 = arith.constant 0 : index
    %c0_99 = arith.constant 0 : index
    %260 = vector.load %arg2[%c5, %c0_98, %c0_99] : memref<8x2x1xf32, #tpu.memory_space<vmem>>, vector<1x2x1xf32>
    %261 = vector.shape_cast %260 : vector<1x2x1xf32> to vector<2x1xf32>
    %262 = vector.broadcast %261 : vector<2x1xf32> to vector<2x2xf32>
    %263 = arith.addf %259, %262 : vector<2x2xf32>
    %cst_100 = arith.constant dense<0.000000e+00> : vector<2x2xf32>
    %264 = tpu.matmul %255, %26, %cst_100 {dimension_numbers = #tpu.dot_dimension_numbers<[1], [0], [0], [1], [0, 0, 1, 1], [], []>} : vector<2x32xf32>, vector<32x2xf32>, vector<2x2xf32> -> vector<2x2xf32>
    %265 = vector.extract_strided_slice %7 {offsets = [6, 0, 0], sizes = [1, 2, 32], strides = [1, 1, 1]} : vector<8x2x32xf32> to vector<1x2x32xf32>
    %266 = vector.shape_cast %265 : vector<1x2x32xf32> to vector<2x32xf32>
    %cst_101 = arith.constant dense<0.000000e+00> : vector<2x32xf32>
    %267 = tpu.matmul %255, %20, %cst_101 {dimension_numbers = #tpu.dot_dimension_numbers<[1], [0], [0], [1], [0, 0, 1, 1], [], []>} : vector<2x32xf32>, vector<32x32xf32>, vector<2x32xf32> -> vector<2x32xf32>
    %268 = arith.addf %266, %267 : vector<2x32xf32>
    %269 = arith.negf %268 : vector<2x32xf32>
    %270 = math.exp %269 : vector<2x32xf32>
    %cst_102 = arith.constant 1.000000e+00 : f32
    %271 = vector.broadcast %cst_102 : f32 to vector<2x32xf32>
    %272 = arith.addf %271, %270 : vector<2x32xf32>
    %273 = arith.divf %271, %272 : vector<2x32xf32>
    %274 = vector.extract_strided_slice %13 {offsets = [6, 0, 0], sizes = [1, 2, 32], strides = [1, 1, 1]} : vector<8x2x32xf32> to vector<1x2x32xf32>
    %275 = vector.shape_cast %274 : vector<1x2x32xf32> to vector<2x32xf32>
    %cst_103 = arith.constant dense<0.000000e+00> : vector<2x32xf32>
    %276 = tpu.matmul %255, %21, %cst_103 {dimension_numbers = #tpu.dot_dimension_numbers<[1], [0], [0], [1], [0, 0, 1, 1], [], []>} : vector<2x32xf32>, vector<32x32xf32>, vector<2x32xf32> -> vector<2x32xf32>
    %277 = arith.addf %275, %276 : vector<2x32xf32>
    %278 = arith.negf %277 : vector<2x32xf32>
    %279 = math.exp %278 : vector<2x32xf32>
    %cst_104 = arith.constant 1.000000e+00 : f32
    %280 = vector.broadcast %cst_104 : f32 to vector<2x32xf32>
    %281 = arith.addf %280, %279 : vector<2x32xf32>
    %282 = arith.divf %280, %281 : vector<2x32xf32>
    %283 = vector.extract_strided_slice %19 {offsets = [6, 0, 0], sizes = [1, 2, 32], strides = [1, 1, 1]} : vector<8x2x32xf32> to vector<1x2x32xf32>
    %284 = vector.shape_cast %283 : vector<1x2x32xf32> to vector<2x32xf32>
    %cst_105 = arith.constant dense<0.000000e+00> : vector<2x32xf32>
    %285 = tpu.matmul %255, %22, %cst_105 {dimension_numbers = #tpu.dot_dimension_numbers<[1], [0], [0], [1], [0, 0, 1, 1], [], []>} : vector<2x32xf32>, vector<32x32xf32>, vector<2x32xf32> -> vector<2x32xf32>
    %286 = vector.broadcast %23 : vector<1x32xf32> to vector<2x32xf32>
    %287 = arith.addf %285, %286 : vector<2x32xf32>
    %288 = arith.mulf %273, %287 : vector<2x32xf32>
    %289 = arith.addf %284, %288 : vector<2x32xf32>
    %290 = math.tanh %289 : vector<2x32xf32>
    %cst_106 = arith.constant 1.000000e+00 : f32
    %291 = vector.broadcast %cst_106 : f32 to vector<2x32xf32>
    %292 = arith.subf %291, %282 : vector<2x32xf32>
    %293 = arith.mulf %292, %290 : vector<2x32xf32>
    %294 = arith.mulf %282, %255 : vector<2x32xf32>
    %295 = arith.addf %293, %294 : vector<2x32xf32>
    %cst_107 = arith.constant dense<0.000000e+00> : vector<2x64xf32>
    %296 = tpu.matmul %295, %24, %cst_107 {dimension_numbers = #tpu.dot_dimension_numbers<[1], [0], [0], [1], [0, 0, 1, 1], [], []>} : vector<2x32xf32>, vector<32x64xf32>, vector<2x64xf32> -> vector<2x64xf32>
    %297 = arith.addf %296, %32 : vector<2x64xf32>
    %298 = math.tanh %297 : vector<2x64xf32>
    %cst_108 = arith.constant dense<0.000000e+00> : vector<2x2xf32>
    %299 = tpu.matmul %298, %25, %cst_108 {dimension_numbers = #tpu.dot_dimension_numbers<[1], [0], [0], [1], [0, 0, 1, 1], [], []>} : vector<2x64xf32>, vector<64x2xf32>, vector<2x2xf32> -> vector<2x2xf32>
    %c6 = arith.constant 6 : index
    %c0_109 = arith.constant 0 : index
    %c0_110 = arith.constant 0 : index
    %300 = vector.load %arg2[%c6, %c0_109, %c0_110] : memref<8x2x1xf32, #tpu.memory_space<vmem>>, vector<1x2x1xf32>
    %301 = vector.shape_cast %300 : vector<1x2x1xf32> to vector<2x1xf32>
    %302 = vector.broadcast %301 : vector<2x1xf32> to vector<2x2xf32>
    %303 = arith.addf %299, %302 : vector<2x2xf32>
    %cst_111 = arith.constant dense<0.000000e+00> : vector<2x2xf32>
    %304 = tpu.matmul %295, %26, %cst_111 {dimension_numbers = #tpu.dot_dimension_numbers<[1], [0], [0], [1], [0, 0, 1, 1], [], []>} : vector<2x32xf32>, vector<32x2xf32>, vector<2x2xf32> -> vector<2x2xf32>
    %305 = vector.extract_strided_slice %7 {offsets = [7, 0, 0], sizes = [1, 2, 32], strides = [1, 1, 1]} : vector<8x2x32xf32> to vector<1x2x32xf32>
    %306 = vector.shape_cast %305 : vector<1x2x32xf32> to vector<2x32xf32>
    %cst_112 = arith.constant dense<0.000000e+00> : vector<2x32xf32>
    %307 = tpu.matmul %295, %20, %cst_112 {dimension_numbers = #tpu.dot_dimension_numbers<[1], [0], [0], [1], [0, 0, 1, 1], [], []>} : vector<2x32xf32>, vector<32x32xf32>, vector<2x32xf32> -> vector<2x32xf32>
    %308 = arith.addf %306, %307 : vector<2x32xf32>
    %309 = arith.negf %308 : vector<2x32xf32>
    %310 = math.exp %309 : vector<2x32xf32>
    %cst_113 = arith.constant 1.000000e+00 : f32
    %311 = vector.broadcast %cst_113 : f32 to vector<2x32xf32>
    %312 = arith.addf %311, %310 : vector<2x32xf32>
    %313 = arith.divf %311, %312 : vector<2x32xf32>
    %314 = vector.extract_strided_slice %13 {offsets = [7, 0, 0], sizes = [1, 2, 32], strides = [1, 1, 1]} : vector<8x2x32xf32> to vector<1x2x32xf32>
    %315 = vector.shape_cast %314 : vector<1x2x32xf32> to vector<2x32xf32>
    %cst_114 = arith.constant dense<0.000000e+00> : vector<2x32xf32>
    %316 = tpu.matmul %295, %21, %cst_114 {dimension_numbers = #tpu.dot_dimension_numbers<[1], [0], [0], [1], [0, 0, 1, 1], [], []>} : vector<2x32xf32>, vector<32x32xf32>, vector<2x32xf32> -> vector<2x32xf32>
    %317 = arith.addf %315, %316 : vector<2x32xf32>
    %318 = arith.negf %317 : vector<2x32xf32>
    %319 = math.exp %318 : vector<2x32xf32>
    %cst_115 = arith.constant 1.000000e+00 : f32
    %320 = vector.broadcast %cst_115 : f32 to vector<2x32xf32>
    %321 = arith.addf %320, %319 : vector<2x32xf32>
    %322 = arith.divf %320, %321 : vector<2x32xf32>
    %323 = vector.extract_strided_slice %19 {offsets = [7, 0, 0], sizes = [1, 2, 32], strides = [1, 1, 1]} : vector<8x2x32xf32> to vector<1x2x32xf32>
    %324 = vector.shape_cast %323 : vector<1x2x32xf32> to vector<2x32xf32>
    %cst_116 = arith.constant dense<0.000000e+00> : vector<2x32xf32>
    %325 = tpu.matmul %295, %22, %cst_116 {dimension_numbers = #tpu.dot_dimension_numbers<[1], [0], [0], [1], [0, 0, 1, 1], [], []>} : vector<2x32xf32>, vector<32x32xf32>, vector<2x32xf32> -> vector<2x32xf32>
    %326 = vector.broadcast %23 : vector<1x32xf32> to vector<2x32xf32>
    %327 = arith.addf %325, %326 : vector<2x32xf32>
    %328 = arith.mulf %313, %327 : vector<2x32xf32>
    %329 = arith.addf %324, %328 : vector<2x32xf32>
    %330 = math.tanh %329 : vector<2x32xf32>
    %cst_117 = arith.constant 1.000000e+00 : f32
    %331 = vector.broadcast %cst_117 : f32 to vector<2x32xf32>
    %332 = arith.subf %331, %322 : vector<2x32xf32>
    %333 = arith.mulf %332, %330 : vector<2x32xf32>
    %334 = arith.mulf %322, %295 : vector<2x32xf32>
    %335 = arith.addf %333, %334 : vector<2x32xf32>
    %cst_118 = arith.constant dense<0.000000e+00> : vector<2x64xf32>
    %336 = tpu.matmul %335, %24, %cst_118 {dimension_numbers = #tpu.dot_dimension_numbers<[1], [0], [0], [1], [0, 0, 1, 1], [], []>} : vector<2x32xf32>, vector<32x64xf32>, vector<2x64xf32> -> vector<2x64xf32>
    %337 = arith.addf %336, %32 : vector<2x64xf32>
    %338 = math.tanh %337 : vector<2x64xf32>
    %cst_119 = arith.constant dense<0.000000e+00> : vector<2x2xf32>
    %339 = tpu.matmul %338, %25, %cst_119 {dimension_numbers = #tpu.dot_dimension_numbers<[1], [0], [0], [1], [0, 0, 1, 1], [], []>} : vector<2x64xf32>, vector<64x2xf32>, vector<2x2xf32> -> vector<2x2xf32>
    %c7 = arith.constant 7 : index
    %c0_120 = arith.constant 0 : index
    %c0_121 = arith.constant 0 : index
    %340 = vector.load %arg2[%c7, %c0_120, %c0_121] : memref<8x2x1xf32, #tpu.memory_space<vmem>>, vector<1x2x1xf32>
    %341 = vector.shape_cast %340 : vector<1x2x1xf32> to vector<2x1xf32>
    %342 = vector.broadcast %341 : vector<2x1xf32> to vector<2x2xf32>
    %343 = arith.addf %339, %342 : vector<2x2xf32>
    %cst_122 = arith.constant dense<0.000000e+00> : vector<2x2xf32>
    %344 = tpu.matmul %335, %26, %cst_122 {dimension_numbers = #tpu.dot_dimension_numbers<[1], [0], [0], [1], [0, 0, 1, 1], [], []>} : vector<2x32xf32>, vector<32x2xf32>, vector<2x2xf32> -> vector<2x2xf32>
    %345 = arith.maximumf %63, %103 : vector<2x2xf32>
    %346 = arith.maximumf %143, %183 : vector<2x2xf32>
    %347 = arith.maximumf %223, %263 : vector<2x2xf32>
    %348 = arith.maximumf %303, %343 : vector<2x2xf32>
    %349 = arith.maximumf %345, %346 : vector<2x2xf32>
    %350 = arith.maximumf %347, %348 : vector<2x2xf32>
    %351 = arith.maximumf %349, %350 : vector<2x2xf32>
    %352 = arith.subf %63, %351 : vector<2x2xf32>
    %353 = math.exp %352 : vector<2x2xf32>
    %354 = arith.subf %103, %351 : vector<2x2xf32>
    %355 = math.exp %354 : vector<2x2xf32>
    %356 = arith.subf %143, %351 : vector<2x2xf32>
    %357 = math.exp %356 : vector<2x2xf32>
    %358 = arith.subf %183, %351 : vector<2x2xf32>
    %359 = math.exp %358 : vector<2x2xf32>
    %360 = arith.subf %223, %351 : vector<2x2xf32>
    %361 = math.exp %360 : vector<2x2xf32>
    %362 = arith.subf %263, %351 : vector<2x2xf32>
    %363 = math.exp %362 : vector<2x2xf32>
    %364 = arith.subf %303, %351 : vector<2x2xf32>
    %365 = math.exp %364 : vector<2x2xf32>
    %366 = arith.subf %343, %351 : vector<2x2xf32>
    %367 = math.exp %366 : vector<2x2xf32>
    %368 = arith.addf %353, %355 : vector<2x2xf32>
    %369 = arith.addf %357, %359 : vector<2x2xf32>
    %370 = arith.addf %361, %363 : vector<2x2xf32>
    %371 = arith.addf %365, %367 : vector<2x2xf32>
    %372 = arith.addf %368, %369 : vector<2x2xf32>
    %373 = arith.addf %370, %371 : vector<2x2xf32>
    %374 = arith.addf %372, %373 : vector<2x2xf32>
    %375 = tpu.reciprocal %374 {approx = true} : vector<2x2xf32> -> vector<2x2xf32>
    %376 = arith.mulf %353, %375 : vector<2x2xf32>
    %377 = arith.mulf %355, %375 : vector<2x2xf32>
    %378 = arith.mulf %357, %375 : vector<2x2xf32>
    %379 = arith.mulf %359, %375 : vector<2x2xf32>
    %380 = arith.mulf %361, %375 : vector<2x2xf32>
    %381 = arith.mulf %363, %375 : vector<2x2xf32>
    %382 = arith.mulf %365, %375 : vector<2x2xf32>
    %383 = arith.mulf %367, %375 : vector<2x2xf32>
    %384 = arith.mulf %376, %64 : vector<2x2xf32>
    %385 = arith.mulf %377, %104 : vector<2x2xf32>
    %386 = arith.mulf %378, %144 : vector<2x2xf32>
    %387 = arith.mulf %379, %184 : vector<2x2xf32>
    %388 = arith.mulf %380, %224 : vector<2x2xf32>
    %389 = arith.mulf %381, %264 : vector<2x2xf32>
    %390 = arith.mulf %382, %304 : vector<2x2xf32>
    %391 = arith.mulf %383, %344 : vector<2x2xf32>
    %392 = arith.addf %384, %385 : vector<2x2xf32>
    %393 = arith.addf %386, %387 : vector<2x2xf32>
    %394 = arith.addf %388, %389 : vector<2x2xf32>
    %395 = arith.addf %390, %391 : vector<2x2xf32>
    %396 = arith.addf %392, %393 : vector<2x2xf32>
    %397 = arith.addf %394, %395 : vector<2x2xf32>
    %398 = arith.addf %396, %397 : vector<2x2xf32>
    %399 = arith.mulf %376, %376 : vector<2x2xf32>
    %400 = arith.mulf %377, %377 : vector<2x2xf32>
    %401 = arith.mulf %378, %378 : vector<2x2xf32>
    %402 = arith.mulf %379, %379 : vector<2x2xf32>
    %403 = arith.mulf %380, %380 : vector<2x2xf32>
    %404 = arith.mulf %381, %381 : vector<2x2xf32>
    %405 = arith.mulf %382, %382 : vector<2x2xf32>
    %406 = arith.mulf %383, %383 : vector<2x2xf32>
    %407 = arith.addf %399, %400 : vector<2x2xf32>
    %408 = arith.addf %401, %402 : vector<2x2xf32>
    %409 = arith.addf %403, %404 : vector<2x2xf32>
    %410 = arith.addf %405, %406 : vector<2x2xf32>
    %411 = arith.addf %407, %408 : vector<2x2xf32>
    %412 = arith.addf %409, %410 : vector<2x2xf32>
    %413 = arith.addf %411, %412 : vector<2x2xf32>
    %414 = vector.shape_cast %376 : vector<2x2xf32> to vector<2x2x1xf32>
    %415 = vector.shape_cast %376 : vector<2x2xf32> to vector<2x1x2xf32>
    %416 = vector.broadcast %414 : vector<2x2x1xf32> to vector<2x2x2xf32>
    %417 = vector.broadcast %415 : vector<2x1x2xf32> to vector<2x2x2xf32>
    %418 = arith.mulf %416, %417 : vector<2x2x2xf32>
    %419 = vector.shape_cast %377 : vector<2x2xf32> to vector<2x2x1xf32>
    %420 = vector.shape_cast %377 : vector<2x2xf32> to vector<2x1x2xf32>
    %421 = vector.broadcast %419 : vector<2x2x1xf32> to vector<2x2x2xf32>
    %422 = vector.broadcast %420 : vector<2x1x2xf32> to vector<2x2x2xf32>
    %423 = arith.mulf %421, %422 : vector<2x2x2xf32>
    %424 = vector.shape_cast %378 : vector<2x2xf32> to vector<2x2x1xf32>
    %425 = vector.shape_cast %378 : vector<2x2xf32> to vector<2x1x2xf32>
    %426 = vector.broadcast %424 : vector<2x2x1xf32> to vector<2x2x2xf32>
    %427 = vector.broadcast %425 : vector<2x1x2xf32> to vector<2x2x2xf32>
    %428 = arith.mulf %426, %427 : vector<2x2x2xf32>
    %429 = vector.shape_cast %379 : vector<2x2xf32> to vector<2x2x1xf32>
    %430 = vector.shape_cast %379 : vector<2x2xf32> to vector<2x1x2xf32>
    %431 = vector.broadcast %429 : vector<2x2x1xf32> to vector<2x2x2xf32>
    %432 = vector.broadcast %430 : vector<2x1x2xf32> to vector<2x2x2xf32>
    %433 = arith.mulf %431, %432 : vector<2x2x2xf32>
    %434 = vector.shape_cast %380 : vector<2x2xf32> to vector<2x2x1xf32>
    %435 = vector.shape_cast %380 : vector<2x2xf32> to vector<2x1x2xf32>
    %436 = vector.broadcast %434 : vector<2x2x1xf32> to vector<2x2x2xf32>
    %437 = vector.broadcast %435 : vector<2x1x2xf32> to vector<2x2x2xf32>
    %438 = arith.mulf %436, %437 : vector<2x2x2xf32>
    %439 = vector.shape_cast %381 : vector<2x2xf32> to vector<2x2x1xf32>
    %440 = vector.shape_cast %381 : vector<2x2xf32> to vector<2x1x2xf32>
    %441 = vector.broadcast %439 : vector<2x2x1xf32> to vector<2x2x2xf32>
    %442 = vector.broadcast %440 : vector<2x1x2xf32> to vector<2x2x2xf32>
    %443 = arith.mulf %441, %442 : vector<2x2x2xf32>
    %444 = vector.shape_cast %382 : vector<2x2xf32> to vector<2x2x1xf32>
    %445 = vector.shape_cast %382 : vector<2x2xf32> to vector<2x1x2xf32>
    %446 = vector.broadcast %444 : vector<2x2x1xf32> to vector<2x2x2xf32>
    %447 = vector.broadcast %445 : vector<2x1x2xf32> to vector<2x2x2xf32>
    %448 = arith.mulf %446, %447 : vector<2x2x2xf32>
    %449 = vector.shape_cast %383 : vector<2x2xf32> to vector<2x2x1xf32>
    %450 = vector.shape_cast %383 : vector<2x2xf32> to vector<2x1x2xf32>
    %451 = vector.broadcast %449 : vector<2x2x1xf32> to vector<2x2x2xf32>
    %452 = vector.broadcast %450 : vector<2x1x2xf32> to vector<2x2x2xf32>
    %453 = arith.mulf %451, %452 : vector<2x2x2xf32>
    %454 = arith.addf %418, %423 : vector<2x2x2xf32>
    %455 = arith.addf %428, %433 : vector<2x2x2xf32>
    %456 = arith.addf %438, %443 : vector<2x2x2xf32>
    %457 = arith.addf %448, %453 : vector<2x2x2xf32>
    %458 = arith.addf %454, %455 : vector<2x2x2xf32>
    %459 = arith.addf %456, %457 : vector<2x2x2xf32>
    %460 = arith.addf %458, %459 : vector<2x2x2xf32>
    %c0_123 = arith.constant 0 : index
    %c0_124 = arith.constant 0 : index
    %461 = vector.load %arg18[%c0_123, %c0_124] : memref<32x2xf32, #tpu.memory_space<vmem>>, vector<32x2xf32>
    %cst_125 = arith.constant dense<0.000000e+00> : vector<2x2xf32>
    %462 = tpu.matmul %27, %461, %cst_125 {dimension_numbers = #tpu.dot_dimension_numbers<[1], [0], [0], [1], [0, 0, 1, 1], [], []>} : vector<2x32xf32>, vector<32x2xf32>, vector<2x2xf32> -> vector<2x2xf32>
    %463 = arith.addf %398, %462 : vector<2x2xf32>
    %c0_126 = arith.constant 0 : index
    %c0_127 = arith.constant 0 : index
    %464 = vector.load %arg19[%c0_126, %c0_127] : memref<1x2xf32, #tpu.memory_space<vmem>>, vector<1x2xf32>
    %465 = vector.broadcast %464 : vector<1x2xf32> to vector<2x2xf32>
    %466 = arith.addf %463, %465 : vector<2x2xf32>
    %c0_128 = arith.constant 0 : index
    %c0_129 = arith.constant 0 : index
    %467 = vector.load %arg20[%c0_128, %c0_129] : memref<2x2xf32, #tpu.memory_space<vmem>>, vector<2x2xf32>
    tpu.vector_store %arg20[%c0_128, %c0_129], %466 {strides = array<i32>} : memref<2x2xf32, #tpu.memory_space<vmem>>, vector<2x2xf32>,
    %468 = arith.mulf %460, %460 : vector<2x2x2xf32>
    %469 = vector.shape_cast %468 : vector<2x2x2xf32> to vector<1x2x2x2xf32>
    %cst_130 = arith.constant dense<0.000000e+00> : vector<1xf32>
    %470 = vector.multi_reduction <add>, %469, %cst_130 [1, 2, 3] : vector<1x2x2x2xf32> to vector<1xf32>
    %471 = vector.shape_cast %470 : vector<1xf32> to vector<1x1x1x1xf32>
    %472 = vector.extract %471[0, 0, 0, 0] : f32 from vector<1x1x1x1xf32>
    %473 = vector.shape_cast %413 : vector<2x2xf32> to vector<1x2x2xf32>
    %cst_131 = arith.constant dense<0.000000e+00> : vector<1xf32>
    %474 = vector.multi_reduction <add>, %473, %cst_131 [1, 2] : vector<1x2x2xf32> to vector<1xf32>
    %475 = vector.shape_cast %474 : vector<1xf32> to vector<1x1x1xf32>
    %476 = vector.extract %475[0, 0, 0] : f32 from vector<1x1x1xf32>
    %cst_132 = arith.constant 2.000000e+00 : f32
    %477 = arith.mulf %cst_132, %476 : f32
    %478 = arith.subf %472, %477 : f32
    %cst_133 = arith.constant 1.600000e+01 : f32
    %479 = arith.addf %478, %cst_133 : f32
    %cst_134 = arith.constant 0.000000e+00 : f32
    %480 = arith.maximumf %479, %cst_134 : f32
    %481 = math.sqrt %480 : f32
    %cst_135 = arith.constant 8.000000e+00 : f32
    %482 = arith.divf %481, %cst_135 : f32
    %483 = vector.broadcast %482 : f32 to vector<1x1xf32>
    %c0_136 = arith.constant 0 : index
    %c0_137 = arith.constant 0 : index
    %484 = vector.load %arg21[%c0_136, %c0_137] : memref<1x1xf32, #tpu.memory_space<vmem>>, vector<1x1xf32>
    tpu.vector_store %arg21[%c0_136, %c0_137], %483 {strides = array<i32>} : memref<1x1xf32, #tpu.memory_space<vmem>>, vector<1x1xf32>,
    return
  }
}

</mosaic_0001>

<llo_original>
// kernel: dat_gru_forward.1
$region0: #{dat_gru_forward.1}
  #allocation0 [shape = 'u32[]', space=smem, size = 0x4, offset = 0x4, fixed_abs, tag = 'smem constant byte address 0x4 - core index']
  #allocation1 [shape = 'u32[144,128]{1,0:T(1,128)}', space=vmem, size = 0x12000, scoped, tag = 'internal scratch']
  %s0 = inlined_call_operand.vmem [shape: f32[8,2,32], index: 0, kind: input, shape index: {}]
  %s1 = inlined_call_operand.vmem [shape: f32[2,32], index: 1, kind: input, shape index: {}]
  %s2 = inlined_call_operand.vmem [shape: f32[8,2,1], index: 2, kind: input, shape index: {}]
  %s3 = inlined_call_operand.vmem [shape: f32[32,32], index: 3, kind: input, shape index: {}]
  %s4 = inlined_call_operand.vmem [shape: f32[32,32], index: 4, kind: input, shape index: {}]
  %s5 = inlined_call_operand.vmem [shape: f32[32,32], index: 5, kind: input, shape index: {}]
  %s6 = inlined_call_operand.vmem [shape: f32[32,32], index: 6, kind: input, shape index: {}]
  %s7 = inlined_call_operand.vmem [shape: f32[32,32], index: 7, kind: input, shape index: {}]
  %s8 = inlined_call_operand.vmem [shape: f32[32,32], index: 8, kind: input, shape index: {}]
  %s9 = inlined_call_operand.vmem [shape: f32[1,32], index: 9, kind: input, shape index: {}]
  %s10 = inlined_call_operand.vmem [shape: f32[1,32], index: 10, kind: input, shape index: {}]
  %s11 = inlined_call_operand.vmem [shape: f32[1,32], index: 11, kind: input, shape index: {}]
  %s12 = inlined_call_operand.vmem [shape: f32[1,32], index: 12, kind: input, shape index: {}]
  %s13 = inlined_call_operand.vmem [shape: f32[32,64], index: 13, kind: input, shape index: {}]
  %s14 = inlined_call_operand.vmem [shape: f32[32,64], index: 14, kind: input, shape index: {}]
  %s15 = inlined_call_operand.vmem [shape: f32[1,64], index: 15, kind: input, shape index: {}]
  %s16 = inlined_call_operand.vmem [shape: f32[64,2], index: 16, kind: input, shape index: {}]
  %s17 = inlined_call_operand.vmem [shape: f32[32,2], index: 17, kind: input, shape index: {}]
  %s18 = inlined_call_operand.vmem [shape: f32[32,2], index: 18, kind: input, shape index: {}]
  %s19 = inlined_call_operand.vmem [shape: f32[1,2], index: 19, kind: input, shape index: {}]
  %s20 = inlined_call_operand.hbm [shape: f32[2,2], index: 20, kind: output, shape index: {0}]
  %s21 = inlined_call_operand.hbm [shape: f32[1,1], index: 21, kind: output, shape index: {1}]
  %22 = xla_tuple %s20, %s21
  %s23 = sld [smem:[#allocation0]]
  $region98: #{dat_gru_forward.1} parent=0
    _
  %s25 = ssub.s32 1, %s23
  %s26 = scalar_select 0, %s25, %s23
  $region1: #{dat_gru_forward.1} parent=0
    #allocation2 [shape = 'u8[1024]{0}', space=vmem, size = 0x400, scoped, tag = 'output window, operand 0, single buffered']
    #allocation3 [shape = 's32[1]{0}', space=sflag, size = 0x4, scoped, tag = 'scoped memory for dat_gru_forward.1']
    #allocation4 [shape = 'u8[512]{0}', space=vmem, size = 0x400, scoped, tag = 'output window, operand 1, single buffered']
    #allocation5 [shape = 's32[1]{0}', space=sflag, size = 0x4, scoped, tag = 'scoped memory for dat_gru_forward.1']
    %27 = vsyncpa [#allocation3], 0
    %28 = vsyncpa [#allocation5], 0
    // Predicated region
    $region2: #{dat_gru_forward.1} parent=1 // pred_check
      _
    $region3: #{dat_gru_forward.1} parent=1 // pred_check_branch
      %30 = sbr.rel (0) target = $region5
    $region4: #{dat_gru_forward.1} parent=1 // pred_region
      _
    $region5: #{dat_gru_forward.1} parent=1 // pred_fallthru
      _
    // Predicated region
    $region6: #{dat_gru_forward.1} parent=1 // pred_check
      _
    $region7: #{dat_gru_forward.1} parent=1 // pred_check_branch
      %32 = sbr.rel (0) target = $region9
    $region8: #{dat_gru_forward.1} parent=1 // pred_region
      _
    $region9: #{dat_gru_forward.1} parent=1 // pred_fallthru
      _
    // Predicated region
    $region10: #{dat_gru_forward.1} parent=1 // pred_check
      _
    $region11: #{dat_gru_forward.1} parent=1 // pred_check_branch
      %34 = sbr.rel (0) target = $region13
    $region12: #{dat_gru_forward.1} parent=1 // pred_region
      _
    $region13: #{dat_gru_forward.1} parent=1 // pred_fallthru
      _
    // Predicated region
    $region14: #{dat_gru_forward.1} parent=1 // pred_check
      _
    $region15: #{dat_gru_forward.1} parent=1 // pred_check_branch
      %36 = sbr.rel (0) target = $region17
    $region16: #{dat_gru_forward.1} parent=1 // pred_region
      _
    $region17: #{dat_gru_forward.1} parent=1 // pred_fallthru
      _
    // Predicated region
    $region18: #{dat_gru_forward.1} parent=1 // pred_check
      _
    $region19: #{dat_gru_forward.1} parent=1 // pred_check_branch
      %38 = sbr.rel (0) target = $region21
    $region20: #{dat_gru_forward.1} parent=1 // pred_region
      _
    $region21: #{dat_gru_forward.1} parent=1 // pred_fallthru
      _
    // Predicated region
    $region22: #{dat_gru_forward.1} parent=1 // pred_check
      _
    $region23: #{dat_gru_forward.1} parent=1 // pred_check_branch
      %40 = sbr.rel (0) target = $region25
    $region24: #{dat_gru_forward.1} parent=1 // pred_region
      _
    $region25: #{dat_gru_forward.1} parent=1 // pred_fallthru
      _
    // Predicated region
    $region26: #{dat_gru_forward.1} parent=1 // pred_check
      _
    $region27: #{dat_gru_forward.1} parent=1 // pred_check_branch
      %42 = sbr.rel (0) target = $region29
    $region28: #{dat_gru_forward.1} parent=1 // pred_region
      _
    $region29: #{dat_gru_forward.1} parent=1 // pred_fallthru
      _
    // Predicated region
    $region30: #{dat_gru_forward.1} parent=1 // pred_check
      _
    $region31: #{dat_gru_forward.1} parent=1 // pred_check_branch
      %44 = sbr.rel (0) target = $region33
    $region32: #{dat_gru_forward.1} parent=1 // pred_region
      _
    $region33: #{dat_gru_forward.1} parent=1 // pred_fallthru
      _
    // Predicated region
    $region34: #{dat_gru_forward.1} parent=1 // pred_check
      _
    $region35: #{dat_gru_forward.1} parent=1 // pred_check_branch
      %46 = sbr.rel (0) target = $region37
    $region36: #{dat_gru_forward.1} parent=1 // pred_region
      _
    $region37: #{dat_gru_forward.1} parent=1 // pred_fallthru
      _
    // Predicated region
    $region38: #{dat_gru_forward.1} parent=1 // pred_check
      _
    $region39: #{dat_gru_forward.1} parent=1 // pred_check_branch
      %48 = sbr.rel (0) target = $region41
    $region40: #{dat_gru_forward.1} parent=1 // pred_region
      _
    $region41: #{dat_gru_forward.1} parent=1 // pred_fallthru
      _
    // Predicated region
    $region42: #{dat_gru_forward.1} parent=1 // pred_check
      _
    $region43: #{dat_gru_forward.1} parent=1 // pred_check_branch
      %50 = sbr.rel (0) target = $region45
    $region44: #{dat_gru_forward.1} parent=1 // pred_region
      _
    $region45: #{dat_gru_forward.1} parent=1 // pred_fallthru
      _
    // Predicated region
    $region46: #{dat_gru_forward.1} parent=1 // pred_check
      _
    $region47: #{dat_gru_forward.1} parent=1 // pred_check_branch
      %52 = sbr.rel (0) target = $region49
    $region48: #{dat_gru_forward.1} parent=1 // pred_region
      _
    $region49: #{dat_gru_forward.1} parent=1 // pred_fallthru
      _
    // Predicated region
    $region50: #{dat_gru_forward.1} parent=1 // pred_check
      _
    $region51: #{dat_gru_forward.1} parent=1 // pred_check_branch
      %54 = sbr.rel (0) target = $region53
    $region52: #{dat_gru_forward.1} parent=1 // pred_region
      _
    $region53: #{dat_gru_forward.1} parent=1 // pred_fallthru
      _
    // Predicated region
    $region54: #{dat_gru_forward.1} parent=1 // pred_check
      _
    $region55: #{dat_gru_forward.1} parent=1 // pred_check_branch
      %56 = sbr.rel (0) target = $region57
    $region56: #{dat_gru_forward.1} parent=1 // pred_region
      _
    $region57: #{dat_gru_forward.1} parent=1 // pred_fallthru
      _
    // Predicated region
    $region58: #{dat_gru_forward.1} parent=1 // pred_check
      _
    $region59: #{dat_gru_forward.1} parent=1 // pred_check_branch
      %58 = sbr.rel (0) target = $region61
    $region60: #{dat_gru_forward.1} parent=1 // pred_region
      _
    $region61: #{dat_gru_forward.1} parent=1 // pred_fallthru
      _
    // Predicated region
    $region62: #{dat_gru_forward.1} parent=1 // pred_check
      _
    $region63: #{dat_gru_forward.1} parent=1 // pred_check_branch
      %60 = sbr.rel (0) target = $region65
    $region64: #{dat_gru_forward.1} parent=1 // pred_region
      _
    $region65: #{dat_gru_forward.1} parent=1 // pred_fallthru
      _
    // Predicated region
    $region66: #{dat_gru_forward.1} parent=1 // pred_check
      _
    $region67: #{dat_gru_forward.1} parent=1 // pred_check_branch
      %62 = sbr.rel (0) target = $region69
    $region68: #{dat_gru_forward.1} parent=1 // pred_region
      _
    $region69: #{dat_gru_forward.1} parent=1 // pred_fallthru
      _
    // Predicated region
    $region70: #{dat_gru_forward.1} parent=1 // pred_check
      _
    $region71: #{dat_gru_forward.1} parent=1 // pred_check_branch
      %64 = sbr.rel (0) target = $region73
    $region72: #{dat_gru_forward.1} parent=1 // pred_region
      _
    $region73: #{dat_gru_forward.1} parent=1 // pred_fallthru
      _
    // Predicated region
    $region74: #{dat_gru_forward.1} parent=1 // pred_check
      _
    $region75: #{dat_gru_forward.1} parent=1 // pred_check_branch
      %66 = sbr.rel (0) target = $region77
    $region76: #{dat_gru_forward.1} parent=1 // pred_region
      _
    $region77: #{dat_gru_forward.1} parent=1 // pred_fallthru
      _
    // Predicated region
    $region78: #{dat_gru_forward.1} parent=1 // pred_check
      _
    $region79: #{dat_gru_forward.1} parent=1 // pred_check_branch
      %68 = sbr.rel (0) target = $region81
    $region80: #{dat_gru_forward.1} parent=1 // pred_region
      _
    $region81: #{dat_gru_forward.1} parent=1 // pred_fallthru
      _
    %v69 = vld [vmem:[%s0] sm:$0x3]
    %v70 = vld [vmem:[%s0 + $0x2] sm:$0x3]
    %v71 = vld [vmem:[%s0 + $0x4] sm:$0x3]
    %v72 = vld [vmem:[%s0 + $0x6] sm:$0x3]
    %v73 = vld [vmem:[%s0 + $0x8] sm:$0x3]
    %v74 = vld [vmem:[%s0 + $0xa] sm:$0x3]
    %v75 = vld [vmem:[%s0 + $0xc] sm:$0x3]
    %v76 = vld [vmem:[%s0 + $0xe] sm:$0x3]
    %v77 = vld [vmem:[%s3] sm:$0xff]
    %v78 = vld [vmem:[%s3 + $0x8] sm:$0xff]
    %v79 = vld [vmem:[%s3 + $0x10] sm:$0xff]
    %v80 = vld [vmem:[%s3 + $0x18] sm:$0xff]
    %v81 = vld [vmem:[%s9] sm:$0x1]
    %v83 = vlaneseq
    %v84 = vshrl.u32 %v83, 7
    %v85 = vsub.s32 0, %v84
    %v86 = vrot.slane %v81, %v85
    %v96 = vcombine.low %v69, %v70
    %v97 = vcombine.low %v71, %v72
    %v99 = vunpack.c.l.s4 1983009808
    %v100 = vunpack.c.0.s8 %v99
    %v101 = vlaneseq
    %v102 = vshrl.u32 %v101, 7
    %v103 = vsub.s32 %v100, %v102
    %v104 = vrot.slane %v96, %v103
    %v106 = vunpack.c.l.s4 1983009808
    %v107 = vunpack.c.0.s8 %v106
    %v108 = vlaneseq
    %v109 = vshrl.u32 %v108, 7
    %v110 = vsub.s32 %v107, %v109
    %v111 = vrot.slane %v97, %v110
    %v112 = vcombine.low %v104, %v111
    %v113 = vcombine.low %v73, %v74
    %v114 = vcombine.low %v75, %v76
    %v116 = vunpack.c.l.s4 1983009808
    %v117 = vunpack.c.0.s8 %v116
    %v118 = vlaneseq
    %v119 = vshrl.u32 %v118, 7
    %v120 = vsub.s32 %v117, %v119
    %v121 = vrot.slane %v113, %v120
    %v123 = vunpack.c.l.s4 1983009808
    %v124 = vunpack.c.0.s8 %v123
    %v125 = vlaneseq
    %v126 = vshrl.u32 %v125, 7
    %v127 = vsub.s32 %v124, %v126
    %v128 = vrot.slane %v114, %v127
    %v129 = vcombine.low %v121, %v128
    %vm130 = vcmask 261120
    %v131 = vsel %vm130, %v112, 0
    %v133 = vsel %vm130, %v129, 0
    %135 = vmatprep.subr.mxu0 0.0
    %136 = vmatpush1.msra.mxu0 %v77
    %137 = vmatprep.subr.mxu0 0.0
    %138 = vmatpush1.msra.mxu0 %v78
    %139 = vmatprep.subr.mxu0 0.0
    %140 = vmatpush1.msra.mxu0 %v79
    %141 = vmatprep.subr.mxu0 0.0
    %142 = vmatpush1.msra.mxu0 %v80
    %143 = vmatprep.subr.mxu0 0.0
    %144 = vmatpush1.msra.mxu0 0.0
    %145 = vmatprep.subr.mxu0 0.0
    %146 = vmatpush1.msra.mxu0 0.0
    %147 = vmatprep.subr.mxu0 0.0
    %148 = vmatpush1.msra.mxu0 0.0
    %149 = vmatprep.subr.mxu0 0.0
    %150 = vmatpush1.msra.mxu0 0.0
    %151 = vmatprep.subr.mxu0 0.0
    %152 = vmatpush1.msra.mxu0 0.0
    %153 = vmatprep.subr.mxu0 0.0
    %154 = vmatpush1.msra.mxu0 0.0
    %155 = vmatprep.subr.mxu0 0.0
    %156 = vmatpush1.msra.mxu0 0.0
    %157 = vmatprep.subr.mxu0 0.0
    %158 = vmatpush1.msra.mxu0 0.0
    %159 = vmatprep.subr.mxu0 0.0
    %160 = vmatpush1.msra.mxu0 0.0
    %161 = vmatprep.subr.mxu0 0.0
    %162 = vmatpush1.msra.mxu0 0.0
    %163 = vmatprep.subr.mxu0 0.0
    %164 = vmatpush1.msra.mxu0 0.0
    %165 = vmatprep.subr.mxu0 0.0
    %166 = vmatpush1.msra.mxu0 0.0
    %167 = vmatprep.subr.mxu0 0.0
    %168 = vmatpush1.msra.mxu0 0.0
    %169 = vmatprep.subr.mxu0 0.0
    %170 = vmatpush1.msra.mxu0 0.0
    %171 = vmatprep.subr.mxu0 0.0
    %172 = vmatpush1.msra.mxu0 0.0
    %173 = vmatprep.subr.mxu0 0.0
    %174 = vmatpush1.msra.mxu0 0.0
    %175 = vmatprep.subr.mxu0 0.0
    %176 = vmatpush1.msra.mxu0 0.0
    %177 = vmatprep.subr.mxu0 0.0
    %178 = vmatpush1.msra.mxu0 0.0
    %179 = vmatprep.subr.mxu0 0.0
    %180 = vmatpush1.msra.mxu0 0.0
    %181 = vmatprep.subr.mxu0 0.0
    %182 = vmatpush1.msra.mxu0 0.0
    %183 = vmatprep.subr.mxu0 0.0
    %184 = vmatpush1.msra.mxu0 0.0
    %185 = vmatprep.subr.mxu0 0.0
    %186 = vmatpush1.msra.mxu0 0.0
    %187 = vmatprep.subr.mxu0 0.0
    %188 = vmatpush1.msra.mxu0 0.0
    %189 = vmatprep.subr.mxu0 0.0
    %190 = vmatpush1.msra.mxu0 0.0
    %191 = vmatprep.subr.mxu0 0.0
    %192 = vmatpush1.msra.mxu0 0.0
    %193 = vmatprep.subr.mxu0 0.0
    %194 = vmatpush1.msra.mxu0 0.0
    %195 = vmatprep.subr.mxu0 0.0
    %196 = vmatpush1.msra.mxu0 0.0
    %197 = vmatprep.subr.mxu0 0.0
    %198 = vmatpush1.msra.mxu0 0.0
    %199 = vmatprep.mubr.f32.mxu0 0.0
    %200 = vmatmul.mubr.f32.gmra.mrb[0].mxu0 %v131
    %v201 = vpop.f32.mrb[0].mxu0
    %v202 = vadd.f32 %v86, %v201
    %v203 = vpop.f32.mrb[0].mxu0
    %204 = vmatprep.mubr.f32.mxu0 0.0
    %205 = vmatmul.mubr.f32.gmra.mrb[0].mxu0 %v133
    %v206 = vpop.f32.mrb[0].mxu0
    %v207 = vadd.f32 %v86, %v206
    %v208 = vpop.f32.mrb[0].mxu0
    %209 = vdwg.mxu0
    %v212 = vcombine.high %v202, %v202
    %v214 = vunpack.c.l.s4 1983009808
    %v215 = vunpack.c.0.s8 %v214
    %v216 = vlaneseq
    %v217 = vshrl.u32 %v216, 7
    %v218 = vsub.s32 %v215, %v217
    %v219 = vrot.slane %v202, %v218
    %v221 = vunpack.c.l.s4 1983009808
    %v222 = vunpack.c.0.s8 %v221
    %v223 = vlaneseq
    %v224 = vshrl.u32 %v223, 7
    %v225 = vsub.s32 %v222, %v224
    %v226 = vrot.slane %v212, %v225
    %v227 = vcombine.high %v219, %v219
    %v228 = vcombine.high %v226, %v226
    %v229 = vcombine.high %v207, %v207
    %v231 = vunpack.c.l.s4 1983009808
    %v232 = vunpack.c.0.s8 %v231
    %v233 = vlaneseq
    %v234 = vshrl.u32 %v233, 7
    %v235 = vsub.s32 %v232, %v234
    %v236 = vrot.slane %v207, %v235
    %v238 = vunpack.c.l.s4 1983009808
    %v239 = vunpack.c.0.s8 %v238
    %v240 = vlaneseq
    %v241 = vshrl.u32 %v240, 7
    %v242 = vsub.s32 %v239, %v241
    %v243 = vrot.slane %v229, %v242
    %v244 = vcombine.high %v236, %v236
    %v245 = vcombine.high %v243, %v243
    %v254 = vld [vmem:[%s4] sm:$0xff]
    %v255 = vld [vmem:[%s4 + $0x8] sm:$0xff]
    %v256 = vld [vmem:[%s4 + $0x10] sm:$0xff]
    %v257 = vld [vmem:[%s4 + $0x18] sm:$0xff]
    %v258 = vld [vmem:[%s10] sm:$0x1]
    %v260 = vlaneseq
    %v261 = vshrl.u32 %v260, 7
    %v262 = vsub.s32 0, %v261
    %v263 = vrot.slane %v258, %v262
    %265 = vmatprep.subr.mxu0 0.0
    %266 = vmatpush1.msra.mxu0 %v254
    %267 = vmatprep.subr.mxu0 0.0
    %268 = vmatpush1.msra.mxu0 %v255
    %269 = vmatprep.subr.mxu0 0.0
    %270 = vmatpush1.msra.mxu0 %v256
    %271 = vmatprep.subr.mxu0 0.0
    %272 = vmatpush1.msra.mxu0 %v257
    %273 = vmatprep.subr.mxu0 0.0
    %274 = vmatpush1.msra.mxu0 0.0
    %275 = vmatprep.subr.mxu0 0.0
    %276 = vmatpush1.msra.mxu0 0.0
    %277 = vmatprep.subr.mxu0 0.0
    %278 = vmatpush1.msra.mxu0 0.0
    %279 = vmatprep.subr.mxu0 0.0
    %280 = vmatpush1.msra.mxu0 0.0
    %281 = vmatprep.subr.mxu0 0.0
    %282 = vmatpush1.msra.mxu0 0.0
    %283 = vmatprep.subr.mxu0 0.0
    %284 = vmatpush1.msra.mxu0 0.0
    %285 = vmatprep.subr.mxu0 0.0
    %286 = vmatpush1.msra.mxu0 0.0
    %287 = vmatprep.subr.mxu0 0.0
    %288 = vmatpush1.msra.mxu0 0.0
    %289 = vmatprep.subr.mxu0 0.0
    %290 = vmatpush1.msra.mxu0 0.0
    %291 = vmatprep.subr.mxu0 0.0
    %292 = vmatpush1.msra.mxu0 0.0
    %293 = vmatprep.subr.mxu0 0.0
    %294 = vmatpush1.msra.mxu0 0.0
    %295 = vmatprep.subr.mxu0 0.0
    %296 = vmatpush1.msra.mxu0 0.0
    %297 = vmatprep.subr.mxu0 0.0
    %298 = vmatpush1.msra.mxu0 0.0
    %299 = vmatprep.subr.mxu0 0.0
    %300 = vmatpush1.msra.mxu0 0.0
    %301 = vmatprep.subr.mxu0 0.0
    %302 = vmatpush1.msra.mxu0 0.0
    %303 = vmatprep.subr.mxu0 0.0
    %304 = vmatpush1.msra.mxu0 0.0
    %305 = vmatprep.subr.mxu0 0.0
    %306 = vmatpush1.msra.mxu0 0.0
    %307 = vmatprep.subr.mxu0 0.0
    %308 = vmatpush1.msra.mxu0 0.0
    %309 = vmatprep.subr.mxu0 0.0
    %310 = vmatpush1.msra.mxu0 0.0
    %311 = vmatprep.subr.mxu0 0.0
    %312 = vmatpush1.msra.mxu0 0.0
    %313 = vmatprep.subr.mxu0 0.0
    %314 = vmatpush1.msra.mxu0 0.0
    %315 = vmatprep.subr.mxu0 0.0
    %316 = vmatpush1.msra.mxu0 0.0
    %317 = vmatprep.subr.mxu0 0.0
    %318 = vmatpush1.msra.mxu0 0.0
    %319 = vmatprep.subr.mxu0 0.0
    %320 = vmatpush1.msra.mxu0 0.0
    %321 = vmatprep.subr.mxu0 0.0
    %322 = vmatpush1.msra.mxu0 0.0
    %323 = vmatprep.subr.mxu0 0.0
    %324 = vmatpush1.msra.mxu0 0.0
    %325 = vmatprep.subr.mxu0 0.0
    %326 = vmatpush1.msra.mxu0 0.0
    %327 = vmatprep.subr.mxu0 0.0
    %328 = vmatpush1.msra.mxu0 0.0
    %329 = vmatprep.mubr.f32.mxu0 0.0
    %330 = vmatmul.mubr.f32.gmra.mrb[0].mxu0 %v131
    %v331 = vpop.f32.mrb[0].mxu0
    %v332 = vadd.f32 %v263, %v331
    %v333 = vpop.f32.mrb[0].mxu0
    %334 = vmatprep.mubr.f32.mxu0 0.0
    %335 = vmatmul.mubr.f32.gmra.mrb[0].mxu0 %v133
    %v336 = vpop.f32.mrb[0].mxu0
    %v337 = vadd.f32 %v263, %v336
    %v338 = vpop.f32.mrb[0].mxu0
    %339 = vdwg.mxu0
    %v342 = vcombine.high %v332, %v332
    %v344 = vunpack.c.l.s4 1983009808
    %v345 = vunpack.c.0.s8 %v344
    %v346 = vlaneseq
    %v347 = vshrl.u32 %v346, 7
    %v348 = vsub.s32 %v345, %v347
    %v349 = vrot.slane %v332, %v348
    %v351 = vunpack.c.l.s4 1983009808
    %v352 = vunpack.c.0.s8 %v351
    %v353 = vlaneseq
    %v354 = vshrl.u32 %v353, 7
    %v355 = vsub.s32 %v352, %v354
    %v356 = vrot.slane %v342, %v355
    %v357 = vcombine.high %v349, %v349
    %v358 = vcombine.high %v356, %v356
    %v359 = vcombine.high %v337, %v337
    %v361 = vunpack.c.l.s4 1983009808
    %v362 = vunpack.c.0.s8 %v361
    %v363 = vlaneseq
    %v364 = vshrl.u32 %v363, 7
    %v365 = vsub.s32 %v362, %v364
    %v366 = vrot.slane %v337, %v365
    %v368 = vunpack.c.l.s4 1983009808
    %v369 = vunpack.c.0.s8 %v368
    %v370 = vlaneseq
    %v371 = vshrl.u32 %v370, 7
    %v372 = vsub.s32 %v369, %v371
    %v373 = vrot.slane %v359, %v372
    %v374 = vcombine.high %v366, %v366
    %v375 = vcombine.high %v373, %v373
    %v384 = vld [vmem:[%s5] sm:$0xff]
    %v385 = vld [vmem:[%s5 + $0x8] sm:$0xff]
    %v386 = vld [vmem:[%s5 + $0x10] sm:$0xff]
    %v387 = vld [vmem:[%s5 + $0x18] sm:$0xff]
    %v388 = vld [vmem:[%s11] sm:$0x1]
    %v390 = vlaneseq
    %v391 = vshrl.u32 %v390, 7
    %v392 = vsub.s32 0, %v391
    %v393 = vrot.slane %v388, %v392
    %395 = vmatprep.subr.mxu0 0.0
    %396 = vmatpush1.msra.mxu0 %v384
    %397 = vmatprep.subr.mxu0 0.0
    %398 = vmatpush1.msra.mxu0 %v385
    %399 = vmatprep.subr.mxu0 0.0
    %400 = vmatpush1.msra.mxu0 %v386
    %401 = vmatprep.subr.mxu0 0.0
    %402 = vmatpush1.msra.mxu0 %v387
    %403 = vmatprep.subr.mxu0 0.0
    %404 = vmatpush1.msra.mxu0 0.0
    %405 = vmatprep.subr.mxu0 0.0
    %406 = vmatpush1.msra.mxu0 0.0
    %407 = vmatprep.subr.mxu0 0.0
    %408 = vmatpush1.msra.mxu0 0.0
    %409 = vmatprep.subr.mxu0 0.0
    %410 = vmatpush1.msra.mxu0 0.0
    %411 = vmatprep.subr.mxu0 0.0
    %412 = vmatpush1.msra.mxu0 0.0
    %413 = vmatprep.subr.mxu0 0.0
    %414 = vmatpush1.msra.mxu0 0.0
    %415 = vmatprep.subr.mxu0 0.0
    %416 = vmatpush1.msra.mxu0 0.0
    %417 = vmatprep.subr.mxu0 0.0
    %418 = vmatpush1.msra.mxu0 0.0
    %419 = vmatprep.subr.mxu0 0.0
    %420 = vmatpush1.msra.mxu0 0.0
    %421 = vmatprep.subr.mxu0 0.0
    %422 = vmatpush1.msra.mxu0 0.0
    %423 = vmatprep.subr.mxu0 0.0
    %424 = vmatpush1.msra.mxu0 0.0
    %425 = vmatprep.subr.mxu0 0.0
    %426 = vmatpush1.msra.mxu0 0.0
    %427 = vmatprep.subr.mxu0 0.0
    %428 = vmatpush1.msra.mxu0 0.0
    %429 = vmatprep.subr.mxu0 0.0
    %430 = vmatpush1.msra.mxu0 0.0
    %431 = vmatprep.subr.mxu0 0.0
    %432 = vmatpush1.msra.mxu0 0.0
    %433 = vmatprep.subr.mxu0 0.0
    %434 = vmatpush1.msra.mxu0 0.0
    %435 = vmatprep.subr.mxu0 0.0
    %436 = vmatpush1.msra.mxu0 0.0
    %437 = vmatprep.subr.mxu0 0.0
    %438 = vmatpush1.msra.mxu0 0.0
    %439 = vmatprep.subr.mxu0 0.0
    %440 = vmatpush1.msra.mxu0 0.0
    %441 = vmatprep.subr.mxu0 0.0
    %442 = vmatpush1.msra.mxu0 0.0
    %443 = vmatprep.subr.mxu0 0.0
    %444 = vmatpush1.msra.mxu0 0.0
    %445 = vmatprep.subr.mxu0 0.0
    %446 = vmatpush1.msra.mxu0 0.0
    %447 = vmatprep.subr.mxu0 0.0
    %448 = vmatpush1.msra.mxu0 0.0
    %449 = vmatprep.subr.mxu0 0.0
    %450 = vmatpush1.msra.mxu0 0.0
    %451 = vmatprep.subr.mxu0 0.0
    %452 = vmatpush1.msra.mxu0 0.0
    %453 = vmatprep.subr.mxu0 0.0
    %454 = vmatpush1.msra.mxu0 0.0
    %455 = vmatprep.subr.mxu0 0.0
    %456 = vmatpush1.msra.mxu0 0.0
    %457 = vmatprep.subr.mxu0 0.0
    %458 = vmatpush1.msra.mxu0 0.0
    %459 = vmatprep.mubr.f32.mxu0 0.0
    %460 = vmatmul.mubr.f32.gmra.mrb[0].mxu0 %v131
    %v461 = vpop.f32.mrb[0].mxu0
    %v462 = vadd.f32 %v393, %v461
    %v463 = vpop.f32.mrb[0].mxu0
    %464 = vmatprep.mubr.f32.mxu0 0.0
    %465 = vmatmul.mubr.f32.gmra.mrb[0].mxu0 %v133
    %v466 = vpop.f32.mrb[0].mxu0
    %v467 = vadd.f32 %v393, %v466
    %v468 = vpop.f32.mrb[0].mxu0
    %469 = vdwg.mxu0
    %v472 = vcombine.high %v462, %v462
    %v474 = vunpack.c.l.s4 1983009808
    %v475 = vunpack.c.0.s8 %v474
    %v476 = vlaneseq
    %v477 = vshrl.u32 %v476, 7
    %v478 = vsub.s32 %v475, %v477
    %v479 = vrot.slane %v462, %v478
    %v481 = vunpack.c.l.s4 1983009808
    %v482 = vunpack.c.0.s8 %v481
    %v483 = vlaneseq
    %v484 = vshrl.u32 %v483, 7
    %v485 = vsub.s32 %v482, %v484
    %v486 = vrot.slane %v472, %v485
    %v487 = vcombine.high %v479, %v479
    %v488 = vcombine.high %v486, %v486
    %v489 = vcombine.high %v467, %v467
    %v491 = vunpack.c.l.s4 1983009808
    %v492 = vunpack.c.0.s8 %v491
    %v493 = vlaneseq
    %v494 = vshrl.u32 %v493, 7
    %v495 = vsub.s32 %v492, %v494
    %v496 = vrot.slane %v467, %v495
    %v498 = vunpack.c.l.s4 1983009808
    %v499 = vunpack.c.0.s8 %v498
    %v500 = vlaneseq
    %v501 = vshrl.u32 %v500, 7
    %v502 = vsub.s32 %v499, %v501
    %v503 = vrot.slane %v489, %v502
    %v504 = vcombine.high %v496, %v496
    %v505 = vcombine.high %v503, %v503
    %v514 = vld [vmem:[%s6] sm:$0xff]
    %v515 = vld [vmem:[%s6 + $0x8] sm:$0xff]
    %v516 = vld [vmem:[%s6 + $0x10] sm:$0xff]
    %v517 = vld [vmem:[%s6 + $0x18] sm:$0xff]
    %v518 = vld [vmem:[%s7] sm:$0xff]
    %v519 = vld [vmem:[%s7 + $0x8] sm:$0xff]
    %v520 = vld [vmem:[%s7 + $0x10] sm:$0xff]
    %v521 = vld [vmem:[%s7 + $0x18] sm:$0xff]
    %v522 = vld [vmem:[%s8] sm:$0xff]
    %v523 = vld [vmem:[%s8 + $0x8] sm:$0xff]
    %v524 = vld [vmem:[%s8 + $0x10] sm:$0xff]
    %v525 = vld [vmem:[%s8 + $0x18] sm:$0xff]
    %v526 = vld [vmem:[%s12] sm:$0x1]
    %v527 = vld [vmem:[%s13] sm:$0xff]
    %v528 = vld [vmem:[%s13 + $0x8] sm:$0xff]
    %v529 = vld [vmem:[%s13 + $0x10] sm:$0xff]
    %v530 = vld [vmem:[%s13 + $0x18] sm:$0xff]
    %v531 = vld [vmem:[%s16] sm:$0xff]
    %v532 = vld [vmem:[%s16 + $0x8] sm:$0xff]
    %v533 = vld [vmem:[%s16 + $0x10] sm:$0xff]
    %v534 = vld [vmem:[%s16 + $0x18] sm:$0xff]
    %v535 = vld [vmem:[%s16 + $0x20] sm:$0xff]
    %v536 = vld [vmem:[%s16 + $0x28] sm:$0xff]
    %v537 = vld [vmem:[%s16 + $0x30] sm:$0xff]
    %v538 = vld [vmem:[%s16 + $0x38] sm:$0xff]
    %v539 = vld [vmem:[%s17] sm:$0xff]
    %v540 = vld [vmem:[%s17 + $0x8] sm:$0xff]
    %v541 = vld [vmem:[%s17 + $0x10] sm:$0xff]
    %v542 = vld [vmem:[%s17 + $0x18] sm:$0xff]
    %v543 = vld [vmem:[%s1] sm:$0x3]
    %v544 = vld [vmem:[%s14] sm:$0xff]
    %v545 = vld [vmem:[%s14 + $0x8] sm:$0xff]
    %v546 = vld [vmem:[%s14 + $0x10] sm:$0xff]
    %v547 = vld [vmem:[%s14 + $0x18] sm:$0xff]
    %v548 = vld [vmem:[%s15] sm:$0x1]
    %v550 = vlaneseq
    %v551 = vshrl.u32 %v550, 7
    %v552 = vsub.s32 0, %v551
    %v553 = vrot.slane %v548, %v552
    %v556 = vsel %vm130, %v543, 0
    %558 = vmatprep.subr.mxu0 0.0
    %559 = vmatpush1.msra.mxu0 %v544
    %560 = vmatprep.subr.mxu0 0.0
    %561 = vmatpush1.msra.mxu0 %v545
    %562 = vmatprep.subr.mxu0 0.0
    %563 = vmatpush1.msra.mxu0 %v546
    %564 = vmatprep.subr.mxu0 0.0
    %565 = vmatpush1.msra.mxu0 %v547
    %566 = vmatprep.subr.mxu0 0.0
    %567 = vmatpush1.msra.mxu0 0.0
    %568 = vmatprep.subr.mxu0 0.0
    %569 = vmatpush1.msra.mxu0 0.0
    %570 = vmatprep.subr.mxu0 0.0
    %571 = vmatpush1.msra.mxu0 0.0
    %572 = vmatprep.subr.mxu0 0.0
    %573 = vmatpush1.msra.mxu0 0.0
    %574 = vmatprep.subr.mxu0 0.0
    %575 = vmatpush1.msra.mxu0 0.0
    %576 = vmatprep.subr.mxu0 0.0
    %577 = vmatpush1.msra.mxu0 0.0
    %578 = vmatprep.subr.mxu0 0.0
    %579 = vmatpush1.msra.mxu0 0.0
    %580 = vmatprep.subr.mxu0 0.0
    %581 = vmatpush1.msra.mxu0 0.0
    %582 = vmatprep.subr.mxu0 0.0
    %583 = vmatpush1.msra.mxu0 0.0
    %584 = vmatprep.subr.mxu0 0.0
    %585 = vmatpush1.msra.mxu0 0.0
    %586 = vmatprep.subr.mxu0 0.0
    %587 = vmatpush1.msra.mxu0 0.0
    %588 = vmatprep.subr.mxu0 0.0
    %589 = vmatpush1.msra.mxu0 0.0
    %590 = vmatprep.subr.mxu0 0.0
    %591 = vmatpush1.msra.mxu0 0.0
    %592 = vmatprep.subr.mxu0 0.0
    %593 = vmatpush1.msra.mxu0 0.0
    %594 = vmatprep.subr.mxu0 0.0
    %595 = vmatpush1.msra.mxu0 0.0
    %596 = vmatprep.subr.mxu0 0.0
    %597 = vmatpush1.msra.mxu0 0.0
    %598 = vmatprep.subr.mxu0 0.0
    %599 = vmatpush1.msra.mxu0 0.0
    %600 = vmatprep.subr.mxu0 0.0
    %601 = vmatpush1.msra.mxu0 0.0
    %602 = vmatprep.subr.mxu0 0.0
    %603 = vmatpush1.msra.mxu0 0.0
    %604 = vmatprep.subr.mxu0 0.0
    %605 = vmatpush1.msra.mxu0 0.0
    %606 = vmatprep.subr.mxu0 0.0
    %607 = vmatpush1.msra.mxu0 0.0
    %608 = vmatprep.subr.mxu0 0.0
    %609 = vmatpush1.msra.mxu0 0.0
    %610 = vmatprep.subr.mxu0 0.0
    %611 = vmatpush1.msra.mxu0 0.0
    %612 = vmatprep.subr.mxu0 0.0
    %613 = vmatpush1.msra.mxu0 0.0
    %614 = vmatprep.subr.mxu0 0.0
    %615 = vmatpush1.msra.mxu0 0.0
    %616 = vmatprep.subr.mxu0 0.0
    %617 = vmatpush1.msra.mxu0 0.0
    %618 = vmatprep.subr.mxu0 0.0
    %619 = vmatpush1.msra.mxu0 0.0
    %620 = vmatprep.subr.mxu0 0.0
    %621 = vmatpush1.msra.mxu0 0.0
    %622 = vmatprep.mubr.f32.mxu0 0.0
    %623 = vmatmul.mubr.f32.gmra.mrb[0].mxu0 %v556
    %v624 = vpop.f32.mrb[0].mxu0
    %v625 = vadd.f32 %v553, %v624
    %v626 = vpop.f32.mrb[0].mxu0
    %627 = vdwg.mxu0
    %v628 = vxor.u32 %v219, 2147483648
    %v629 = vmul.f32 %v628, 1.442695
    %v630 = vpow.pop %v629
    %v631 = vadd.f32 %v630, 1.0
    %v632 = vrcp.pop %v631
    %v633 = vmul.f32 1.0, %v632
    %v634 = vxor.u32 %v349, 2147483648
    %v635 = vmul.f32 %v634, 1.442695
    %v636 = vpow.pop %v635
    %v637 = vadd.f32 %v636, 1.0
    %v638 = vrcp.pop %v637
    %v639 = vmul.f32 1.0, %v638
    %v641 = vlaneseq
    %v642 = vshrl.u32 %v641, 7
    %v643 = vsub.s32 0, %v642
    %v644 = vrot.slane %v526, %v643
    %v646 = vmul.f32 %v633, %v644
    %v647 = vadd.f32 %v479, %v646
    %v648 = vtanh.pop %v647
    %v649 = vsub.f32 1.0, %v639
    %v650 = vmul.f32 %v649, %v648
    %v652 = vsel %vm130, %v650, 0
    %654 = vmatprep.subr.mxu0 0.0
    %655 = vmatpush1.msra.mxu0 %v527
    %656 = vmatprep.subr.mxu0 0.0
    %657 = vmatpush1.msra.mxu0 %v528
    %658 = vmatprep.subr.mxu0 0.0
    %659 = vmatpush1.msra.mxu0 %v529
    %660 = vmatprep.subr.mxu0 0.0
    %661 = vmatpush1.msra.mxu0 %v530
    %662 = vmatprep.subr.mxu0 0.0
    %663 = vmatpush1.msra.mxu0 0.0
    %664 = vmatprep.subr.mxu0 0.0
    %665 = vmatpush1.msra.mxu0 0.0
    %666 = vmatprep.subr.mxu0 0.0
    %667 = vmatpush1.msra.mxu0 0.0
    %668 = vmatprep.subr.mxu0 0.0
    %669 = vmatpush1.msra.mxu0 0.0
    %670 = vmatprep.subr.mxu0 0.0
    %671 = vmatpush1.msra.mxu0 0.0
    %672 = vmatprep.subr.mxu0 0.0
    %673 = vmatpush1.msra.mxu0 0.0
    %674 = vmatprep.subr.mxu0 0.0
    %675 = vmatpush1.msra.mxu0 0.0
    %676 = vmatprep.subr.mxu0 0.0
    %677 = vmatpush1.msra.mxu0 0.0
    %678 = vmatprep.subr.mxu0 0.0
    %679 = vmatpush1.msra.mxu0 0.0
    %680 = vmatprep.subr.mxu0 0.0
    %681 = vmatpush1.msra.mxu0 0.0
    %682 = vmatprep.subr.mxu0 0.0
    %683 = vmatpush1.msra.mxu0 0.0
    %684 = vmatprep.subr.mxu0 0.0
    %685 = vmatpush1.msra.mxu0 0.0
    %686 = vmatprep.subr.mxu0 0.0
    %687 = vmatpush1.msra.mxu0 0.0
    %688 = vmatprep.subr.mxu0 0.0
    %689 = vmatpush1.msra.mxu0 0.0
    %690 = vmatprep.subr.mxu0 0.0
    %691 = vmatpush1.msra.mxu0 0.0
    %692 = vmatprep.subr.mxu0 0.0
    %693 = vmatpush1.msra.mxu0 0.0
    %694 = vmatprep.subr.mxu0 0.0
    %695 = vmatpush1.msra.mxu0 0.0
    %696 = vmatprep.subr.mxu0 0.0
    %697 = vmatpush1.msra.mxu0 0.0
    %698 = vmatprep.subr.mxu0 0.0
    %699 = vmatpush1.msra.mxu0 0.0
    %700 = vmatprep.subr.mxu0 0.0
    %701 = vmatpush1.msra.mxu0 0.0
    %702 = vmatprep.subr.mxu0 0.0
    %703 = vmatpush1.msra.mxu0 0.0
    %704 = vmatprep.subr.mxu0 0.0
    %705 = vmatpush1.msra.mxu0 0.0
    %706 = vmatprep.subr.mxu0 0.0
    %707 = vmatpush1.msra.mxu0 0.0
    %708 = vmatprep.subr.mxu0 0.0
    %709 = vmatpush1.msra.mxu0 0.0
    %710 = vmatprep.subr.mxu0 0.0
    %711 = vmatpush1.msra.mxu0 0.0
    %712 = vmatprep.subr.mxu0 0.0
    %713 = vmatpush1.msra.mxu0 0.0
    %714 = vmatprep.subr.mxu0 0.0
    %715 = vmatpush1.msra.mxu0 0.0
    %716 = vmatprep.subr.mxu0 0.0
    %717 = vmatpush1.msra.mxu0 0.0
    %718 = vmatprep.mubr.f32.mxu0 0.0
    %719 = vmatmul.mubr.f32.gmra.mrb[0].mxu0 %v652
    %v720 = vpop.f32.mrb[0].mxu0
    %v721 = vadd.f32 %v625, %v720
    %v722 = vpop.f32.mrb[0].mxu0
    %723 = vdwg.mxu0
    %v724 = vtanh.pop %v721
    %v725 = vld [vmem:[%s2] sm:$0x3]
    %727 = vset.pattern.permute.xlu0 0
    %728 = vperm.xlu0 %727, %v725
    %v729 = vpop.permute.xlu0 %728
    %vm731 = vcmask 523264
    %v733 = vsel %vm731, %v724, 0
    %735 = vmatprep.subr.mxu0 0.0
    %736 = vmatpush1.msra.mxu0 %v531
    %737 = vmatprep.subr.mxu0 0.0
    %738 = vmatpush1.msra.mxu0 %v532
    %739 = vmatprep.subr.mxu0 0.0
    %740 = vmatpush1.msra.mxu0 %v533
    %741 = vmatprep.subr.mxu0 0.0
    %742 = vmatpush1.msra.mxu0 %v534
    %743 = vmatprep.subr.mxu0 0.0
    %744 = vmatpush1.msra.mxu0 %v535
    %745 = vmatprep.subr.mxu0 0.0
    %746 = vmatpush1.msra.mxu0 %v536
    %747 = vmatprep.subr.mxu0 0.0
    %748 = vmatpush1.msra.mxu0 %v537
    %749 = vmatprep.subr.mxu0 0.0
    %750 = vmatpush1.msra.mxu0 %v538
    %751 = vmatprep.subr.mxu0 0.0
    %752 = vmatpush1.msra.mxu0 0.0
    %753 = vmatprep.subr.mxu0 0.0
    %754 = vmatpush1.msra.mxu0 0.0
    %755 = vmatprep.subr.mxu0 0.0
    %756 = vmatpush1.msra.mxu0 0.0
    %757 = vmatprep.subr.mxu0 0.0
    %758 = vmatpush1.msra.mxu0 0.0
    %759 = vmatprep.subr.mxu0 0.0
    %760 = vmatpush1.msra.mxu0 0.0
    %761 = vmatprep.subr.mxu0 0.0
    %762 = vmatpush1.msra.mxu0 0.0
    %763 = vmatprep.subr.mxu0 0.0
    %764 = vmatpush1.msra.mxu0 0.0
    %765 = vmatprep.subr.mxu0 0.0
    %766 = vmatpush1.msra.mxu0 0.0
    %767 = vmatprep.subr.mxu0 0.0
    %768 = vmatpush1.msra.mxu0 0.0
    %769 = vmatprep.subr.mxu0 0.0
    %770 = vmatpush1.msra.mxu0 0.0
    %771 = vmatprep.subr.mxu0 0.0
    %772 = vmatpush1.msra.mxu0 0.0
    %773 = vmatprep.subr.mxu0 0.0
    %774 = vmatpush1.msra.mxu0 0.0
    %775 = vmatprep.subr.mxu0 0.0
    %776 = vmatpush1.msra.mxu0 0.0
    %777 = vmatprep.subr.mxu0 0.0
    %778 = vmatpush1.msra.mxu0 0.0
    %779 = vmatprep.subr.mxu0 0.0
    %780 = vmatpush1.msra.mxu0 0.0
    %781 = vmatprep.subr.mxu0 0.0
    %782 = vmatpush1.msra.mxu0 0.0
    %783 = vmatprep.subr.mxu0 0.0
    %784 = vmatpush1.msra.mxu0 0.0
    %785 = vmatprep.subr.mxu0 0.0
    %786 = vmatpush1.msra.mxu0 0.0
    %787 = vmatprep.subr.mxu0 0.0
    %788 = vmatpush1.msra.mxu0 0.0
    %789 = vmatprep.subr.mxu0 0.0
    %790 = vmatpush1.msra.mxu0 0.0
    %791 = vmatprep.subr.mxu0 0.0
    %792 = vmatpush1.msra.mxu0 0.0
    %793 = vmatprep.subr.mxu0 0.0
    %794 = vmatpush1.msra.mxu0 0.0
    %795 = vmatprep.subr.mxu0 0.0
    %796 = vmatpush1.msra.mxu0 0.0
    %797 = vmatprep.subr.mxu0 0.0
    %798 = vmatpush1.msra.mxu0 0.0
    %799 = vmatprep.mubr.f32.mxu0 0.0
    %800 = vmatmul.mubr.f32.gmra.mrb[0].mxu0 %v733
    %v801 = vpop.f32.mrb[0].mxu0
    %v802 = vadd.f32 %v729, %v801
    %v803 = vpop.f32.mrb[0].mxu0
    %804 = vdwg.mxu0
    %805 = vmatprep.subr.mxu0 0.0
    %806 = vmatpush1.msra.mxu0 %v539
    %807 = vmatprep.subr.mxu0 0.0
    %808 = vmatpush1.msra.mxu0 %v540
    %809 = vmatprep.subr.mxu0 0.0
    %810 = vmatpush1.msra.mxu0 %v541
    %811 = vmatprep.subr.mxu0 0.0
    %812 = vmatpush1.msra.mxu0 %v542
    %813 = vmatprep.subr.mxu0 0.0
    %814 = vmatpush1.msra.mxu0 0.0
    %815 = vmatprep.subr.mxu0 0.0
    %816 = vmatpush1.msra.mxu0 0.0
    %817 = vmatprep.subr.mxu0 0.0
    %818 = vmatpush1.msra.mxu0 0.0
    %819 = vmatprep.subr.mxu0 0.0
    %820 = vmatpush1.msra.mxu0 0.0
    %821 = vmatprep.subr.mxu0 0.0
    %822 = vmatpush1.msra.mxu0 0.0
    %823 = vmatprep.subr.mxu0 0.0
    %824 = vmatpush1.msra.mxu0 0.0
    %825 = vmatprep.subr.mxu0 0.0
    %826 = vmatpush1.msra.mxu0 0.0
    %827 = vmatprep.subr.mxu0 0.0
    %828 = vmatpush1.msra.mxu0 0.0
    %829 = vmatprep.subr.mxu0 0.0
    %830 = vmatpush1.msra.mxu0 0.0
    %831 = vmatprep.subr.mxu0 0.0
    %832 = vmatpush1.msra.mxu0 0.0
    %833 = vmatprep.subr.mxu0 0.0
    %834 = vmatpush1.msra.mxu0 0.0
    %835 = vmatprep.subr.mxu0 0.0
    %836 = vmatpush1.msra.mxu0 0.0
    %837 = vmatprep.subr.mxu0 0.0
    %838 = vmatpush1.msra.mxu0 0.0
    %839 = vmatprep.subr.mxu0 0.0
    %840 = vmatpush1.msra.mxu0 0.0
    %841 = vmatprep.subr.mxu0 0.0
    %842 = vmatpush1.msra.mxu0 0.0
    %843 = vmatprep.subr.mxu0 0.0
    %844 = vmatpush1.msra.mxu0 0.0
    %845 = vmatprep.subr.mxu0 0.0
    %846 = vmatpush1.msra.mxu0 0.0
    %847 = vmatprep.subr.mxu0 0.0
    %848 = vmatpush1.msra.mxu0 0.0
    %849 = vmatprep.subr.mxu0 0.0
    %850 = vmatpush1.msra.mxu0 0.0
    %851 = vmatprep.subr.mxu0 0.0
    %852 = vmatpush1.msra.mxu0 0.0
    %853 = vmatprep.subr.mxu0 0.0
    %854 = vmatpush1.msra.mxu0 0.0
    %855 = vmatprep.subr.mxu0 0.0
    %856 = vmatpush1.msra.mxu0 0.0
    %857 = vmatprep.subr.mxu0 0.0
    %858 = vmatpush1.msra.mxu0 0.0
    %859 = vmatprep.subr.mxu0 0.0
    %860 = vmatpush1.msra.mxu0 0.0
    %861 = vmatprep.subr.mxu0 0.0
    %862 = vmatpush1.msra.mxu0 0.0
    %863 = vmatprep.subr.mxu0 0.0
    %864 = vmatpush1.msra.mxu0 0.0
    %865 = vmatprep.subr.mxu0 0.0
    %866 = vmatpush1.msra.mxu0 0.0
    %867 = vmatprep.subr.mxu0 0.0
    %868 = vmatpush1.msra.mxu0 0.0
    %869 = vmatprep.mubr.f32.mxu0 0.0
    %870 = vmatmul.mubr.f32.gmra.mrb[0].mxu0 %v652
    %v871 = vpop.f32.mrb[0].mxu0
    %v872 = vadd.f32 0.0, %v871
    %v873 = vpop.f32.mrb[0].mxu0
    %874 = vdwg.mxu0
    %875 = vmatprep.subr.mxu0 0.0
    %876 = vmatpush1.msra.mxu0 %v514
    %877 = vmatprep.subr.mxu0 0.0
    %878 = vmatpush1.msra.mxu0 %v515
    %879 = vmatprep.subr.mxu0 0.0
    %880 = vmatpush1.msra.mxu0 %v516
    %881 = vmatprep.subr.mxu0 0.0
    %882 = vmatpush1.msra.mxu0 %v517
    %883 = vmatprep.subr.mxu0 0.0
    %884 = vmatpush1.msra.mxu0 0.0
    %885 = vmatprep.subr.mxu0 0.0
    %886 = vmatpush1.msra.mxu0 0.0
    %887 = vmatprep.subr.mxu0 0.0
    %888 = vmatpush1.msra.mxu0 0.0
    %889 = vmatprep.subr.mxu0 0.0
    %890 = vmatpush1.msra.mxu0 0.0
    %891 = vmatprep.subr.mxu0 0.0
    %892 = vmatpush1.msra.mxu0 0.0
    %893 = vmatprep.subr.mxu0 0.0
    %894 = vmatpush1.msra.mxu0 0.0
    %895 = vmatprep.subr.mxu0 0.0
    %896 = vmatpush1.msra.mxu0 0.0
    %897 = vmatprep.subr.mxu0 0.0
    %898 = vmatpush1.msra.mxu0 0.0
    %899 = vmatprep.subr.mxu0 0.0
    %900 = vmatpush1.msra.mxu0 0.0
    %901 = vmatprep.subr.mxu0 0.0
    %902 = vmatpush1.msra.mxu0 0.0
    %903 = vmatprep.subr.mxu0 0.0
    %904 = vmatpush1.msra.mxu0 0.0
    %905 = vmatprep.subr.mxu0 0.0
    %906 = vmatpush1.msra.mxu0 0.0
    %907 = vmatprep.subr.mxu0 0.0
    %908 = vmatpush1.msra.mxu0 0.0
    %909 = vmatprep.subr.mxu0 0.0
    %910 = vmatpush1.msra.mxu0 0.0
    %911 = vmatprep.subr.mxu0 0.0
    %912 = vmatpush1.msra.mxu0 0.0
    %913 = vmatprep.subr.mxu0 0.0
    %914 = vmatpush1.msra.mxu0 0.0
    %915 = vmatprep.subr.mxu0 0.0
    %916 = vmatpush1.msra.mxu0 0.0
    %917 = vmatprep.subr.mxu0 0.0
    %918 = vmatpush1.msra.mxu0 0.0
    %919 = vmatprep.subr.mxu0 0.0
    %920 = vmatpush1.msra.mxu0 0.0
    %921 = vmatprep.subr.mxu0 0.0
    %922 = vmatpush1.msra.mxu0 0.0
    %923 = vmatprep.subr.mxu0 0.0
    %924 = vmatpush1.msra.mxu0 0.0
    %925 = vmatprep.subr.mxu0 0.0
    %926 = vmatpush1.msra.mxu0 0.0
    %927 = vmatprep.subr.mxu0 0.0
    %928 = vmatpush1.msra.mxu0 0.0
    %929 = vmatprep.subr.mxu0 0.0
    %930 = vmatpush1.msra.mxu0 0.0
    %931 = vmatprep.subr.mxu0 0.0
    %932 = vmatpush1.msra.mxu0 0.0
    %933 = vmatprep.subr.mxu0 0.0
    %934 = vmatpush1.msra.mxu0 0.0
    %935 = vmatprep.subr.mxu0 0.0
    %936 = vmatpush1.msra.mxu0 0.0
    %937 = vmatprep.subr.mxu0 0.0
    %938 = vmatpush1.msra.mxu0 0.0
    %939 = vmatprep.mubr.f32.mxu0 0.0
    %940 = vmatmul.mubr.f32.gmra.mrb[0].mxu0 %v652
    %v941 = vpop.f32.mrb[0].mxu0
    %v942 = vadd.f32 0.0, %v941
    %v943 = vpop.f32.mrb[0].mxu0
    %944 = vdwg.mxu0
    %v945 = vadd.f32 %v227, %v942
    %v946 = vxor.u32 %v945, 2147483648
    %v947 = vmul.f32 %v946, 1.442695
    %v948 = vpow.pop %v947
    %v949 = vadd.f32 %v948, 1.0
    %v950 = vrcp.pop %v949
    %v951 = vmul.f32 1.0, %v950
    %952 = vmatprep.subr.mxu0 0.0
    %953 = vmatpush1.msra.mxu0 %v518
    %954 = vmatprep.subr.mxu0 0.0
    %955 = vmatpush1.msra.mxu0 %v519
    %956 = vmatprep.subr.mxu0 0.0
    %957 = vmatpush1.msra.mxu0 %v520
    %958 = vmatprep.subr.mxu0 0.0
    %959 = vmatpush1.msra.mxu0 %v521
    %960 = vmatprep.subr.mxu0 0.0
    %961 = vmatpush1.msra.mxu0 0.0
    %962 = vmatprep.subr.mxu0 0.0
    %963 = vmatpush1.msra.mxu0 0.0
    %964 = vmatprep.subr.mxu0 0.0
    %965 = vmatpush1.msra.mxu0 0.0
    %966 = vmatprep.subr.mxu0 0.0
    %967 = vmatpush1.msra.mxu0 0.0
    %968 = vmatprep.subr.mxu0 0.0
    %969 = vmatpush1.msra.mxu0 0.0
    %970 = vmatprep.subr.mxu0 0.0
    %971 = vmatpush1.msra.mxu0 0.0
    %972 = vmatprep.subr.mxu0 0.0
    %973 = vmatpush1.msra.mxu0 0.0
    %974 = vmatprep.subr.mxu0 0.0
    %975 = vmatpush1.msra.mxu0 0.0
    %976 = vmatprep.subr.mxu0 0.0
    %977 = vmatpush1.msra.mxu0 0.0
    %978 = vmatprep.subr.mxu0 0.0
    %979 = vmatpush1.msra.mxu0 0.0
    %980 = vmatprep.subr.mxu0 0.0
    %981 = vmatpush1.msra.mxu0 0.0
    %982 = vmatprep.subr.mxu0 0.0
    %983 = vmatpush1.msra.mxu0 0.0
    %984 = vmatprep.subr.mxu0 0.0
    %985 = vmatpush1.msra.mxu0 0.0
    %986 = vmatprep.subr.mxu0 0.0
    %987 = vmatpush1.msra.mxu0 0.0
    %988 = vmatprep.subr.mxu0 0.0
    %989 = vmatpush1.msra.mxu0 0.0
    %990 = vmatprep.subr.mxu0 0.0
    %991 = vmatpush1.msra.mxu0 0.0
    %992 = vmatprep.subr.mxu0 0.0
    %993 = vmatpush1.msra.mxu0 0.0
    %994 = vmatprep.subr.mxu0 0.0
    %995 = vmatpush1.msra.mxu0 0.0
    %996 = vmatprep.subr.mxu0 0.0
    %997 = vmatpush1.msra.mxu0 0.0
    %998 = vmatprep.subr.mxu0 0.0
    %999 = vmatpush1.msra.mxu0 0.0
    %1000 = vmatprep.subr.mxu0 0.0
    %1001 = vmatpush1.msra.mxu0 0.0
    %1002 = vmatprep.subr.mxu0 0.0
    %1003 = vmatpush1.msra.mxu0 0.0
    %1004 = vmatprep.subr.mxu0 0.0
    %1005 = vmatpush1.msra.mxu0 0.0
    %1006 = vmatprep.subr.mxu0 0.0
    %1007 = vmatpush1.msra.mxu0 0.0
    %1008 = vmatprep.subr.mxu0 0.0
    %1009 = vmatpush1.msra.mxu0 0.0
    %1010 = vmatprep.subr.mxu0 0.0
    %1011 = vmatpush1.msra.mxu0 0.0
    %1012 = vmatprep.subr.mxu0 0.0
    %1013 = vmatpush1.msra.mxu0 0.0
    %1014 = vmatprep.subr.mxu0 0.0
    %1015 = vmatpush1.msra.mxu0 0.0
    %1016 = vmatprep.mubr.f32.mxu0 0.0
    %1017 = vmatmul.mubr.f32.gmra.mrb[0].mxu0 %v652
    %v1018 = vpop.f32.mrb[0].mxu0
    %v1019 = vadd.f32 0.0, %v1018
    %v1020 = vpop.f32.mrb[0].mxu0
    %1021 = vdwg.mxu0
    %v1022 = vadd.f32 %v357, %v1019
    %v1023 = vxor.u32 %v1022, 2147483648
    %v1024 = vmul.f32 %v1023, 1.442695
    %v1025 = vpow.pop %v1024
    %v1026 = vadd.f32 %v1025, 1.0
    %v1027 = vrcp.pop %v1026
    %v1028 = vmul.f32 1.0, %v1027
    %1029 = vmatprep.subr.mxu0 0.0
    %1030 = vmatpush1.msra.mxu0 %v522
    %1031 = vmatprep.subr.mxu0 0.0
    %1032 = vmatpush1.msra.mxu0 %v523
    %1033 = vmatprep.subr.mxu0 0.0
    %1034 = vmatpush1.msra.mxu0 %v524
    %1035 = vmatprep.subr.mxu0 0.0
    %1036 = vmatpush1.msra.mxu0 %v525
    %1037 = vmatprep.subr.mxu0 0.0
    %1038 = vmatpush1.msra.mxu0 0.0
    %1039 = vmatprep.subr.mxu0 0.0
    %1040 = vmatpush1.msra.mxu0 0.0
    %1041 = vmatprep.subr.mxu0 0.0
    %1042 = vmatpush1.msra.mxu0 0.0
    %1043 = vmatprep.subr.mxu0 0.0
    %1044 = vmatpush1.msra.mxu0 0.0
    %1045 = vmatprep.subr.mxu0 0.0
    %1046 = vmatpush1.msra.mxu0 0.0
    %1047 = vmatprep.subr.mxu0 0.0
    %1048 = vmatpush1.msra.mxu0 0.0
    %1049 = vmatprep.subr.mxu0 0.0
    %1050 = vmatpush1.msra.mxu0 0.0
    %1051 = vmatprep.subr.mxu0 0.0
    %1052 = vmatpush1.msra.mxu0 0.0
    %1053 = vmatprep.subr.mxu0 0.0
    %1054 = vmatpush1.msra.mxu0 0.0
    %1055 = vmatprep.subr.mxu0 0.0
    %1056 = vmatpush1.msra.mxu0 0.0
    %1057 = vmatprep.subr.mxu0 0.0
    %1058 = vmatpush1.msra.mxu0 0.0
    %1059 = vmatprep.subr.mxu0 0.0
    %1060 = vmatpush1.msra.mxu0 0.0
    %1061 = vmatprep.subr.mxu0 0.0
    %1062 = vmatpush1.msra.mxu0 0.0
    %1063 = vmatprep.subr.mxu0 0.0
    %1064 = vmatpush1.msra.mxu0 0.0
    %1065 = vmatprep.subr.mxu0 0.0
    %1066 = vmatpush1.msra.mxu0 0.0
    %1067 = vmatprep.subr.mxu0 0.0
    %1068 = vmatpush1.msra.mxu0 0.0
    %1069 = vmatprep.subr.mxu0 0.0
    %1070 = vmatpush1.msra.mxu0 0.0
    %1071 = vmatprep.subr.mxu0 0.0
    %1072 = vmatpush1.msra.mxu0 0.0
    %1073 = vmatprep.subr.mxu0 0.0
    %1074 = vmatpush1.msra.mxu0 0.0
    %1075 = vmatprep.subr.mxu0 0.0
    %1076 = vmatpush1.msra.mxu0 0.0
    %1077 = vmatprep.subr.mxu0 0.0
    %1078 = vmatpush1.msra.mxu0 0.0
    %1079 = vmatprep.subr.mxu0 0.0
    %1080 = vmatpush1.msra.mxu0 0.0
    %1081 = vmatprep.subr.mxu0 0.0
    %1082 = vmatpush1.msra.mxu0 0.0
    %1083 = vmatprep.subr.mxu0 0.0
    %1084 = vmatpush1.msra.mxu0 0.0
    %1085 = vmatprep.subr.mxu0 0.0
    %1086 = vmatpush1.msra.mxu0 0.0
    %1087 = vmatprep.subr.mxu0 0.0
    %1088 = vmatpush1.msra.mxu0 0.0
    %1089 = vmatprep.subr.mxu0 0.0
    %1090 = vmatpush1.msra.mxu0 0.0
    %1091 = vmatprep.subr.mxu0 0.0
    %1092 = vmatpush1.msra.mxu0 0.0
    %1093 = vmatprep.mubr.f32.mxu0 0.0
    %1094 = vmatmul.mubr.f32.gmra.mrb[0].mxu0 %v652
    %v1095 = vpop.f32.mrb[0].mxu0
    %v1096 = vadd.f32 %v644, %v1095
    %v1097 = vpop.f32.mrb[0].mxu0
    %1098 = vdwg.mxu0
    %v1099 = vmul.f32 %v951, %v1096
    %v1100 = vadd.f32 %v487, %v1099
    %v1101 = vtanh.pop %v1100
    %v1102 = vsub.f32 1.0, %v1028
    %v1103 = vmul.f32 %v1102, %v1101
    %v1104 = vmul.f32 %v1028, %v650
    %v1105 = vadd.f32 %v1103, %v1104
    %v1107 = vsel %vm130, %v1105, 0
    %1109 = vmatprep.subr.mxu0 0.0
    %1110 = vmatpush1.msra.mxu0 %v527
    %1111 = vmatprep.subr.mxu0 0.0
    %1112 = vmatpush1.msra.mxu0 %v528
    %1113 = vmatprep.subr.mxu0 0.0
    %1114 = vmatpush1.msra.mxu0 %v529
    %1115 = vmatprep.subr.mxu0 0.0
    %1116 = vmatpush1.msra.mxu0 %v530
    %1117 = vmatprep.subr.mxu0 0.0
    %1118 = vmatpush1.msra.mxu0 0.0
    %1119 = vmatprep.subr.mxu0 0.0
    %1120 = vmatpush1.msra.mxu0 0.0
    %1121 = vmatprep.subr.mxu0 0.0
    %1122 = vmatpush1.msra.mxu0 0.0
    %1123 = vmatprep.subr.mxu0 0.0
    %1124 = vmatpush1.msra.mxu0 0.0
    %1125 = vmatprep.subr.mxu0 0.0
    %1126 = vmatpush1.msra.mxu0 0.0
    %1127 = vmatprep.subr.mxu0 0.0
    %1128 = vmatpush1.msra.mxu0 0.0
    %1129 = vmatprep.subr.mxu0 0.0
    %1130 = vmatpush1.msra.mxu0 0.0
    %1131 = vmatprep.subr.mxu0 0.0
    %1132 = vmatpush1.msra.mxu0 0.0
    %1133 = vmatprep.subr.mxu0 0.0
    %1134 = vmatpush1.msra.mxu0 0.0
    %1135 = vmatprep.subr.mxu0 0.0
    %1136 = vmatpush1.msra.mxu0 0.0
    %1137 = vmatprep.subr.mxu0 0.0
    %1138 = vmatpush1.msra.mxu0 0.0
    %1139 = vmatprep.subr.mxu0 0.0
    %1140 = vmatpush1.msra.mxu0 0.0
    %1141 = vmatprep.subr.mxu0 0.0
    %1142 = vmatpush1.msra.mxu0 0.0
    %1143 = vmatprep.subr.mxu0 0.0
    %1144 = vmatpush1.msra.mxu0 0.0
    %1145 = vmatprep.subr.mxu0 0.0
    %1146 = vmatpush1.msra.mxu0 0.0
    %1147 = vmatprep.subr.mxu0 0.0
    %1148 = vmatpush1.msra.mxu0 0.0
    %1149 = vmatprep.subr.mxu0 0.0
    %1150 = vmatpush1.msra.mxu0 0.0
    %1151 = vmatprep.subr.mxu0 0.0
    %1152 = vmatpush1.msra.mxu0 0.0
    %1153 = vmatprep.subr.mxu0 0.0
    %1154 = vmatpush1.msra.mxu0 0.0
    %1155 = vmatprep.subr.mxu0 0.0
    %1156 = vmatpush1.msra.mxu0 0.0
    %1157 = vmatprep.subr.mxu0 0.0
    %1158 = vmatpush1.msra.mxu0 0.0
    %1159 = vmatprep.subr.mxu0 0.0
    %1160 = vmatpush1.msra.mxu0 0.0
    %1161 = vmatprep.subr.mxu0 0.0
    %1162 = vmatpush1.msra.mxu0 0.0
    %1163 = vmatprep.subr.mxu0 0.0
    %1164 = vmatpush1.msra.mxu0 0.0
    %1165 = vmatprep.subr.mxu0 0.0
    %1166 = vmatpush1.msra.mxu0 0.0
    %1167 = vmatprep.subr.mxu0 0.0
    %1168 = vmatpush1.msra.mxu0 0.0
    %1169 = vmatprep.subr.mxu0 0.0
    %1170 = vmatpush1.msra.mxu0 0.0
    %1171 = vmatprep.subr.mxu0 0.0
    %1172 = vmatpush1.msra.mxu0 0.0
    %1173 = vmatprep.mubr.f32.mxu0 0.0
    %1174 = vmatmul.mubr.f32.gmra.mrb[0].mxu0 %v1107
    %v1175 = vpop.f32.mrb[0].mxu0
    %v1176 = vadd.f32 %v625, %v1175
    %v1177 = vpop.f32.mrb[0].mxu0
    %1178 = vdwg.mxu0
    %v1179 = vtanh.pop %v1176
    %s1180 = scalar_lea.vmem %s2, 2
    %v1181 = vld [vmem:[%s1180] sm:$0x3]
    %1183 = vset.pattern.permute.xlu0 0
    %1184 = vperm.xlu0 %1183, %v1181
    %v1185 = vpop.permute.xlu0 %1184
    %v1188 = vsel %vm731, %v1179, 0
    %1190 = vmatprep.subr.mxu0 0.0
    %1191 = vmatpush1.msra.mxu0 %v531
    %1192 = vmatprep.subr.mxu0 0.0
    %1193 = vmatpush1.msra.mxu0 %v532
    %1194 = vmatprep.subr.mxu0 0.0
    %1195 = vmatpush1.msra.mxu0 %v533
    %1196 = vmatprep.subr.mxu0 0.0
    %1197 = vmatpush1.msra.mxu0 %v534
    %1198 = vmatprep.subr.mxu0 0.0
    %1199 = vmatpush1.msra.mxu0 %v535
    %1200 = vmatprep.subr.mxu0 0.0
    %1201 = vmatpush1.msra.mxu0 %v536
    %1202 = vmatprep.subr.mxu0 0.0
    %1203 = vmatpush1.msra.mxu0 %v537
    %1204 = vmatprep.subr.mxu0 0.0
    %1205 = vmatpush1.msra.mxu0 %v538
    %1206 = vmatprep.subr.mxu0 0.0
    %1207 = vmatpush1.msra.mxu0 0.0
    %1208 = vmatprep.subr.mxu0 0.0
    %1209 = vmatpush1.msra.mxu0 0.0
    %1210 = vmatprep.subr.mxu0 0.0
    %1211 = vmatpush1.msra.mxu0 0.0
    %1212 = vmatprep.subr.mxu0 0.0
    %1213 = vmatpush1.msra.mxu0 0.0
    %1214 = vmatprep.subr.mxu0 0.0
    %1215 = vmatpush1.msra.mxu0 0.0
    %1216 = vmatprep.subr.mxu0 0.0
    %1217 = vmatpush1.msra.mxu0 0.0
    %1218 = vmatprep.subr.mxu0 0.0
    %1219 = vmatpush1.msra.mxu0 0.0
    %1220 = vmatprep.subr.mxu0 0.0
    %1221 = vmatpush1.msra.mxu0 0.0
    %1222 = vmatprep.subr.mxu0 0.0
    %1223 = vmatpush1.msra.mxu0 0.0
    %1224 = vmatprep.subr.mxu0 0.0
    %1225 = vmatpush1.msra.mxu0 0.0
    %1226 = vmatprep.subr.mxu0 0.0
    %1227 = vmatpush1.msra.mxu0 0.0
    %1228 = vmatprep.subr.mxu0 0.0
    %1229 = vmatpush1.msra.mxu0 0.0
    %1230 = vmatprep.subr.mxu0 0.0
    %1231 = vmatpush1.msra.mxu0 0.0
    %1232 = vmatprep.subr.mxu0 0.0
    %1233 = vmatpush1.msra.mxu0 0.0
    %1234 = vmatprep.subr.mxu0 0.0
    %1235 = vmatpush1.msra.mxu0 0.0
    %1236 = vmatprep.subr.mxu0 0.0
    %1237 = vmatpush1.msra.mxu0 0.0
    %1238 = vmatprep.subr.mxu0 0.0
    %1239 = vmatpush1.msra.mxu0 0.0
    %1240 = vmatprep.subr.mxu0 0.0
    %1241 = vmatpush1.msra.mxu0 0.0
    %1242 = vmatprep.subr.mxu0 0.0
    %1243 = vmatpush1.msra.mxu0 0.0
    %1244 = vmatprep.subr.mxu0 0.0
    %1245 = vmatpush1.msra.mxu0 0.0
    %1246 = vmatprep.subr.mxu0 0.0
    %1247 = vmatpush1.msra.mxu0 0.0
    %1248 = vmatprep.subr.mxu0 0.0
    %1249 = vmatpush1.msra.mxu0 0.0
    %1250 = vmatprep.subr.mxu0 0.0
    %1251 = vmatpush1.msra.mxu0 0.0
    %1252 = vmatprep.subr.mxu0 0.0
    %1253 = vmatpush1.msra.mxu0 0.0
    %1254 = vmatprep.mubr.f32.mxu0 0.0
    %1255 = vmatmul.mubr.f32.gmra.mrb[0].mxu0 %v1188
    %v1256 = vpop.f32.mrb[0].mxu0
    %v1257 = vadd.f32 %v1185, %v1256
    %v1258 = vpop.f32.mrb[0].mxu0
    %1259 = vdwg.mxu0
    %1260 = vmatprep.subr.mxu0 0.0
    %1261 = vmatpush1.msra.mxu0 %v539
    %1262 = vmatprep.subr.mxu0 0.0
    %1263 = vmatpush1.msra.mxu0 %v540
    %1264 = vmatprep.subr.mxu0 0.0
    %1265 = vmatpush1.msra.mxu0 %v541
    %1266 = vmatprep.subr.mxu0 0.0
    %1267 = vmatpush1.msra.mxu0 %v542
    %1268 = vmatprep.subr.mxu0 0.0
    %1269 = vmatpush1.msra.mxu0 0.0
    %1270 = vmatprep.subr.mxu0 0.0
    %1271 = vmatpush1.msra.mxu0 0.0
    %1272 = vmatprep.subr.mxu0 0.0
    %1273 = vmatpush1.msra.mxu0 0.0
    %1274 = vmatprep.subr.mxu0 0.0
    %1275 = vmatpush1.msra.mxu0 0.0
    %1276 = vmatprep.subr.mxu0 0.0
    %1277 = vmatpush1.msra.mxu0 0.0
    %1278 = vmatprep.subr.mxu0 0.0
    %1279 = vmatpush1.msra.mxu0 0.0
    %1280 = vmatprep.subr.mxu0 0.0
    %1281 = vmatpush1.msra.mxu0 0.0
    %1282 = vmatprep.subr.mxu0 0.0
    %1283 = vmatpush1.msra.mxu0 0.0
    %1284 = vmatprep.subr.mxu0 0.0
    %1285 = vmatpush1.msra.mxu0 0.0
    %1286 = vmatprep.subr.mxu0 0.0
    %1287 = vmatpush1.msra.mxu0 0.0
    %1288 = vmatprep.subr.mxu0 0.0
    %1289 = vmatpush1.msra.mxu0 0.0
    %1290 = vmatprep.subr.mxu0 0.0
    %1291 = vmatpush1.msra.mxu0 0.0
    %1292 = vmatprep.subr.mxu0 0.0
    %1293 = vmatpush1.msra.mxu0 0.0
    %1294 = vmatprep.subr.mxu0 0.0
    %1295 = vmatpush1.msra.mxu0 0.0
    %1296 = vmatprep.subr.mxu0 0.0
    %1297 = vmatpush1.msra.mxu0 0.0
    %1298 = vmatprep.subr.mxu0 0.0
    %1299 = vmatpush1.msra.mxu0 0.0
    %1300 = vmatprep.subr.mxu0 0.0
    %1301 = vmatpush1.msra.mxu0 0.0
    %1302 = vmatprep.subr.mxu0 0.0
    %1303 = vmatpush1.msra.mxu0 0.0
    %1304 = vmatprep.subr.mxu0 0.0
    %1305 = vmatpush1.msra.mxu0 0.0
    %1306 = vmatprep.subr.mxu0 0.0
    %1307 = vmatpush1.msra.mxu0 0.0
    %1308 = vmatprep.subr.mxu0 0.0
    %1309 = vmatpush1.msra.mxu0 0.0
    %1310 = vmatprep.subr.mxu0 0.0
    %1311 = vmatpush1.msra.mxu0 0.0
    %1312 = vmatprep.subr.mxu0 0.0
    %1313 = vmatpush1.msra.mxu0 0.0
    %1314 = vmatprep.subr.mxu0 0.0
    %1315 = vmatpush1.msra.mxu0 0.0
    %1316 = vmatprep.subr.mxu0 0.0
    %1317 = vmatpush1.msra.mxu0 0.0
    %1318 = vmatprep.subr.mxu0 0.0
    %1319 = vmatpush1.msra.mxu0 0.0
    %1320 = vmatprep.subr.mxu0 0.0
    %1321 = vmatpush1.msra.mxu0 0.0
    %1322 = vmatprep.subr.mxu0 0.0
    %1323 = vmatpush1.msra.mxu0 0.0
    %1324 = vmatprep.mubr.f32.mxu0 0.0
    %1325 = vmatmul.mubr.f32.gmra.mrb[0].mxu0 %v1107
    %v1326 = vpop.f32.mrb[0].mxu0
    %v1327 = vadd.f32 0.0, %v1326
    %v1328 = vpop.f32.mrb[0].mxu0
    %1329 = vdwg.mxu0
    %1330 = vmatprep.subr.mxu0 0.0
    %1331 = vmatpush1.msra.mxu0 %v514
    %1332 = vmatprep.subr.mxu0 0.0
    %1333 = vmatpush1.msra.mxu0 %v515
    %1334 = vmatprep.subr.mxu0 0.0
    %1335 = vmatpush1.msra.mxu0 %v516
    %1336 = vmatprep.subr.mxu0 0.0
    %1337 = vmatpush1.msra.mxu0 %v517
    %1338 = vmatprep.subr.mxu0 0.0
    %1339 = vmatpush1.msra.mxu0 0.0
    %1340 = vmatprep.subr.mxu0 0.0
    %1341 = vmatpush1.msra.mxu0 0.0
    %1342 = vmatprep.subr.mxu0 0.0
    %1343 = vmatpush1.msra.mxu0 0.0
    %1344 = vmatprep.subr.mxu0 0.0
    %1345 = vmatpush1.msra.mxu0 0.0
    %1346 = vmatprep.subr.mxu0 0.0
    %1347 = vmatpush1.msra.mxu0 0.0
    %1348 = vmatprep.subr.mxu0 0.0
    %1349 = vmatpush1.msra.mxu0 0.0
    %1350 = vmatprep.subr.mxu0 0.0
    %1351 = vmatpush1.msra.mxu0 0.0
    %1352 = vmatprep.subr.mxu0 0.0
    %1353 = vmatpush1.msra.mxu0 0.0
    %1354 = vmatprep.subr.mxu0 0.0
    %1355 = vmatpush1.msra.mxu0 0.0
    %1356 = vmatprep.subr.mxu0 0.0
    %1357 = vmatpush1.msra.mxu0 0.0
    %1358 = vmatprep.subr.mxu0 0.0
    %1359 = vmatpush1.msra.mxu0 0.0
    %1360 = vmatprep.subr.mxu0 0.0
    %1361 = vmatpush1.msra.mxu0 0.0
    %1362 = vmatprep.subr.mxu0 0.0
    %1363 = vmatpush1.msra.mxu0 0.0
    %1364 = vmatprep.subr.mxu0 0.0
    %1365 = vmatpush1.msra.mxu0 0.0
    %1366 = vmatprep.subr.mxu0 0.0
    %1367 = vmatpush1.msra.mxu0 0.0
    %1368 = vmatprep.subr.mxu0 0.0
    %1369 = vmatpush1.msra.mxu0 0.0
    %1370 = vmatprep.subr.mxu0 0.0
    %1371 = vmatpush1.msra.mxu0 0.0
    %1372 = vmatprep.subr.mxu0 0.0
    %1373 = vmatpush1.msra.mxu0 0.0
    %1374 = vmatprep.subr.mxu0 0.0
    %1375 = vmatpush1.msra.mxu0 0.0
    %1376 = vmatprep.subr.mxu0 0.0
    %1377 = vmatpush1.msra.mxu0 0.0
    %1378 = vmatprep.subr.mxu0 0.0
    %1379 = vmatpush1.msra.mxu0 0.0
    %1380 = vmatprep.subr.mxu0 0.0
    %1381 = vmatpush1.msra.mxu0 0.0
    %1382 = vmatprep.subr.mxu0 0.0
    %1383 = vmatpush1.msra.mxu0 0.0
    %1384 = vmatprep.subr.mxu0 0.0
    %1385 = vmatpush1.msra.mxu0 0.0
    %1386 = vmatprep.subr.mxu0 0.0
    %1387 = vmatpush1.msra.mxu0 0.0
    %1388 = vmatprep.subr.mxu0 0.0
    %1389 = vmatpush1.msra.mxu0 0.0
    %1390 = vmatprep.subr.mxu0 0.0
    %1391 = vmatpush1.msra.mxu0 0.0
    %1392 = vmatprep.subr.mxu0 0.0
    %1393 = vmatpush1.msra.mxu0 0.0
    %1394 = vmatprep.mubr.f32.mxu0 0.0
    %1395 = vmatmul.mubr.f32.gmra.mrb[0].mxu0 %v1107
    %v1396 = vpop.f32.mrb[0].mxu0
    %v1397 = vadd.f32 0.0, %v1396
    %v1398 = vpop.f32.mrb[0].mxu0
    %1399 = vdwg.mxu0
    %v1400 = vadd.f32 %v226, %v1397
    %v1401 = vxor.u32 %v1400, 2147483648
    %v1402 = vmul.f32 %v1401, 1.442695
    %v1403 = vpow.pop %v1402
    %v1404 = vadd.f32 %v1403, 1.0
    %v1405 = vrcp.pop %v1404
    %v1406 = vmul.f32 1.0, %v1405
    %1407 = vmatprep.subr.mxu0 0.0
    %1408 = vmatpush1.msra.mxu0 %v518
    %1409 = vmatprep.subr.mxu0 0.0
    %1410 = vmatpush1.msra.mxu0 %v519
    %1411 = vmatprep.subr.mxu0 0.0
    %1412 = vmatpush1.msra.mxu0 %v520
    %1413 = vmatprep.subr.mxu0 0.0
    %1414 = vmatpush1.msra.mxu0 %v521
    %1415 = vmatprep.subr.mxu0 0.0
    %1416 = vmatpush1.msra.mxu0 0.0
    %1417 = vmatprep.subr.mxu0 0.0
    %1418 = vmatpush1.msra.mxu0 0.0
    %1419 = vmatprep.subr.mxu0 0.0
    %1420 = vmatpush1.msra.mxu0 0.0
    %1421 = vmatprep.subr.mxu0 0.0
    %1422 = vmatpush1.msra.mxu0 0.0
    %1423 = vmatprep.subr.mxu0 0.0
    %1424 = vmatpush1.msra.mxu0 0.0
    %1425 = vmatprep.subr.mxu0 0.0
    %1426 = vmatpush1.msra.mxu0 0.0
    %1427 = vmatprep.subr.mxu0 0.0
    %1428 = vmatpush1.msra.mxu0 0.0
    %1429 = vmatprep.subr.mxu0 0.0
    %1430 = vmatpush1.msra.mxu0 0.0
    %1431 = vmatprep.subr.mxu0 0.0
    %1432 = vmatpush1.msra.mxu0 0.0
    %1433 = vmatprep.subr.mxu0 0.0
    %1434 = vmatpush1.msra.mxu0 0.0
    %1435 = vmatprep.subr.mxu0 0.0
    %1436 = vmatpush1.msra.mxu0 0.0
    %1437 = vmatprep.subr.mxu0 0.0
    %1438 = vmatpush1.msra.mxu0 0.0
    %1439 = vmatprep.subr.mxu0 0.0
    %1440 = vmatpush1.msra.mxu0 0.0
    %1441 = vmatprep.subr.mxu0 0.0
    %1442 = vmatpush1.msra.mxu0 0.0
    %1443 = vmatprep.subr.mxu0 0.0
    %1444 = vmatpush1.msra.mxu0 0.0
    %1445 = vmatprep.subr.mxu0 0.0
    %1446 = vmatpush1.msra.mxu0 0.0
    %1447 = vmatprep.subr.mxu0 0.0
    %1448 = vmatpush1.msra.mxu0 0.0
    %1449 = vmatprep.subr.mxu0 0.0
    %1450 = vmatpush1.msra.mxu0 0.0
    %1451 = vmatprep.subr.mxu0 0.0
    %1452 = vmatpush1.msra.mxu0 0.0
    %1453 = vmatprep.subr.mxu0 0.0
    %1454 = vmatpush1.msra.mxu0 0.0
    %1455 = vmatprep.subr.mxu0 0.0
    %1456 = vmatpush1.msra.mxu0 0.0
    %1457 = vmatprep.subr.mxu0 0.0
    %1458 = vmatpush1.msra.mxu0 0.0
    %1459 = vmatprep.subr.mxu0 0.0
    %1460 = vmatpush1.msra.mxu0 0.0
    %1461 = vmatprep.subr.mxu0 0.0
    %1462 = vmatpush1.msra.mxu0 0.0
    %1463 = vmatprep.subr.mxu0 0.0
    %1464 = vmatpush1.msra.mxu0 0.0
    %1465 = vmatprep.subr.mxu0 0.0
    %1466 = vmatpush1.msra.mxu0 0.0
    %1467 = vmatprep.subr.mxu0 0.0
    %1468 = vmatpush1.msra.mxu0 0.0
    %1469 = vmatprep.subr.mxu0 0.0
    %1470 = vmatpush1.msra.mxu0 0.0
    %1471 = vmatprep.mubr.f32.mxu0 0.0
    %1472 = vmatmul.mubr.f32.gmra.mrb[0].mxu0 %v1107
    %v1473 = vpop.f32.mrb[0].mxu0
    %v1474 = vadd.f32 0.0, %v1473
    %v1475 = vpop.f32.mrb[0].mxu0
    %1476 = vdwg.mxu0
    %v1477 = vadd.f32 %v356, %v1474
    %v1478 = vxor.u32 %v1477, 2147483648
    %v1479 = vmul.f32 %v1478, 1.442695
    %v1480 = vpow.pop %v1479
    %v1481 = vadd.f32 %v1480, 1.0
    %v1482 = vrcp.pop %v1481
    %v1483 = vmul.f32 1.0, %v1482
    %1484 = vmatprep.subr.mxu0 0.0
    %1485 = vmatpush1.msra.mxu0 %v522
    %1486 = vmatprep.subr.mxu0 0.0
    %1487 = vmatpush1.msra.mxu0 %v523
    %1488 = vmatprep.subr.mxu0 0.0
    %1489 = vmatpush1.msra.mxu0 %v524
    %1490 = vmatprep.subr.mxu0 0.0
    %1491 = vmatpush1.msra.mxu0 %v525
    %1492 = vmatprep.subr.mxu0 0.0
    %1493 = vmatpush1.msra.mxu0 0.0
    %1494 = vmatprep.subr.mxu0 0.0
    %1495 = vmatpush1.msra.mxu0 0.0
    %1496 = vmatprep.subr.mxu0 0.0
    %1497 = vmatpush1.msra.mxu0 0.0
    %1498 = vmatprep.subr.mxu0 0.0
    %1499 = vmatpush1.msra.mxu0 0.0
    %1500 = vmatprep.subr.mxu0 0.0
    %1501 = vmatpush1.msra.mxu0 0.0
    %1502 = vmatprep.subr.mxu0 0.0
    %1503 = vmatpush1.msra.mxu0 0.0
    %1504 = vmatprep.subr.mxu0 0.0
    %1505 = vmatpush1.msra.mxu0 0.0
    %1506 = vmatprep.subr.mxu0 0.0
    %1507 = vmatpush1.msra.mxu0 0.0
    %1508 = vmatprep.subr.mxu0 0.0
    %1509 = vmatpush1.msra.mxu0 0.0
    %1510 = vmatprep.subr.mxu0 0.0
    %1511 = vmatpush1.msra.mxu0 0.0
    %1512 = vmatprep.subr.mxu0 0.0
    %1513 = vmatpush1.msra.mxu0 0.0
    %1514 = vmatprep.subr.mxu0 0.0
    %1515 = vmatpush1.msra.mxu0 0.0
    %1516 = vmatprep.subr.mxu0 0.0
    %1517 = vmatpush1.msra.mxu0 0.0
    %1518 = vmatprep.subr.mxu0 0.0
    %1519 = vmatpush1.msra.mxu0 0.0
    %1520 = vmatprep.subr.mxu0 0.0
    %1521 = vmatpush1.msra.mxu0 0.0
    %1522 = vmatprep.subr.mxu0 0.0
    %1523 = vmatpush1.msra.mxu0 0.0
    %1524 = vmatprep.subr.mxu0 0.0
    %1525 = vmatpush1.msra.mxu0 0.0
    %1526 = vmatprep.subr.mxu0 0.0
    %1527 = vmatpush1.msra.mxu0 0.0
    %1528 = vmatprep.subr.mxu0 0.0
    %1529 = vmatpush1.msra.mxu0 0.0
    %1530 = vmatprep.subr.mxu0 0.0
    %1531 = vmatpush1.msra.mxu0 0.0
    %1532 = vmatprep.subr.mxu0 0.0
    %1533 = vmatpush1.msra.mxu0 0.0
    %1534 = vmatprep.subr.mxu0 0.0
    %1535 = vmatpush1.msra.mxu0 0.0
    %1536 = vmatprep.subr.mxu0 0.0
    %1537 = vmatpush1.msra.mxu0 0.0
    %1538 = vmatprep.subr.mxu0 0.0
    %1539 = vmatpush1.msra.mxu0 0.0
    %1540 = vmatprep.subr.mxu0 0.0
    %1541 = vmatpush1.msra.mxu0 0.0
    %1542 = vmatprep.subr.mxu0 0.0
    %1543 = vmatpush1.msra.mxu0 0.0
    %1544 = vmatprep.subr.mxu0 0.0
    %1545 = vmatpush1.msra.mxu0 0.0
    %1546 = vmatprep.subr.mxu0 0.0
    %1547 = vmatpush1.msra.mxu0 0.0
    %1548 = vmatprep.mubr.f32.mxu0 0.0
    %1549 = vmatmul.mubr.f32.gmra.mrb[0].mxu0 %v1107
    %v1550 = vpop.f32.mrb[0].mxu0
    %v1551 = vadd.f32 %v644, %v1550
    %v1552 = vpop.f32.mrb[0].mxu0
    %1553 = vdwg.mxu0
    %v1554 = vmul.f32 %v1406, %v1551
    %v1555 = vadd.f32 %v486, %v1554
    %v1556 = vtanh.pop %v1555
    %v1557 = vsub.f32 1.0, %v1483
    %v1558 = vmul.f32 %v1557, %v1556
    %v1559 = vmul.f32 %v1483, %v1105
    %v1560 = vadd.f32 %v1558, %v1559
    %v1562 = vsel %vm130, %v1560, 0
    %1564 = vmatprep.subr.mxu0 0.0
    %1565 = vmatpush1.msra.mxu0 %v527
    %1566 = vmatprep.subr.mxu0 0.0
    %1567 = vmatpush1.msra.mxu0 %v528
    %1568 = vmatprep.subr.mxu0 0.0
    %1569 = vmatpush1.msra.mxu0 %v529
    %1570 = vmatprep.subr.mxu0 0.0
    %1571 = vmatpush1.msra.mxu0 %v530
    %1572 = vmatprep.subr.mxu0 0.0
    %1573 = vmatpush1.msra.mxu0 0.0
    %1574 = vmatprep.subr.mxu0 0.0
    %1575 = vmatpush1.msra.mxu0 0.0
    %1576 = vmatprep.subr.mxu0 0.0
    %1577 = vmatpush1.msra.mxu0 0.0
    %1578 = vmatprep.subr.mxu0 0.0
    %1579 = vmatpush1.msra.mxu0 0.0
    %1580 = vmatprep.subr.mxu0 0.0
    %1581 = vmatpush1.msra.mxu0 0.0
    %1582 = vmatprep.subr.mxu0 0.0
    %1583 = vmatpush1.msra.mxu0 0.0
    %1584 = vmatprep.subr.mxu0 0.0
    %1585 = vmatpush1.msra.mxu0 0.0
    %1586 = vmatprep.subr.mxu0 0.0
    %1587 = vmatpush1.msra.mxu0 0.0
    %1588 = vmatprep.subr.mxu0 0.0
    %1589 = vmatpush1.msra.mxu0 0.0
    %1590 = vmatprep.subr.mxu0 0.0
    %1591 = vmatpush1.msra.mxu0 0.0
    %1592 = vmatprep.subr.mxu0 0.0
    %1593 = vmatpush1.msra.mxu0 0.0
    %1594 = vmatprep.subr.mxu0 0.0
    %1595 = vmatpush1.msra.mxu0 0.0
    %1596 = vmatprep.subr.mxu0 0.0
    %1597 = vmatpush1.msra.mxu0 0.0
    %1598 = vmatprep.subr.mxu0 0.0
    %1599 = vmatpush1.msra.mxu0 0.0
    %1600 = vmatprep.subr.mxu0 0.0
    %1601 = vmatpush1.msra.mxu0 0.0
    %1602 = vmatprep.subr.mxu0 0.0
    %1603 = vmatpush1.msra.mxu0 0.0
    %1604 = vmatprep.subr.mxu0 0.0
    %1605 = vmatpush1.msra.mxu0 0.0
    %1606 = vmatprep.subr.mxu0 0.0
    %1607 = vmatpush1.msra.mxu0 0.0
    %1608 = vmatprep.subr.mxu0 0.0
    %1609 = vmatpush1.msra.mxu0 0.0
    %1610 = vmatprep.subr.mxu0 0.0
    %1611 = vmatpush1.msra.mxu0 0.0
    %1612 = vmatprep.subr.mxu0 0.0
    %1613 = vmatpush1.msra.mxu0 0.0
    %1614 = vmatprep.subr.mxu0 0.0
    %1615 = vmatpush1.msra.mxu0 0.0
    %1616 = vmatprep.subr.mxu0 0.0
    %1617 = vmatpush1.msra.mxu0 0.0
    %1618 = vmatprep.subr.mxu0 0.0
    %1619 = vmatpush1.msra.mxu0 0.0
    %1620 = vmatprep.subr.mxu0 0.0
    %1621 = vmatpush1.msra.mxu0 0.0
    %1622 = vmatprep.subr.mxu0 0.0
    %1623 = vmatpush1.msra.mxu0 0.0
    %1624 = vmatprep.subr.mxu0 0.0
    %1625 = vmatpush1.msra.mxu0 0.0
    %1626 = vmatprep.subr.mxu0 0.0
    %1627 = vmatpush1.msra.mxu0 0.0
    %1628 = vmatprep.mubr.f32.mxu0 0.0
    %1629 = vmatmul.mubr.f32.gmra.mrb[0].mxu0 %v1562
    %v1630 = vpop.f32.mrb[0].mxu0
    %v1631 = vadd.f32 %v625, %v1630
    %v1632 = vpop.f32.mrb[0].mxu0
    %1633 = vdwg.mxu0
    %v1634 = vtanh.pop %v1631
    %s1635 = scalar_lea.vmem %s2, 4
    %v1636 = vld [vmem:[%s1635] sm:$0x3]
    %1638 = vset.pattern.permute.xlu0 0
    %1639 = vperm.xlu0 %1638, %v1636
    %v1640 = vpop.permute.xlu0 %1639
    %v1643 = vsel %vm731, %v1634, 0
    %1645 = vmatprep.subr.mxu0 0.0
    %1646 = vmatpush1.msra.mxu0 %v531
    %1647 = vmatprep.subr.mxu0 0.0
    %1648 = vmatpush1.msra.mxu0 %v532
    %1649 = vmatprep.subr.mxu0 0.0
    %1650 = vmatpush1.msra.mxu0 %v533
    %1651 = vmatprep.subr.mxu0 0.0
    %1652 = vmatpush1.msra.mxu0 %v534
    %1653 = vmatprep.subr.mxu0 0.0
    %1654 = vmatpush1.msra.mxu0 %v535
    %1655 = vmatprep.subr.mxu0 0.0
    %1656 = vmatpush1.msra.mxu0 %v536
    %1657 = vmatprep.subr.mxu0 0.0
    %1658 = vmatpush1.msra.mxu0 %v537
    %1659 = vmatprep.subr.mxu0 0.0
    %1660 = vmatpush1.msra.mxu0 %v538
    %1661 = vmatprep.subr.mxu0 0.0
    %1662 = vmatpush1.msra.mxu0 0.0
    %1663 = vmatprep.subr.mxu0 0.0
    %1664 = vmatpush1.msra.mxu0 0.0
    %1665 = vmatprep.subr.mxu0 0.0
    %1666 = vmatpush1.msra.mxu0 0.0
    %1667 = vmatprep.subr.mxu0 0.0
    %1668 = vmatpush1.msra.mxu0 0.0
    %1669 = vmatprep.subr.mxu0 0.0
    %1670 = vmatpush1.msra.mxu0 0.0
    %1671 = vmatprep.subr.mxu0 0.0
    %1672 = vmatpush1.msra.mxu0 0.0
    %1673 = vmatprep.subr.mxu0 0.0
    %1674 = vmatpush1.msra.mxu0 0.0
    %1675 = vmatprep.subr.mxu0 0.0
    %1676 = vmatpush1.msra.mxu0 0.0
    %1677 = vmatprep.subr.mxu0 0.0
    %1678 = vmatpush1.msra.mxu0 0.0
    %1679 = vmatprep.subr.mxu0 0.0
    %1680 = vmatpush1.msra.mxu0 0.0
    %1681 = vmatprep.subr.mxu0 0.0
    %1682 = vmatpush1.msra.mxu0 0.0
    %1683 = vmatprep.subr.mxu0 0.0
    %1684 = vmatpush1.msra.mxu0 0.0
    %1685 = vmatprep.subr.mxu0 0.0
    %1686 = vmatpush1.msra.mxu0 0.0
    %1687 = vmatprep.subr.mxu0 0.0
    %1688 = vmatpush1.msra.mxu0 0.0
    %1689 = vmatprep.subr.mxu0 0.0
    %1690 = vmatpush1.msra.mxu0 0.0
    %1691 = vmatprep.subr.mxu0 0.0
    %1692 = vmatpush1.msra.mxu0 0.0
    %1693 = vmatprep.subr.mxu0 0.0
    %1694 = vmatpush1.msra.mxu0 0.0
    %1695 = vmatprep.subr.mxu0 0.0
    %1696 = vmatpush1.msra.mxu0 0.0
    %1697 = vmatprep.subr.mxu0 0.0
    %1698 = vmatpush1.msra.mxu0 0.0
    %1699 = vmatprep.subr.mxu0 0.0
    %1700 = vmatpush1.msra.mxu0 0.0
    %1701 = vmatprep.subr.mxu0 0.0
    %1702 = vmatpush1.msra.mxu0 0.0
    %1703 = vmatprep.subr.mxu0 0.0
    %1704 = vmatpush1.msra.mxu0 0.0
    %1705 = vmatprep.subr.mxu0 0.0
    %1706 = vmatpush1.msra.mxu0 0.0
    %1707 = vmatprep.subr.mxu0 0.0
    %1708 = vmatpush1.msra.mxu0 0.0
    %1709 = vmatprep.mubr.f32.mxu0 0.0
    %1710 = vmatmul.mubr.f32.gmra.mrb[0].mxu0 %v1643
    %v1711 = vpop.f32.mrb[0].mxu0
    %v1712 = vadd.f32 %v1640, %v1711
    %v1713 = vpop.f32.mrb[0].mxu0
    %1714 = vdwg.mxu0
    %1715 = vmatprep.subr.mxu0 0.0
    %1716 = vmatpush1.msra.mxu0 %v539
    %1717 = vmatprep.subr.mxu0 0.0
    %1718 = vmatpush1.msra.mxu0 %v540
    %1719 = vmatprep.subr.mxu0 0.0
    %1720 = vmatpush1.msra.mxu0 %v541
    %1721 = vmatprep.subr.mxu0 0.0
    %1722 = vmatpush1.msra.mxu0 %v542
    %1723 = vmatprep.subr.mxu0 0.0
    %1724 = vmatpush1.msra.mxu0 0.0
    %1725 = vmatprep.subr.mxu0 0.0
    %1726 = vmatpush1.msra.mxu0 0.0
    %1727 = vmatprep.subr.mxu0 0.0
    %1728 = vmatpush1.msra.mxu0 0.0
    %1729 = vmatprep.subr.mxu0 0.0
    %1730 = vmatpush1.msra.mxu0 0.0
    %1731 = vmatprep.subr.mxu0 0.0
    %1732 = vmatpush1.msra.mxu0 0.0
    %1733 = vmatprep.subr.mxu0 0.0
    %1734 = vmatpush1.msra.mxu0 0.0
    %1735 = vmatprep.subr.mxu0 0.0
    %1736 = vmatpush1.msra.mxu0 0.0
    %1737 = vmatprep.subr.mxu0 0.0
    %1738 = vmatpush1.msra.mxu0 0.0
    %1739 = vmatprep.subr.mxu0 0.0
    %1740 = vmatpush1.msra.mxu0 0.0
    %1741 = vmatprep.subr.mxu0 0.0
    %1742 = vmatpush1.msra.mxu0 0.0
    %1743 = vmatprep.subr.mxu0 0.0
    %1744 = vmatpush1.msra.mxu0 0.0
    %1745 = vmatprep.subr.mxu0 0.0
    %1746 = vmatpush1.msra.mxu0 0.0
    %1747 = vmatprep.subr.mxu0 0.0
    %1748 = vmatpush1.msra.mxu0 0.0
    %1749 = vmatprep.subr.mxu0 0.0
    %1750 = vmatpush1.msra.mxu0 0.0
    %1751 = vmatprep.subr.mxu0 0.0
    %1752 = vmatpush1.msra.mxu0 0.0
    %1753 = vmatprep.subr.mxu0 0.0
    %1754 = vmatpush1.msra.mxu0 0.0
    %1755 = vmatprep.subr.mxu0 0.0
    %1756 = vmatpush1.msra.mxu0 0.0
    %1757 = vmatprep.subr.mxu0 0.0
    %1758 = vmatpush1.msra.mxu0 0.0
    %1759 = vmatprep.subr.mxu0 0.0
    %1760 = vmatpush1.msra.mxu0 0.0
    %1761 = vmatprep.subr.mxu0 0.0
    %1762 = vmatpush1.msra.mxu0 0.0
    %1763 = vmatprep.subr.mxu0 0.0
    %1764 = vmatpush1.msra.mxu0 0.0
    %1765 = vmatprep.subr.mxu0 0.0
    %1766 = vmatpush1.msra.mxu0 0.0
    %1767 = vmatprep.subr.mxu0 0.0
    %1768 = vmatpush1.msra.mxu0 0.0
    %1769 = vmatprep.subr.mxu0 0.0
    %1770 = vmatpush1.msra.mxu0 0.0
    %1771 = vmatprep.subr.mxu0 0.0
    %1772 = vmatpush1.msra.mxu0 0.0
    %1773 = vmatprep.subr.mxu0 0.0
    %1774 = vmatpush1.msra.mxu0 0.0
    %1775 = vmatprep.subr.mxu0 0.0
    %1776 = vmatpush1.msra.mxu0 0.0
    %1777 = vmatprep.subr.mxu0 0.0
    %1778 = vmatpush1.msra.mxu0 0.0
    %1779 = vmatprep.mubr.f32.mxu0 0.0
    %1780 = vmatmul.mubr.f32.gmra.mrb[0].mxu0 %v1562
    %v1781 = vpop.f32.mrb[0].mxu0
    %v1782 = vadd.f32 0.0, %v1781
    %v1783 = vpop.f32.mrb[0].mxu0
    %1784 = vdwg.mxu0
    %1785 = vmatprep.subr.mxu0 0.0
    %1786 = vmatpush1.msra.mxu0 %v514
    %1787 = vmatprep.subr.mxu0 0.0
    %1788 = vmatpush1.msra.mxu0 %v515
    %1789 = vmatprep.subr.mxu0 0.0
    %1790 = vmatpush1.msra.mxu0 %v516
    %1791 = vmatprep.subr.mxu0 0.0
    %1792 = vmatpush1.msra.mxu0 %v517
    %1793 = vmatprep.subr.mxu0 0.0
    %1794 = vmatpush1.msra.mxu0 0.0
    %1795 = vmatprep.subr.mxu0 0.0
    %1796 = vmatpush1.msra.mxu0 0.0
    %1797 = vmatprep.subr.mxu0 0.0
    %1798 = vmatpush1.msra.mxu0 0.0
    %1799 = vmatprep.subr.mxu0 0.0
    %1800 = vmatpush1.msra.mxu0 0.0
    %1801 = vmatprep.subr.mxu0 0.0
    %1802 = vmatpush1.msra.mxu0 0.0
    %1803 = vmatprep.subr.mxu0 0.0
    %1804 = vmatpush1.msra.mxu0 0.0
    %1805 = vmatprep.subr.mxu0 0.0
    %1806 = vmatpush1.msra.mxu0 0.0
    %1807 = vmatprep.subr.mxu0 0.0
    %1808 = vmatpush1.msra.mxu0 0.0
    %1809 = vmatprep.subr.mxu0 0.0
    %1810 = vmatpush1.msra.mxu0 0.0
    %1811 = vmatprep.subr.mxu0 0.0
    %1812 = vmatpush1.msra.mxu0 0.0
    %1813 = vmatprep.subr.mxu0 0.0
    %1814 = vmatpush1.msra.mxu0 0.0
    %1815 = vmatprep.subr.mxu0 0.0
    %1816 = vmatpush1.msra.mxu0 0.0
    %1817 = vmatprep.subr.mxu0 0.0
    %1818 = vmatpush1.msra.mxu0 0.0
    %1819 = vmatprep.subr.mxu0 0.0
    %1820 = vmatpush1.msra.mxu0 0.0
    %1821 = vmatprep.subr.mxu0 0.0
    %1822 = vmatpush1.msra.mxu0 0.0
    %1823 = vmatprep.subr.mxu0 0.0
    %1824 = vmatpush1.msra.mxu0 0.0
    %1825 = vmatprep.subr.mxu0 0.0
    %1826 = vmatpush1.msra.mxu0 0.0
    %1827 = vmatprep.subr.mxu0 0.0
    %1828 = vmatpush1.msra.mxu0 0.0
    %1829 = vmatprep.subr.mxu0 0.0
    %1830 = vmatpush1.msra.mxu0 0.0
    %1831 = vmatprep.subr.mxu0 0.0
    %1832 = vmatpush1.msra.mxu0 0.0
    %1833 = vmatprep.subr.mxu0 0.0
    %1834 = vmatpush1.msra.mxu0 0.0
    %1835 = vmatprep.subr.mxu0 0.0
    %1836 = vmatpush1.msra.mxu0 0.0
    %1837 = vmatprep.subr.mxu0 0.0
    %1838 = vmatpush1.msra.mxu0 0.0
    %1839 = vmatprep.subr.mxu0 0.0
    %1840 = vmatpush1.msra.mxu0 0.0
    %1841 = vmatprep.subr.mxu0 0.0
    %1842 = vmatpush1.msra.mxu0 0.0
    %1843 = vmatprep.subr.mxu0 0.0
    %1844 = vmatpush1.msra.mxu0 0.0
    %1845 = vmatprep.subr.mxu0 0.0
    %1846 = vmatpush1.msra.mxu0 0.0
    %1847 = vmatprep.subr.mxu0 0.0
    %1848 = vmatpush1.msra.mxu0 0.0
    %1849 = vmatprep.mubr.f32.mxu0 0.0
    %1850 = vmatmul.mubr.f32.gmra.mrb[0].mxu0 %v1562
    %v1851 = vpop.f32.mrb[0].mxu0
    %v1852 = vadd.f32 0.0, %v1851
    %v1853 = vpop.f32.mrb[0].mxu0
    %1854 = vdwg.mxu0
    %v1855 = vadd.f32 %v228, %v1852
    %v1856 = vxor.u32 %v1855, 2147483648
    %v1857 = vmul.f32 %v1856, 1.442695
    %v1858 = vpow.pop %v1857
    %v1859 = vadd.f32 %v1858, 1.0
    %v1860 = vrcp.pop %v1859
    %v1861 = vmul.f32 1.0, %v1860
    %1862 = vmatprep.subr.mxu0 0.0
    %1863 = vmatpush1.msra.mxu0 %v518
    %1864 = vmatprep.subr.mxu0 0.0
    %1865 = vmatpush1.msra.mxu0 %v519
    %1866 = vmatprep.subr.mxu0 0.0
    %1867 = vmatpush1.msra.mxu0 %v520
    %1868 = vmatprep.subr.mxu0 0.0
    %1869 = vmatpush1.msra.mxu0 %v521
    %1870 = vmatprep.subr.mxu0 0.0
    %1871 = vmatpush1.msra.mxu0 0.0
    %1872 = vmatprep.subr.mxu0 0.0
    %1873 = vmatpush1.msra.mxu0 0.0
    %1874 = vmatprep.subr.mxu0 0.0
    %1875 = vmatpush1.msra.mxu0 0.0
    %1876 = vmatprep.subr.mxu0 0.0
    %1877 = vmatpush1.msra.mxu0 0.0
    %1878 = vmatprep.subr.mxu0 0.0
    %1879 = vmatpush1.msra.mxu0 0.0
    %1880 = vmatprep.subr.mxu0 0.0
    %1881 = vmatpush1.msra.mxu0 0.0
    %1882 = vmatprep.subr.mxu0 0.0
    %1883 = vmatpush1.msra.mxu0 0.0
    %1884 = vmatprep.subr.mxu0 0.0
    %1885 = vmatpush1.msra.mxu0 0.0
    %1886 = vmatprep.subr.mxu0 0.0
    %1887 = vmatpush1.msra.mxu0 0.0
    %1888 = vmatprep.subr.mxu0 0.0
    %1889 = vmatpush1.msra.mxu0 0.0
    %1890 = vmatprep.subr.mxu0 0.0
    %1891 = vmatpush1.msra.mxu0 0.0
    %1892 = vmatprep.subr.mxu0 0.0
    %1893 = vmatpush1.msra.mxu0 0.0
    %1894 = vmatprep.subr.mxu0 0.0
    %1895 = vmatpush1.msra.mxu0 0.0
    %1896 = vmatprep.subr.mxu0 0.0
    %1897 = vmatpush1.msra.mxu0 0.0
    %1898 = vmatprep.subr.mxu0 0.0
    %1899 = vmatpush1.msra.mxu0 0.0
    %1900 = vmatprep.subr.mxu0 0.0
    %1901 = vmatpush1.msra.mxu0 0.0
    %1902 = vmatprep.subr.mxu0 0.0
    %1903 = vmatpush1.msra.mxu0 0.0
    %1904 = vmatprep.subr.mxu0 0.0
    %1905 = vmatpush1.msra.mxu0 0.0
    %1906 = vmatprep.subr.mxu0 0.0
    %1907 = vmatpush1.msra.mxu0 0.0
    %1908 = vmatprep.subr.mxu0 0.0
    %1909 = vmatpush1.msra.mxu0 0.0
    %1910 = vmatprep.subr.mxu0 0.0
    %1911 = vmatpush1.msra.mxu0 0.0
    %1912 = vmatprep.subr.mxu0 0.0
    %1913 = vmatpush1.msra.mxu0 0.0
    %1914 = vmatprep.subr.mxu0 0.0
    %1915 = vmatpush1.msra.mxu0 0.0
    %1916 = vmatprep.subr.mxu0 0.0
    %1917 = vmatpush1.msra.mxu0 0.0
    %1918 = vmatprep.subr.mxu0 0.0
    %1919 = vmatpush1.msra.mxu0 0.0
    %1920 = vmatprep.subr.mxu0 0.0
    %1921 = vmatpush1.msra.mxu0 0.0
    %1922 = vmatprep.subr.mxu0 0.0
    %1923 = vmatpush1.msra.mxu0 0.0
    %1924 = vmatprep.subr.mxu0 0.0
    %1925 = vmatpush1.msra.mxu0 0.0
    %1926 = vmatprep.mubr.f32.mxu0 0.0
    %1927 = vmatmul.mubr.f32.gmra.mrb[0].mxu0 %v1562
    %v1928 = vpop.f32.mrb[0].mxu0
    %v1929 = vadd.f32 0.0, %v1928
    %v1930 = vpop.f32.mrb[0].mxu0
    %1931 = vdwg.mxu0
    %v1932 = vadd.f32 %v358, %v1929
    %v1933 = vxor.u32 %v1932, 2147483648
    %v1934 = vmul.f32 %v1933, 1.442695
    %v1935 = vpow.pop %v1934
    %v1936 = vadd.f32 %v1935, 1.0
    %v1937 = vrcp.pop %v1936
    %v1938 = vmul.f32 1.0, %v1937
    %1939 = vmatprep.subr.mxu0 0.0
    %1940 = vmatpush1.msra.mxu0 %v522
    %1941 = vmatprep.subr.mxu0 0.0
    %1942 = vmatpush1.msra.mxu0 %v523
    %1943 = vmatprep.subr.mxu0 0.0
    %1944 = vmatpush1.msra.mxu0 %v524
    %1945 = vmatprep.subr.mxu0 0.0
    %1946 = vmatpush1.msra.mxu0 %v525
    %1947 = vmatprep.subr.mxu0 0.0
    %1948 = vmatpush1.msra.mxu0 0.0
    %1949 = vmatprep.subr.mxu0 0.0
    %1950 = vmatpush1.msra.mxu0 0.0
    %1951 = vmatprep.subr.mxu0 0.0
    %1952 = vmatpush1.msra.mxu0 0.0
    %1953 = vmatprep.subr.mxu0 0.0
    %1954 = vmatpush1.msra.mxu0 0.0
    %1955 = vmatprep.subr.mxu0 0.0
    %1956 = vmatpush1.msra.mxu0 0.0
    %1957 = vmatprep.subr.mxu0 0.0
    %1958 = vmatpush1.msra.mxu0 0.0
    %1959 = vmatprep.subr.mxu0 0.0
    %1960 = vmatpush1.msra.mxu0 0.0
    %1961 = vmatprep.subr.mxu0 0.0
    %1962 = vmatpush1.msra.mxu0 0.0
    %1963 = vmatprep.subr.mxu0 0.0
    %1964 = vmatpush1.msra.mxu0 0.0
    %1965 = vmatprep.subr.mxu0 0.0
    %1966 = vmatpush1.msra.mxu0 0.0
    %1967 = vmatprep.subr.mxu0 0.0
    %1968 = vmatpush1.msra.mxu0 0.0
    %1969 = vmatprep.subr.mxu0 0.0
    %1970 = vmatpush1.msra.mxu0 0.0
    %1971 = vmatprep.subr.mxu0 0.0
    %1972 = vmatpush1.msra.mxu0 0.0
    %1973 = vmatprep.subr.mxu0 0.0
    %1974 = vmatpush1.msra.mxu0 0.0
    %1975 = vmatprep.subr.mxu0 0.0
    %1976 = vmatpush1.msra.mxu0 0.0
    %1977 = vmatprep.subr.mxu0 0.0
    %1978 = vmatpush1.msra.mxu0 0.0
    %1979 = vmatprep.subr.mxu0 0.0
    %1980 = vmatpush1.msra.mxu0 0.0
    %1981 = vmatprep.subr.mxu0 0.0
    %1982 = vmatpush1.msra.mxu0 0.0
    %1983 = vmatprep.subr.mxu0 0.0
    %1984 = vmatpush1.msra.mxu0 0.0
    %1985 = vmatprep.subr.mxu0 0.0
    %1986 = vmatpush1.msra.mxu0 0.0
    %1987 = vmatprep.subr.mxu0 0.0
    %1988 = vmatpush1.msra.mxu0 0.0
    %1989 = vmatprep.subr.mxu0 0.0
    %1990 = vmatpush1.msra.mxu0 0.0
    %1991 = vmatprep.subr.mxu0 0.0
    %1992 = vmatpush1.msra.mxu0 0.0
    %1993 = vmatprep.subr.mxu0 0.0
    %1994 = vmatpush1.msra.mxu0 0.0
    %1995 = vmatprep.subr.mxu0 0.0
    %1996 = vmatpush1.msra.mxu0 0.0
    %1997 = vmatprep.subr.mxu0 0.0
    %1998 = vmatpush1.msra.mxu0 0.0
    %1999 = vmatprep.subr.mxu0 0.0
    %2000 = vmatpush1.msra.mxu0 0.0
    %2001 = vmatprep.subr.mxu0 0.0
    %2002 = vmatpush1.msra.mxu0 0.0
    %2003 = vmatprep.mubr.f32.mxu0 0.0
    %2004 = vmatmul.mubr.f32.gmra.mrb[0].mxu0 %v1562
    %v2005 = vpop.f32.mrb[0].mxu0
    %v2006 = vadd.f32 %v644, %v2005
    %v2007 = vpop.f32.mrb[0].mxu0
    %2008 = vdwg.mxu0
    %v2009 = vmul.f32 %v1861, %v2006
    %v2010 = vadd.f32 %v488, %v2009
    %v2011 = vtanh.pop %v2010
    %v2012 = vsub.f32 1.0, %v1938
    %v2013 = vmul.f32 %v2012, %v2011
    %v2014 = vmul.f32 %v1938, %v1560
    %v2015 = vadd.f32 %v2013, %v2014
    %v2017 = vsel %vm130, %v2015, 0
    %2019 = vmatprep.subr.mxu0 0.0
    %2020 = vmatpush1.msra.mxu0 %v527
    %2021 = vmatprep.subr.mxu0 0.0
    %2022 = vmatpush1.msra.mxu0 %v528
    %2023 = vmatprep.subr.mxu0 0.0
    %2024 = vmatpush1.msra.mxu0 %v529
    %2025 = vmatprep.subr.mxu0 0.0
    %2026 = vmatpush1.msra.mxu0 %v530
    %2027 = vmatprep.subr.mxu0 0.0
    %2028 = vmatpush1.msra.mxu0 0.0
    %2029 = vmatprep.subr.mxu0 0.0
    %2030 = vmatpush1.msra.mxu0 0.0
    %2031 = vmatprep.subr.mxu0 0.0
    %2032 = vmatpush1.msra.mxu0 0.0
    %2033 = vmatprep.subr.mxu0 0.0
    %2034 = vmatpush1.msra.mxu0 0.0
    %2035 = vmatprep.subr.mxu0 0.0
    %2036 = vmatpush1.msra.mxu0 0.0
    %2037 = vmatprep.subr.mxu0 0.0
    %2038 = vmatpush1.msra.mxu0 0.0
    %2039 = vmatprep.subr.mxu0 0.0
    %2040 = vmatpush1.msra.mxu0 0.0
    %2041 = vmatprep.subr.mxu0 0.0
    %2042 = vmatpush1.msra.mxu0 0.0
    %2043 = vmatprep.subr.mxu0 0.0
    %2044 = vmatpush1.msra.mxu0 0.0
    %2045 = vmatprep.subr.mxu0 0.0
    %2046 = vmatpush1.msra.mxu0 0.0
    %2047 = vmatprep.subr.mxu0 0.0
    %2048 = vmatpush1.msra.mxu0 0.0
    %2049 = vmatprep.subr.mxu0 0.0
    %2050 = vmatpush1.msra.mxu0 0.0
    %2051 = vmatprep.subr.mxu0 0.0
    %2052 = vmatpush1.msra.mxu0 0.0
    %2053 = vmatprep.subr.mxu0 0.0
    %2054 = vmatpush1.msra.mxu0 0.0
    %2055 = vmatprep.subr.mxu0 0.0
    %2056 = vmatpush1.msra.mxu0 0.0
    %2057 = vmatprep.subr.mxu0 0.0
    %2058 = vmatpush1.msra.mxu0 0.0
    %2059 = vmatprep.subr.mxu0 0.0
    %2060 = vmatpush1.msra.mxu0 0.0
    %2061 = vmatprep.subr.mxu0 0.0
    %2062 = vmatpush1.msra.mxu0 0.0
    %2063 = vmatprep.subr.mxu0 0.0
    %2064 = vmatpush1.msra.mxu0 0.0
    %2065 = vmatprep.subr.mxu0 0.0
    %2066 = vmatpush1.msra.mxu0 0.0
    %2067 = vmatprep.subr.mxu0 0.0
    %2068 = vmatpush1.msra.mxu0 0.0
    %2069 = vmatprep.subr.mxu0 0.0
    %2070 = vmatpush1.msra.mxu0 0.0
    %2071 = vmatprep.subr.mxu0 0.0
    %2072 = vmatpush1.msra.mxu0 0.0
    %2073 = vmatprep.subr.mxu0 0.0
    %2074 = vmatpush1.msra.mxu0 0.0
    %2075 = vmatprep.subr.mxu0 0.0
    %2076 = vmatpush1.msra.mxu0 0.0
    %2077 = vmatprep.subr.mxu0 0.0
    %2078 = vmatpush1.msra.mxu0 0.0
    %2079 = vmatprep.subr.mxu0 0.0
    %2080 = vmatpush1.msra.mxu0 0.0
    %2081 = vmatprep.subr.mxu0 0.0
    %2082 = vmatpush1.msra.mxu0 0.0
    %2083 = vmatprep.mubr.f32.mxu0 0.0
    %2084 = vmatmul.mubr.f32.gmra.mrb[0].mxu0 %v2017
    %v2085 = vpop.f32.mrb[0].mxu0
    %v2086 = vadd.f32 %v625, %v2085
    %v2087 = vpop.f32.mrb[0].mxu0
    %2088 = vdwg.mxu0
    %v2089 = vtanh.pop %v2086
    %s2090 = scalar_lea.vmem %s2, 6
    %v2091 = vld [vmem:[%s2090] sm:$0x3]
    %2093 = vset.pattern.permute.xlu0 0
    %2094 = vperm.xlu0 %2093, %v2091
    %v2095 = vpop.permute.xlu0 %2094
    %v2098 = vsel %vm731, %v2089, 0
    %2100 = vmatprep.subr.mxu0 0.0
    %2101 = vmatpush1.msra.mxu0 %v531
    %2102 = vmatprep.subr.mxu0 0.0
    %2103 = vmatpush1.msra.mxu0 %v532
    %2104 = vmatprep.subr.mxu0 0.0
    %2105 = vmatpush1.msra.mxu0 %v533
    %2106 = vmatprep.subr.mxu0 0.0
    %2107 = vmatpush1.msra.mxu0 %v534
    %2108 = vmatprep.subr.mxu0 0.0
    %2109 = vmatpush1.msra.mxu0 %v535
    %2110 = vmatprep.subr.mxu0 0.0
    %2111 = vmatpush1.msra.mxu0 %v536
    %2112 = vmatprep.subr.mxu0 0.0
    %2113 = vmatpush1.msra.mxu0 %v537
    %2114 = vmatprep.subr.mxu0 0.0
    %2115 = vmatpush1.msra.mxu0 %v538
    %2116 = vmatprep.subr.mxu0 0.0
    %2117 = vmatpush1.msra.mxu0 0.0
    %2118 = vmatprep.subr.mxu0 0.0
    %2119 = vmatpush1.msra.mxu0 0.0
    %2120 = vmatprep.subr.mxu0 0.0
    %2121 = vmatpush1.msra.mxu0 0.0
    %2122 = vmatprep.subr.mxu0 0.0
    %2123 = vmatpush1.msra.mxu0 0.0
    %2124 = vmatprep.subr.mxu0 0.0
    %2125 = vmatpush1.msra.mxu0 0.0
    %2126 = vmatprep.subr.mxu0 0.0
    %2127 = vmatpush1.msra.mxu0 0.0
    %2128 = vmatprep.subr.mxu0 0.0
    %2129 = vmatpush1.msra.mxu0 0.0
    %2130 = vmatprep.subr.mxu0 0.0
    %2131 = vmatpush1.msra.mxu0 0.0
    %2132 = vmatprep.subr.mxu0 0.0
    %2133 = vmatpush1.msra.mxu0 0.0
    %2134 = vmatprep.subr.mxu0 0.0
    %2135 = vmatpush1.msra.mxu0 0.0
    %2136 = vmatprep.subr.mxu0 0.0
    %2137 = vmatpush1.msra.mxu0 0.0
    %2138 = vmatprep.subr.mxu0 0.0
    %2139 = vmatpush1.msra.mxu0 0.0
    %2140 = vmatprep.subr.mxu0 0.0
    %2141 = vmatpush1.msra.mxu0 0.0
    %2142 = vmatprep.subr.mxu0 0.0
    %2143 = vmatpush1.msra.mxu0 0.0
    %2144 = vmatprep.subr.mxu0 0.0
    %2145 = vmatpush1.msra.mxu0 0.0
    %2146 = vmatprep.subr.mxu0 0.0
    %2147 = vmatpush1.msra.mxu0 0.0
    %2148 = vmatprep.subr.mxu0 0.0
    %2149 = vmatpush1.msra.mxu0 0.0
    %2150 = vmatprep.subr.mxu0 0.0
    %2151 = vmatpush1.msra.mxu0 0.0
    %2152 = vmatprep.subr.mxu0 0.0
    %2153 = vmatpush1.msra.mxu0 0.0
    %2154 = vmatprep.subr.mxu0 0.0
    %2155 = vmatpush1.msra.mxu0 0.0
    %2156 = vmatprep.subr.mxu0 0.0
    %2157 = vmatpush1.msra.mxu0 0.0
    %2158 = vmatprep.subr.mxu0 0.0
    %2159 = vmatpush1.msra.mxu0 0.0
    %2160 = vmatprep.subr.mxu0 0.0
    %2161 = vmatpush1.msra.mxu0 0.0
    %2162 = vmatprep.subr.mxu0 0.0
    %2163 = vmatpush1.msra.mxu0 0.0
    %2164 = vmatprep.mubr.f32.mxu0 0.0
    %2165 = vmatmul.mubr.f32.gmra.mrb[0].mxu0 %v2098
    %v2166 = vpop.f32.mrb[0].mxu0
    %v2167 = vadd.f32 %v2095, %v2166
    %v2168 = vpop.f32.mrb[0].mxu0
    %2169 = vdwg.mxu0
    %2170 = vmatprep.subr.mxu0 0.0
    %2171 = vmatpush1.msra.mxu0 %v539
    %2172 = vmatprep.subr.mxu0 0.0
    %2173 = vmatpush1.msra.mxu0 %v540
    %2174 = vmatprep.subr.mxu0 0.0
    %2175 = vmatpush1.msra.mxu0 %v541
    %2176 = vmatprep.subr.mxu0 0.0
    %2177 = vmatpush1.msra.mxu0 %v542
    %2178 = vmatprep.subr.mxu0 0.0
    %2179 = vmatpush1.msra.mxu0 0.0
    %2180 = vmatprep.subr.mxu0 0.0
    %2181 = vmatpush1.msra.mxu0 0.0
    %2182 = vmatprep.subr.mxu0 0.0
    %2183 = vmatpush1.msra.mxu0 0.0
    %2184 = vmatprep.subr.mxu0 0.0
    %2185 = vmatpush1.msra.mxu0 0.0
    %2186 = vmatprep.subr.mxu0 0.0
    %2187 = vmatpush1.msra.mxu0 0.0
    %2188 = vmatprep.subr.mxu0 0.0
    %2189 = vmatpush1.msra.mxu0 0.0
    %2190 = vmatprep.subr.mxu0 0.0
    %2191 = vmatpush1.msra.mxu0 0.0
    %2192 = vmatprep.subr.mxu0 0.0
    %2193 = vmatpush1.msra.mxu0 0.0
    %2194 = vmatprep.subr.mxu0 0.0
    %2195 = vmatpush1.msra.mxu0 0.0
    %2196 = vmatprep.subr.mxu0 0.0
    %2197 = vmatpush1.msra.mxu0 0.0
    %2198 = vmatprep.subr.mxu0 0.0
    %2199 = vmatpush1.msra.mxu0 0.0
    %2200 = vmatprep.subr.mxu0 0.0
    %2201 = vmatpush1.msra.mxu0 0.0
    %2202 = vmatprep.subr.mxu0 0.0
    %2203 = vmatpush1.msra.mxu0 0.0
    %2204 = vmatprep.subr.mxu0 0.0
    %2205 = vmatpush1.msra.mxu0 0.0
    %2206 = vmatprep.subr.mxu0 0.0
    %2207 = vmatpush1.msra.mxu0 0.0
    %2208 = vmatprep.subr.mxu0 0.0
    %2209 = vmatpush1.msra.mxu0 0.0
    %2210 = vmatprep.subr.mxu0 0.0
    %2211 = vmatpush1.msra.mxu0 0.0
    %2212 = vmatprep.subr.mxu0 0.0
    %2213 = vmatpush1.msra.mxu0 0.0
    %2214 = vmatprep.subr.mxu0 0.0
    %2215 = vmatpush1.msra.mxu0 0.0
    %2216 = vmatprep.subr.mxu0 0.0
    %2217 = vmatpush1.msra.mxu0 0.0
    %2218 = vmatprep.subr.mxu0 0.0
    %2219 = vmatpush1.msra.mxu0 0.0
    %2220 = vmatprep.subr.mxu0 0.0
    %2221 = vmatpush1.msra.mxu0 0.0
    %2222 = vmatprep.subr.mxu0 0.0
    %2223 = vmatpush1.msra.mxu0 0.0
    %2224 = vmatprep.subr.mxu0 0.0
    %2225 = vmatpush1.msra.mxu0 0.0
    %2226 = vmatprep.subr.mxu0 0.0
    %2227 = vmatpush1.msra.mxu0 0.0
    %2228 = vmatprep.subr.mxu0 0.0
    %2229 = vmatpush1.msra.mxu0 0.0
    %2230 = vmatprep.subr.mxu0 0.0
    %2231 = vmatpush1.msra.mxu0 0.0
    %2232 = vmatprep.subr.mxu0 0.0
    %2233 = vmatpush1.msra.mxu0 0.0
    %2234 = vmatprep.mubr.f32.mxu0 0.0
    %2235 = vmatmul.mubr.f32.gmra.mrb[0].mxu0 %v2017
    %v2236 = vpop.f32.mrb[0].mxu0
    %v2237 = vadd.f32 0.0, %v2236
    %v2238 = vpop.f32.mrb[0].mxu0
    %2239 = vdwg.mxu0
    %2240 = vmatprep.subr.mxu0 0.0
    %2241 = vmatpush1.msra.mxu0 %v514
    %2242 = vmatprep.subr.mxu0 0.0
    %2243 = vmatpush1.msra.mxu0 %v515
    %2244 = vmatprep.subr.mxu0 0.0
    %2245 = vmatpush1.msra.mxu0 %v516
    %2246 = vmatprep.subr.mxu0 0.0
    %2247 = vmatpush1.msra.mxu0 %v517
    %2248 = vmatprep.subr.mxu0 0.0
    %2249 = vmatpush1.msra.mxu0 0.0
    %2250 = vmatprep.subr.mxu0 0.0
    %2251 = vmatpush1.msra.mxu0 0.0
    %2252 = vmatprep.subr.mxu0 0.0
    %2253 = vmatpush1.msra.mxu0 0.0
    %2254 = vmatprep.subr.mxu0 0.0
    %2255 = vmatpush1.msra.mxu0 0.0
    %2256 = vmatprep.subr.mxu0 0.0
    %2257 = vmatpush1.msra.mxu0 0.0
    %2258 = vmatprep.subr.mxu0 0.0
    %2259 = vmatpush1.msra.mxu0 0.0
    %2260 = vmatprep.subr.mxu0 0.0
    %2261 = vmatpush1.msra.mxu0 0.0
    %2262 = vmatprep.subr.mxu0 0.0
    %2263 = vmatpush1.msra.mxu0 0.0
    %2264 = vmatprep.subr.mxu0 0.0
    %2265 = vmatpush1.msra.mxu0 0.0
    %2266 = vmatprep.subr.mxu0 0.0
    %2267 = vmatpush1.msra.mxu0 0.0
    %2268 = vmatprep.subr.mxu0 0.0
    %2269 = vmatpush1.msra.mxu0 0.0
    %2270 = vmatprep.subr.mxu0 0.0
    %2271 = vmatpush1.msra.mxu0 0.0
    %2272 = vmatprep.subr.mxu0 0.0
    %2273 = vmatpush1.msra.mxu0 0.0
    %2274 = vmatprep.subr.mxu0 0.0
    %2275 = vmatpush1.msra.mxu0 0.0
    %2276 = vmatprep.subr.mxu0 0.0
    %2277 = vmatpush1.msra.mxu0 0.0
    %2278 = vmatprep.subr.mxu0 0.0
    %2279 = vmatpush1.msra.mxu0 0.0
    %2280 = vmatprep.subr.mxu0 0.0
    %2281 = vmatpush1.msra.mxu0 0.0
    %2282 = vmatprep.subr.mxu0 0.0
    %2283 = vmatpush1.msra.mxu0 0.0
    %2284 = vmatprep.subr.mxu0 0.0
    %2285 = vmatpush1.msra.mxu0 0.0
    %2286 = vmatprep.subr.mxu0 0.0
    %2287 = vmatpush1.msra.mxu0 0.0
    %2288 = vmatprep.subr.mxu0 0.0
    %2289 = vmatpush1.msra.mxu0 0.0
    %2290 = vmatprep.subr.mxu0 0.0
    %2291 = vmatpush1.msra.mxu0 0.0
    %2292 = vmatprep.subr.mxu0 0.0
    %2293 = vmatpush1.msra.mxu0 0.0
    %2294 = vmatprep.subr.mxu0 0.0
    %2295 = vmatpush1.msra.mxu0 0.0
    %2296 = vmatprep.subr.mxu0 0.0
    %2297 = vmatpush1.msra.mxu0 0.0
    %2298 = vmatprep.subr.mxu0 0.0
    %2299 = vmatpush1.msra.mxu0 0.0
    %2300 = vmatprep.subr.mxu0 0.0
    %2301 = vmatpush1.msra.mxu0 0.0
    %2302 = vmatprep.subr.mxu0 0.0
    %2303 = vmatpush1.msra.mxu0 0.0
    %2304 = vmatprep.mubr.f32.mxu0 0.0
    %2305 = vmatmul.mubr.f32.gmra.mrb[0].mxu0 %v2017
    %v2306 = vpop.f32.mrb[0].mxu0
    %v2307 = vadd.f32 0.0, %v2306
    %v2308 = vpop.f32.mrb[0].mxu0
    %2309 = vdwg.mxu0
    %v2310 = vadd.f32 %v236, %v2307
    %v2311 = vxor.u32 %v2310, 2147483648
    %v2312 = vmul.f32 %v2311, 1.442695
    %v2313 = vpow.pop %v2312
    %v2314 = vadd.f32 %v2313, 1.0
    %v2315 = vrcp.pop %v2314
    %v2316 = vmul.f32 1.0, %v2315
    %2317 = vmatprep.subr.mxu0 0.0
    %2318 = vmatpush1.msra.mxu0 %v518
    %2319 = vmatprep.subr.mxu0 0.0
    %2320 = vmatpush1.msra.mxu0 %v519
    %2321 = vmatprep.subr.mxu0 0.0
    %2322 = vmatpush1.msra.mxu0 %v520
    %2323 = vmatprep.subr.mxu0 0.0
    %2324 = vmatpush1.msra.mxu0 %v521
    %2325 = vmatprep.subr.mxu0 0.0
    %2326 = vmatpush1.msra.mxu0 0.0
    %2327 = vmatprep.subr.mxu0 0.0
    %2328 = vmatpush1.msra.mxu0 0.0
    %2329 = vmatprep.subr.mxu0 0.0
    %2330 = vmatpush1.msra.mxu0 0.0
    %2331 = vmatprep.subr.mxu0 0.0
    %2332 = vmatpush1.msra.mxu0 0.0
    %2333 = vmatprep.subr.mxu0 0.0
    %2334 = vmatpush1.msra.mxu0 0.0
    %2335 = vmatprep.subr.mxu0 0.0
    %2336 = vmatpush1.msra.mxu0 0.0
    %2337 = vmatprep.subr.mxu0 0.0
    %2338 = vmatpush1.msra.mxu0 0.0
    %2339 = vmatprep.subr.mxu0 0.0
    %2340 = vmatpush1.msra.mxu0 0.0
    %2341 = vmatprep.subr.mxu0 0.0
    %2342 = vmatpush1.msra.mxu0 0.0
    %2343 = vmatprep.subr.mxu0 0.0
    %2344 = vmatpush1.msra.mxu0 0.0
    %2345 = vmatprep.subr.mxu0 0.0
    %2346 = vmatpush1.msra.mxu0 0.0
    %2347 = vmatprep.subr.mxu0 0.0
    %2348 = vmatpush1.msra.mxu0 0.0
    %2349 = vmatprep.subr.mxu0 0.0
    %2350 = vmatpush1.msra.mxu0 0.0
    %2351 = vmatprep.subr.mxu0 0.0
    %2352 = vmatpush1.msra.mxu0 0.0
    %2353 = vmatprep.subr.mxu0 0.0
    %2354 = vmatpush1.msra.mxu0 0.0
    %2355 = vmatprep.subr.mxu0 0.0
    %2356 = vmatpush1.msra.mxu0 0.0
    %2357 = vmatprep.subr.mxu0 0.0
    %2358 = vmatpush1.msra.mxu0 0.0
    %2359 = vmatprep.subr.mxu0 0.0
    %2360 = vmatpush1.msra.mxu0 0.0
    %2361 = vmatprep.subr.mxu0 0.0
    %2362 = vmatpush1.msra.mxu0 0.0
    %2363 = vmatprep.subr.mxu0 0.0
    %2364 = vmatpush1.msra.mxu0 0.0
    %2365 = vmatprep.subr.mxu0 0.0
    %2366 = vmatpush1.msra.mxu0 0.0
    %2367 = vmatprep.subr.mxu0 0.0
    %2368 = vmatpush1.msra.mxu0 0.0
    %2369 = vmatprep.subr.mxu0 0.0
    %2370 = vmatpush1.msra.mxu0 0.0
    %2371 = vmatprep.subr.mxu0 0.0
    %2372 = vmatpush1.msra.mxu0 0.0
    %2373 = vmatprep.subr.mxu0 0.0
    %2374 = vmatpush1.msra.mxu0 0.0
    %2375 = vmatprep.subr.mxu0 0.0
    %2376 = vmatpush1.msra.mxu0 0.0
    %2377 = vmatprep.subr.mxu0 0.0
    %2378 = vmatpush1.msra.mxu0 0.0
    %2379 = vmatprep.subr.mxu0 0.0
    %2380 = vmatpush1.msra.mxu0 0.0
    %2381 = vmatprep.mubr.f32.mxu0 0.0
    %2382 = vmatmul.mubr.f32.gmra.mrb[0].mxu0 %v2017
    %v2383 = vpop.f32.mrb[0].mxu0
    %v2384 = vadd.f32 0.0, %v2383
    %v2385 = vpop.f32.mrb[0].mxu0
    %2386 = vdwg.mxu0
    %v2387 = vadd.f32 %v366, %v2384
    %v2388 = vxor.u32 %v2387, 2147483648
    %v2389 = vmul.f32 %v2388, 1.442695
    %v2390 = vpow.pop %v2389
    %v2391 = vadd.f32 %v2390, 1.0
    %v2392 = vrcp.pop %v2391
    %v2393 = vmul.f32 1.0, %v2392
    %2394 = vmatprep.subr.mxu0 0.0
    %2395 = vmatpush1.msra.mxu0 %v522
    %2396 = vmatprep.subr.mxu0 0.0
    %2397 = vmatpush1.msra.mxu0 %v523
    %2398 = vmatprep.subr.mxu0 0.0
    %2399 = vmatpush1.msra.mxu0 %v524
    %2400 = vmatprep.subr.mxu0 0.0
    %2401 = vmatpush1.msra.mxu0 %v525
    %2402 = vmatprep.subr.mxu0 0.0
    %2403 = vmatpush1.msra.mxu0 0.0
    %2404 = vmatprep.subr.mxu0 0.0
    %2405 = vmatpush1.msra.mxu0 0.0
    %2406 = vmatprep.subr.mxu0 0.0
    %2407 = vmatpush1.msra.mxu0 0.0
    %2408 = vmatprep.subr.mxu0 0.0
    %2409 = vmatpush1.msra.mxu0 0.0
    %2410 = vmatprep.subr.mxu0 0.0
    %2411 = vmatpush1.msra.mxu0 0.0
    %2412 = vmatprep.subr.mxu0 0.0
    %2413 = vmatpush1.msra.mxu0 0.0
    %2414 = vmatprep.subr.mxu0 0.0
    %2415 = vmatpush1.msra.mxu0 0.0
    %2416 = vmatprep.subr.mxu0 0.0
    %2417 = vmatpush1.msra.mxu0 0.0
    %2418 = vmatprep.subr.mxu0 0.0
    %2419 = vmatpush1.msra.mxu0 0.0
    %2420 = vmatprep.subr.mxu0 0.0
    %2421 = vmatpush1.msra.mxu0 0.0
    %2422 = vmatprep.subr.mxu0 0.0
    %2423 = vmatpush1.msra.mxu0 0.0
    %2424 = vmatprep.subr.mxu0 0.0
    %2425 = vmatpush1.msra.mxu0 0.0
    %2426 = vmatprep.subr.mxu0 0.0
    %2427 = vmatpush1.msra.mxu0 0.0
    %2428 = vmatprep.subr.mxu0 0.0
    %2429 = vmatpush1.msra.mxu0 0.0
    %2430 = vmatprep.subr.mxu0 0.0
    %2431 = vmatpush1.msra.mxu0 0.0
    %2432 = vmatprep.subr.mxu0 0.0
    %2433 = vmatpush1.msra.mxu0 0.0
    %2434 = vmatprep.subr.mxu0 0.0
    %2435 = vmatpush1.msra.mxu0 0.0
    %2436 = vmatprep.subr.mxu0 0.0
    %2437 = vmatpush1.msra.mxu0 0.0
    %2438 = vmatprep.subr.mxu0 0.0
    %2439 = vmatpush1.msra.mxu0 0.0
    %2440 = vmatprep.subr.mxu0 0.0
    %2441 = vmatpush1.msra.mxu0 0.0
    %2442 = vmatprep.subr.mxu0 0.0
    %2443 = vmatpush1.msra.mxu0 0.0
    %2444 = vmatprep.subr.mxu0 0.0
    %2445 = vmatpush1.msra.mxu0 0.0
    %2446 = vmatprep.subr.mxu0 0.0
    %2447 = vmatpush1.msra.mxu0 0.0
    %2448 = vmatprep.subr.mxu0 0.0
    %2449 = vmatpush1.msra.mxu0 0.0
    %2450 = vmatprep.subr.mxu0 0.0
    %2451 = vmatpush1.msra.mxu0 0.0
    %2452 = vmatprep.subr.mxu0 0.0
    %2453 = vmatpush1.msra.mxu0 0.0
    %2454 = vmatprep.subr.mxu0 0.0
    %2455 = vmatpush1.msra.mxu0 0.0
    %2456 = vmatprep.subr.mxu0 0.0
    %2457 = vmatpush1.msra.mxu0 0.0
    %2458 = vmatprep.mubr.f32.mxu0 0.0
    %2459 = vmatmul.mubr.f32.gmra.mrb[0].mxu0 %v2017
    %v2460 = vpop.f32.mrb[0].mxu0
    %v2461 = vadd.f32 %v644, %v2460
    %v2462 = vpop.f32.mrb[0].mxu0
    %2463 = vdwg.mxu0
    %v2464 = vmul.f32 %v2316, %v2461
    %v2465 = vadd.f32 %v496, %v2464
    %v2466 = vtanh.pop %v2465
    %v2467 = vsub.f32 1.0, %v2393
    %v2468 = vmul.f32 %v2467, %v2466
    %v2469 = vmul.f32 %v2393, %v2015
    %v2470 = vadd.f32 %v2468, %v2469
    %v2472 = vsel %vm130, %v2470, 0
    %2474 = vmatprep.subr.mxu0 0.0
    %2475 = vmatpush1.msra.mxu0 %v527
    %2476 = vmatprep.subr.mxu0 0.0
    %2477 = vmatpush1.msra.mxu0 %v528
    %2478 = vmatprep.subr.mxu0 0.0
    %2479 = vmatpush1.msra.mxu0 %v529
    %2480 = vmatprep.subr.mxu0 0.0
    %2481 = vmatpush1.msra.mxu0 %v530
    %2482 = vmatprep.subr.mxu0 0.0
    %2483 = vmatpush1.msra.mxu0 0.0
    %2484 = vmatprep.subr.mxu0 0.0
    %2485 = vmatpush1.msra.mxu0 0.0
    %2486 = vmatprep.subr.mxu0 0.0
    %2487 = vmatpush1.msra.mxu0 0.0
    %2488 = vmatprep.subr.mxu0 0.0
    %2489 = vmatpush1.msra.mxu0 0.0
    %2490 = vmatprep.subr.mxu0 0.0
    %2491 = vmatpush1.msra.mxu0 0.0
    %2492 = vmatprep.subr.mxu0 0.0
    %2493 = vmatpush1.msra.mxu0 0.0
    %2494 = vmatprep.subr.mxu0 0.0
    %2495 = vmatpush1.msra.mxu0 0.0
    %2496 = vmatprep.subr.mxu0 0.0
    %2497 = vmatpush1.msra.mxu0 0.0
    %2498 = vmatprep.subr.mxu0 0.0
    %2499 = vmatpush1.msra.mxu0 0.0
    %2500 = vmatprep.subr.mxu0 0.0
    %2501 = vmatpush1.msra.mxu0 0.0
    %2502 = vmatprep.subr.mxu0 0.0
    %2503 = vmatpush1.msra.mxu0 0.0
    %2504 = vmatprep.subr.mxu0 0.0
    %2505 = vmatpush1.msra.mxu0 0.0
    %2506 = vmatprep.subr.mxu0 0.0
    %2507 = vmatpush1.msra.mxu0 0.0
    %2508 = vmatprep.subr.mxu0 0.0
    %2509 = vmatpush1.msra.mxu0 0.0
    %2510 = vmatprep.subr.mxu0 0.0
    %2511 = vmatpush1.msra.mxu0 0.0
    %2512 = vmatprep.subr.mxu0 0.0
    %2513 = vmatpush1.msra.mxu0 0.0
    %2514 = vmatprep.subr.mxu0 0.0
    %2515 = vmatpush1.msra.mxu0 0.0
    %2516 = vmatprep.subr.mxu0 0.0
    %2517 = vmatpush1.msra.mxu0 0.0
    %2518 = vmatprep.subr.mxu0 0.0
    %2519 = vmatpush1.msra.mxu0 0.0
    %2520 = vmatprep.subr.mxu0 0.0
    %2521 = vmatpush1.msra.mxu0 0.0
    %2522 = vmatprep.subr.mxu0 0.0
    %2523 = vmatpush1.msra.mxu0 0.0
    %2524 = vmatprep.subr.mxu0 0.0
    %2525 = vmatpush1.msra.mxu0 0.0
    %2526 = vmatprep.subr.mxu0 0.0
    %2527 = vmatpush1.msra.mxu0 0.0
    %2528 = vmatprep.subr.mxu0 0.0
    %2529 = vmatpush1.msra.mxu0 0.0
    %2530 = vmatprep.subr.mxu0 0.0
    %2531 = vmatpush1.msra.mxu0 0.0
    %2532 = vmatprep.subr.mxu0 0.0
    %2533 = vmatpush1.msra.mxu0 0.0
    %2534 = vmatprep.subr.mxu0 0.0
    %2535 = vmatpush1.msra.mxu0 0.0
    %2536 = vmatprep.subr.mxu0 0.0
    %2537 = vmatpush1.msra.mxu0 0.0
    %2538 = vmatprep.mubr.f32.mxu0 0.0
    %2539 = vmatmul.mubr.f32.gmra.mrb[0].mxu0 %v2472
    %v2540 = vpop.f32.mrb[0].mxu0
    %v2541 = vadd.f32 %v625, %v2540
    %v2542 = vpop.f32.mrb[0].mxu0
    %2543 = vdwg.mxu0
    %v2544 = vtanh.pop %v2541
    %s2545 = scalar_lea.vmem %s2, 8
    %v2546 = vld [vmem:[%s2545] sm:$0x3]
    %2548 = vset.pattern.permute.xlu0 0
    %2549 = vperm.xlu0 %2548, %v2546
    %v2550 = vpop.permute.xlu0 %2549
    %v2553 = vsel %vm731, %v2544, 0
    %2555 = vmatprep.subr.mxu0 0.0
    %2556 = vmatpush1.msra.mxu0 %v531
    %2557 = vmatprep.subr.mxu0 0.0
    %2558 = vmatpush1.msra.mxu0 %v532
    %2559 = vmatprep.subr.mxu0 0.0
    %2560 = vmatpush1.msra.mxu0 %v533
    %2561 = vmatprep.subr.mxu0 0.0
    %2562 = vmatpush1.msra.mxu0 %v534
    %2563 = vmatprep.subr.mxu0 0.0
    %2564 = vmatpush1.msra.mxu0 %v535
    %2565 = vmatprep.subr.mxu0 0.0
    %2566 = vmatpush1.msra.mxu0 %v536
    %2567 = vmatprep.subr.mxu0 0.0
    %2568 = vmatpush1.msra.mxu0 %v537
    %2569 = vmatprep.subr.mxu0 0.0
    %2570 = vmatpush1.msra.mxu0 %v538
    %2571 = vmatprep.subr.mxu0 0.0
    %2572 = vmatpush1.msra.mxu0 0.0
    %2573 = vmatprep.subr.mxu0 0.0
    %2574 = vmatpush1.msra.mxu0 0.0
    %2575 = vmatprep.subr.mxu0 0.0
    %2576 = vmatpush1.msra.mxu0 0.0
    %2577 = vmatprep.subr.mxu0 0.0
    %2578 = vmatpush1.msra.mxu0 0.0
    %2579 = vmatprep.subr.mxu0 0.0
    %2580 = vmatpush1.msra.mxu0 0.0
    %2581 = vmatprep.subr.mxu0 0.0
    %2582 = vmatpush1.msra.mxu0 0.0
    %2583 = vmatprep.subr.mxu0 0.0
    %2584 = vmatpush1.msra.mxu0 0.0
    %2585 = vmatprep.subr.mxu0 0.0
    %2586 = vmatpush1.msra.mxu0 0.0
    %2587 = vmatprep.subr.mxu0 0.0
    %2588 = vmatpush1.msra.mxu0 0.0
    %2589 = vmatprep.subr.mxu0 0.0
    %2590 = vmatpush1.msra.mxu0 0.0
    %2591 = vmatprep.subr.mxu0 0.0
    %2592 = vmatpush1.msra.mxu0 0.0
    %2593 = vmatprep.subr.mxu0 0.0
    %2594 = vmatpush1.msra.mxu0 0.0
    %2595 = vmatprep.subr.mxu0 0.0
    %2596 = vmatpush1.msra.mxu0 0.0
    %2597 = vmatprep.subr.mxu0 0.0
    %2598 = vmatpush1.msra.mxu0 0.0
    %2599 = vmatprep.subr.mxu0 0.0
    %2600 = vmatpush1.msra.mxu0 0.0
    %2601 = vmatprep.subr.mxu0 0.0
    %2602 = vmatpush1.msra.mxu0 0.0
    %2603 = vmatprep.subr.mxu0 0.0
    %2604 = vmatpush1.msra.mxu0 0.0
    %2605 = vmatprep.subr.mxu0 0.0
    %2606 = vmatpush1.msra.mxu0 0.0
    %2607 = vmatprep.subr.mxu0 0.0
    %2608 = vmatpush1.msra.mxu0 0.0
    %2609 = vmatprep.subr.mxu0 0.0
    %2610 = vmatpush1.msra.mxu0 0.0
    %2611 = vmatprep.subr.mxu0 0.0
    %2612 = vmatpush1.msra.mxu0 0.0
    %2613 = vmatprep.subr.mxu0 0.0
    %2614 = vmatpush1.msra.mxu0 0.0
    %2615 = vmatprep.subr.mxu0 0.0
    %2616 = vmatpush1.msra.mxu0 0.0
    %2617 = vmatprep.subr.mxu0 0.0
    %2618 = vmatpush1.msra.mxu0 0.0
    %2619 = vmatprep.mubr.f32.mxu0 0.0
    %2620 = vmatmul.mubr.f32.gmra.mrb[0].mxu0 %v2553
    %v2621 = vpop.f32.mrb[0].mxu0
    %v2622 = vadd.f32 %v2550, %v2621
    %v2623 = vpop.f32.mrb[0].mxu0
    %2624 = vdwg.mxu0
    %2625 = vmatprep.subr.mxu0 0.0
    %2626 = vmatpush1.msra.mxu0 %v539
    %2627 = vmatprep.subr.mxu0 0.0
    %2628 = vmatpush1.msra.mxu0 %v540
    %2629 = vmatprep.subr.mxu0 0.0
    %2630 = vmatpush1.msra.mxu0 %v541
    %2631 = vmatprep.subr.mxu0 0.0
    %2632 = vmatpush1.msra.mxu0 %v542
    %2633 = vmatprep.subr.mxu0 0.0
    %2634 = vmatpush1.msra.mxu0 0.0
    %2635 = vmatprep.subr.mxu0 0.0
    %2636 = vmatpush1.msra.mxu0 0.0
    %2637 = vmatprep.subr.mxu0 0.0
    %2638 = vmatpush1.msra.mxu0 0.0
    %2639 = vmatprep.subr.mxu0 0.0
    %2640 = vmatpush1.msra.mxu0 0.0
    %2641 = vmatprep.subr.mxu0 0.0
    %2642 = vmatpush1.msra.mxu0 0.0
    %2643 = vmatprep.subr.mxu0 0.0
    %2644 = vmatpush1.msra.mxu0 0.0
    %2645 = vmatprep.subr.mxu0 0.0
    %2646 = vmatpush1.msra.mxu0 0.0
    %2647 = vmatprep.subr.mxu0 0.0
    %2648 = vmatpush1.msra.mxu0 0.0
    %2649 = vmatprep.subr.mxu0 0.0
    %2650 = vmatpush1.msra.mxu0 0.0
    %2651 = vmatprep.subr.mxu0 0.0
    %2652 = vmatpush1.msra.mxu0 0.0
    %2653 = vmatprep.subr.mxu0 0.0
    %2654 = vmatpush1.msra.mxu0 0.0
    %2655 = vmatprep.subr.mxu0 0.0
    %2656 = vmatpush1.msra.mxu0 0.0
    %2657 = vmatprep.subr.mxu0 0.0
    %2658 = vmatpush1.msra.mxu0 0.0
    %2659 = vmatprep.subr.mxu0 0.0
    %2660 = vmatpush1.msra.mxu0 0.0
    %2661 = vmatprep.subr.mxu0 0.0
    %2662 = vmatpush1.msra.mxu0 0.0
    %2663 = vmatprep.subr.mxu0 0.0
    %2664 = vmatpush1.msra.mxu0 0.0
    %2665 = vmatprep.subr.mxu0 0.0
    %2666 = vmatpush1.msra.mxu0 0.0
    %2667 = vmatprep.subr.mxu0 0.0
    %2668 = vmatpush1.msra.mxu0 0.0
    %2669 = vmatprep.subr.mxu0 0.0
    %2670 = vmatpush1.msra.mxu0 0.0
    %2671 = vmatprep.subr.mxu0 0.0
    %2672 = vmatpush1.msra.mxu0 0.0
    %2673 = vmatprep.subr.mxu0 0.0
    %2674 = vmatpush1.msra.mxu0 0.0
    %2675 = vmatprep.subr.mxu0 0.0
    %2676 = vmatpush1.msra.mxu0 0.0
    %2677 = vmatprep.subr.mxu0 0.0
    %2678 = vmatpush1.msra.mxu0 0.0
    %2679 = vmatprep.subr.mxu0 0.0
    %2680 = vmatpush1.msra.mxu0 0.0
    %2681 = vmatprep.subr.mxu0 0.0
    %2682 = vmatpush1.msra.mxu0 0.0
    %2683 = vmatprep.subr.mxu0 0.0
    %2684 = vmatpush1.msra.mxu0 0.0
    %2685 = vmatprep.subr.mxu0 0.0
    %2686 = vmatpush1.msra.mxu0 0.0
    %2687 = vmatprep.subr.mxu0 0.0
    %2688 = vmatpush1.msra.mxu0 0.0
    %2689 = vmatprep.mubr.f32.mxu0 0.0
    %2690 = vmatmul.mubr.f32.gmra.mrb[0].mxu0 %v2472
    %v2691 = vpop.f32.mrb[0].mxu0
    %v2692 = vadd.f32 0.0, %v2691
    %v2693 = vpop.f32.mrb[0].mxu0
    %2694 = vdwg.mxu0
    %2695 = vmatprep.subr.mxu0 0.0
    %2696 = vmatpush1.msra.mxu0 %v514
    %2697 = vmatprep.subr.mxu0 0.0
    %2698 = vmatpush1.msra.mxu0 %v515
    %2699 = vmatprep.subr.mxu0 0.0
    %2700 = vmatpush1.msra.mxu0 %v516
    %2701 = vmatprep.subr.mxu0 0.0
    %2702 = vmatpush1.msra.mxu0 %v517
    %2703 = vmatprep.subr.mxu0 0.0
    %2704 = vmatpush1.msra.mxu0 0.0
    %2705 = vmatprep.subr.mxu0 0.0
    %2706 = vmatpush1.msra.mxu0 0.0
    %2707 = vmatprep.subr.mxu0 0.0
    %2708 = vmatpush1.msra.mxu0 0.0
    %2709 = vmatprep.subr.mxu0 0.0
    %2710 = vmatpush1.msra.mxu0 0.0
    %2711 = vmatprep.subr.mxu0 0.0
    %2712 = vmatpush1.msra.mxu0 0.0
    %2713 = vmatprep.subr.mxu0 0.0
    %2714 = vmatpush1.msra.mxu0 0.0
    %2715 = vmatprep.subr.mxu0 0.0
    %2716 = vmatpush1.msra.mxu0 0.0
    %2717 = vmatprep.subr.mxu0 0.0
    %2718 = vmatpush1.msra.mxu0 0.0
    %2719 = vmatprep.subr.mxu0 0.0
    %2720 = vmatpush1.msra.mxu0 0.0
    %2721 = vmatprep.subr.mxu0 0.0
    %2722 = vmatpush1.msra.mxu0 0.0
    %2723 = vmatprep.subr.mxu0 0.0
    %2724 = vmatpush1.msra.mxu0 0.0
    %2725 = vmatprep.subr.mxu0 0.0
    %2726 = vmatpush1.msra.mxu0 0.0
    %2727 = vmatprep.subr.mxu0 0.0
    %2728 = vmatpush1.msra.mxu0 0.0
    %2729 = vmatprep.subr.mxu0 0.0
    %2730 = vmatpush1.msra.mxu0 0.0
    %2731 = vmatprep.subr.mxu0 0.0
    %2732 = vmatpush1.msra.mxu0 0.0
    %2733 = vmatprep.subr.mxu0 0.0
    %2734 = vmatpush1.msra.mxu0 0.0
    %2735 = vmatprep.subr.mxu0 0.0
    %2736 = vmatpush1.msra.mxu0 0.0
    %2737 = vmatprep.subr.mxu0 0.0
    %2738 = vmatpush1.msra.mxu0 0.0
    %2739 = vmatprep.subr.mxu0 0.0
    %2740 = vmatpush1.msra.mxu0 0.0
    %2741 = vmatprep.subr.mxu0 0.0
    %2742 = vmatpush1.msra.mxu0 0.0
    %2743 = vmatprep.subr.mxu0 0.0
    %2744 = vmatpush1.msra.mxu0 0.0
    %2745 = vmatprep.subr.mxu0 0.0
    %2746 = vmatpush1.msra.mxu0 0.0
    %2747 = vmatprep.subr.mxu0 0.0
    %2748 = vmatpush1.msra.mxu0 0.0
    %2749 = vmatprep.subr.mxu0 0.0
    %2750 = vmatpush1.msra.mxu0 0.0
    %2751 = vmatprep.subr.mxu0 0.0
    %2752 = vmatpush1.msra.mxu0 0.0
    %2753 = vmatprep.subr.mxu0 0.0
    %2754 = vmatpush1.msra.mxu0 0.0
    %2755 = vmatprep.subr.mxu0 0.0
    %2756 = vmatpush1.msra.mxu0 0.0
    %2757 = vmatprep.subr.mxu0 0.0
    %2758 = vmatpush1.msra.mxu0 0.0
    %2759 = vmatprep.mubr.f32.mxu0 0.0
    %2760 = vmatmul.mubr.f32.gmra.mrb[0].mxu0 %v2472
    %v2761 = vpop.f32.mrb[0].mxu0
    %v2762 = vadd.f32 0.0, %v2761
    %v2763 = vpop.f32.mrb[0].mxu0
    %2764 = vdwg.mxu0
    %v2765 = vadd.f32 %v244, %v2762
    %v2766 = vxor.u32 %v2765, 2147483648
    %v2767 = vmul.f32 %v2766, 1.442695
    %v2768 = vpow.pop %v2767
    %v2769 = vadd.f32 %v2768, 1.0
    %v2770 = vrcp.pop %v2769
    %v2771 = vmul.f32 1.0, %v2770
    %2772 = vmatprep.subr.mxu0 0.0
    %2773 = vmatpush1.msra.mxu0 %v518
    %2774 = vmatprep.subr.mxu0 0.0
    %2775 = vmatpush1.msra.mxu0 %v519
    %2776 = vmatprep.subr.mxu0 0.0
    %2777 = vmatpush1.msra.mxu0 %v520
    %2778 = vmatprep.subr.mxu0 0.0
    %2779 = vmatpush1.msra.mxu0 %v521
    %2780 = vmatprep.subr.mxu0 0.0
    %2781 = vmatpush1.msra.mxu0 0.0
    %2782 = vmatprep.subr.mxu0 0.0
    %2783 = vmatpush1.msra.mxu0 0.0
    %2784 = vmatprep.subr.mxu0 0.0
    %2785 = vmatpush1.msra.mxu0 0.0
    %2786 = vmatprep.subr.mxu0 0.0
    %2787 = vmatpush1.msra.mxu0 0.0
    %2788 = vmatprep.subr.mxu0 0.0
    %2789 = vmatpush1.msra.mxu0 0.0
    %2790 = vmatprep.subr.mxu0 0.0
    %2791 = vmatpush1.msra.mxu0 0.0
    %2792 = vmatprep.subr.mxu0 0.0
    %2793 = vmatpush1.msra.mxu0 0.0
    %2794 = vmatprep.subr.mxu0 0.0
    %2795 = vmatpush1.msra.mxu0 0.0
    %2796 = vmatprep.subr.mxu0 0.0
    %2797 = vmatpush1.msra.mxu0 0.0
    %2798 = vmatprep.subr.mxu0 0.0
    %2799 = vmatpush1.msra.mxu0 0.0
    %2800 = vmatprep.subr.mxu0 0.0
    %2801 = vmatpush1.msra.mxu0 0.0
    %2802 = vmatprep.subr.mxu0 0.0
    %2803 = vmatpush1.msra.mxu0 0.0
    %2804 = vmatprep.subr.mxu0 0.0
    %2805 = vmatpush1.msra.mxu0 0.0
    %2806 = vmatprep.subr.mxu0 0.0
    %2807 = vmatpush1.msra.mxu0 0.0
    %2808 = vmatprep.subr.mxu0 0.0
    %2809 = vmatpush1.msra.mxu0 0.0
    %2810 = vmatprep.subr.mxu0 0.0
    %2811 = vmatpush1.msra.mxu0 0.0
    %2812 = vmatprep.subr.mxu0 0.0
    %2813 = vmatpush1.msra.mxu0 0.0
    %2814 = vmatprep.subr.mxu0 0.0
    %2815 = vmatpush1.msra.mxu0 0.0
    %2816 = vmatprep.subr.mxu0 0.0
    %2817 = vmatpush1.msra.mxu0 0.0
    %2818 = vmatprep.subr.mxu0 0.0
    %2819 = vmatpush1.msra.mxu0 0.0
    %2820 = vmatprep.subr.mxu0 0.0
    %2821 = vmatpush1.msra.mxu0 0.0
    %2822 = vmatprep.subr.mxu0 0.0
    %2823 = vmatpush1.msra.mxu0 0.0
    %2824 = vmatprep.subr.mxu0 0.0
    %2825 = vmatpush1.msra.mxu0 0.0
    %2826 = vmatprep.subr.mxu0 0.0
    %2827 = vmatpush1.msra.mxu0 0.0
    %2828 = vmatprep.subr.mxu0 0.0
    %2829 = vmatpush1.msra.mxu0 0.0
    %2830 = vmatprep.subr.mxu0 0.0
    %2831 = vmatpush1.msra.mxu0 0.0
    %2832 = vmatprep.subr.mxu0 0.0
    %2833 = vmatpush1.msra.mxu0 0.0
    %2834 = vmatprep.subr.mxu0 0.0
    %2835 = vmatpush1.msra.mxu0 0.0
    %2836 = vmatprep.mubr.f32.mxu0 0.0
    %2837 = vmatmul.mubr.f32.gmra.mrb[0].mxu0 %v2472
    %v2838 = vpop.f32.mrb[0].mxu0
    %v2839 = vadd.f32 0.0, %v2838
    %v2840 = vpop.f32.mrb[0].mxu0
    %2841 = vdwg.mxu0
    %v2842 = vadd.f32 %v374, %v2839
    %v2843 = vxor.u32 %v2842, 2147483648
    %v2844 = vmul.f32 %v2843, 1.442695
    %v2845 = vpow.pop %v2844
    %v2846 = vadd.f32 %v2845, 1.0
    %v2847 = vrcp.pop %v2846
    %v2848 = vmul.f32 1.0, %v2847
    %2849 = vmatprep.subr.mxu0 0.0
    %2850 = vmatpush1.msra.mxu0 %v522
    %2851 = vmatprep.subr.mxu0 0.0
    %2852 = vmatpush1.msra.mxu0 %v523
    %2853 = vmatprep.subr.mxu0 0.0
    %2854 = vmatpush1.msra.mxu0 %v524
    %2855 = vmatprep.subr.mxu0 0.0
    %2856 = vmatpush1.msra.mxu0 %v525
    %2857 = vmatprep.subr.mxu0 0.0
    %2858 = vmatpush1.msra.mxu0 0.0
    %2859 = vmatprep.subr.mxu0 0.0
    %2860 = vmatpush1.msra.mxu0 0.0
    %2861 = vmatprep.subr.mxu0 0.0
    %2862 = vmatpush1.msra.mxu0 0.0
    %2863 = vmatprep.subr.mxu0 0.0
    %2864 = vmatpush1.msra.mxu0 0.0
    %2865 = vmatprep.subr.mxu0 0.0
    %2866 = vmatpush1.msra.mxu0 0.0
    %2867 = vmatprep.subr.mxu0 0.0
    %2868 = vmatpush1.msra.mxu0 0.0
    %2869 = vmatprep.subr.mxu0 0.0
    %2870 = vmatpush1.msra.mxu0 0.0
    %2871 = vmatprep.subr.mxu0 0.0
    %2872 = vmatpush1.msra.mxu0 0.0
    %2873 = vmatprep.subr.mxu0 0.0
    %2874 = vmatpush1.msra.mxu0 0.0
    %2875 = vmatprep.subr.mxu0 0.0
    %2876 = vmatpush1.msra.mxu0 0.0
    %2877 = vmatprep.subr.mxu0 0.0
    %2878 = vmatpush1.msra.mxu0 0.0
    %2879 = vmatprep.subr.mxu0 0.0
    %2880 = vmatpush1.msra.mxu0 0.0
    %2881 = vmatprep.subr.mxu0 0.0
    %2882 = vmatpush1.msra.mxu0 0.0
    %2883 = vmatprep.subr.mxu0 0.0
    %2884 = vmatpush1.msra.mxu0 0.0
    %2885 = vmatprep.subr.mxu0 0.0
    %2886 = vmatpush1.msra.mxu0 0.0
    %2887 = vmatprep.subr.mxu0 0.0
    %2888 = vmatpush1.msra.mxu0 0.0
    %2889 = vmatprep.subr.mxu0 0.0
    %2890 = vmatpush1.msra.mxu0 0.0
    %2891 = vmatprep.subr.mxu0 0.0
    %2892 = vmatpush1.msra.mxu0 0.0
    %2893 = vmatprep.subr.mxu0 0.0
    %2894 = vmatpush1.msra.mxu0 0.0
    %2895 = vmatprep.subr.mxu0 0.0
    %2896 = vmatpush1.msra.mxu0 0.0
    %2897 = vmatprep.subr.mxu0 0.0
    %2898 = vmatpush1.msra.mxu0 0.0
    %2899 = vmatprep.subr.mxu0 0.0
    %2900 = vmatpush1.msra.mxu0 0.0
    %2901 = vmatprep.subr.mxu0 0.0
    %2902 = vmatpush1.msra.mxu0 0.0
    %2903 = vmatprep.subr.mxu0 0.0
    %2904 = vmatpush1.msra.mxu0 0.0
    %2905 = vmatprep.subr.mxu0 0.0
    %2906 = vmatpush1.msra.mxu0 0.0
    %2907 = vmatprep.subr.mxu0 0.0
    %2908 = vmatpush1.msra.mxu0 0.0
    %2909 = vmatprep.subr.mxu0 0.0
    %2910 = vmatpush1.msra.mxu0 0.0
    %2911 = vmatprep.subr.mxu0 0.0
    %2912 = vmatpush1.msra.mxu0 0.0
    %2913 = vmatprep.mubr.f32.mxu0 0.0
    %2914 = vmatmul.mubr.f32.gmra.mrb[0].mxu0 %v2472
    %v2915 = vpop.f32.mrb[0].mxu0
    %v2916 = vadd.f32 %v644, %v2915
    %v2917 = vpop.f32.mrb[0].mxu0
    %2918 = vdwg.mxu0
    %v2919 = vmul.f32 %v2771, %v2916
    %v2920 = vadd.f32 %v504, %v2919
    %v2921 = vtanh.pop %v2920
    %v2922 = vsub.f32 1.0, %v2848
    %v2923 = vmul.f32 %v2922, %v2921
    %v2924 = vmul.f32 %v2848, %v2470
    %v2925 = vadd.f32 %v2923, %v2924
    %v2927 = vsel %vm130, %v2925, 0
    %2929 = vmatprep.subr.mxu0 0.0
    %2930 = vmatpush1.msra.mxu0 %v527
    %2931 = vmatprep.subr.mxu0 0.0
    %2932 = vmatpush1.msra.mxu0 %v528
    %2933 = vmatprep.subr.mxu0 0.0
    %2934 = vmatpush1.msra.mxu0 %v529
    %2935 = vmatprep.subr.mxu0 0.0
    %2936 = vmatpush1.msra.mxu0 %v530
    %2937 = vmatprep.subr.mxu0 0.0
    %2938 = vmatpush1.msra.mxu0 0.0
    %2939 = vmatprep.subr.mxu0 0.0
    %2940 = vmatpush1.msra.mxu0 0.0
    %2941 = vmatprep.subr.mxu0 0.0
    %2942 = vmatpush1.msra.mxu0 0.0
    %2943 = vmatprep.subr.mxu0 0.0
    %2944 = vmatpush1.msra.mxu0 0.0
    %2945 = vmatprep.subr.mxu0 0.0
    %2946 = vmatpush1.msra.mxu0 0.0
    %2947 = vmatprep.subr.mxu0 0.0
    %2948 = vmatpush1.msra.mxu0 0.0
    %2949 = vmatprep.subr.mxu0 0.0
    %2950 = vmatpush1.msra.mxu0 0.0
    %2951 = vmatprep.subr.mxu0 0.0
    %2952 = vmatpush1.msra.mxu0 0.0
    %2953 = vmatprep.subr.mxu0 0.0
    %2954 = vmatpush1.msra.mxu0 0.0
    %2955 = vmatprep.subr.mxu0 0.0
    %2956 = vmatpush1.msra.mxu0 0.0
    %2957 = vmatprep.subr.mxu0 0.0
    %2958 = vmatpush1.msra.mxu0 0.0
    %2959 = vmatprep.subr.mxu0 0.0
    %2960 = vmatpush1.msra.mxu0 0.0
    %2961 = vmatprep.subr.mxu0 0.0
    %2962 = vmatpush1.msra.mxu0 0.0
    %2963 = vmatprep.subr.mxu0 0.0
    %2964 = vmatpush1.msra.mxu0 0.0
    %2965 = vmatprep.subr.mxu0 0.0
    %2966 = vmatpush1.msra.mxu0 0.0
    %2967 = vmatprep.subr.mxu0 0.0
    %2968 = vmatpush1.msra.mxu0 0.0
    %2969 = vmatprep.subr.mxu0 0.0
    %2970 = vmatpush1.msra.mxu0 0.0
    %2971 = vmatprep.subr.mxu0 0.0
    %2972 = vmatpush1.msra.mxu0 0.0
    %2973 = vmatprep.subr.mxu0 0.0
    %2974 = vmatpush1.msra.mxu0 0.0
    %2975 = vmatprep.subr.mxu0 0.0
    %2976 = vmatpush1.msra.mxu0 0.0
    %2977 = vmatprep.subr.mxu0 0.0
    %2978 = vmatpush1.msra.mxu0 0.0
    %2979 = vmatprep.subr.mxu0 0.0
    %2980 = vmatpush1.msra.mxu0 0.0
    %2981 = vmatprep.subr.mxu0 0.0
    %2982 = vmatpush1.msra.mxu0 0.0
    %2983 = vmatprep.subr.mxu0 0.0
    %2984 = vmatpush1.msra.mxu0 0.0
    %2985 = vmatprep.subr.mxu0 0.0
    %2986 = vmatpush1.msra.mxu0 0.0
    %2987 = vmatprep.subr.mxu0 0.0
    %2988 = vmatpush1.msra.mxu0 0.0
    %2989 = vmatprep.subr.mxu0 0.0
    %2990 = vmatpush1.msra.mxu0 0.0
    %2991 = vmatprep.subr.mxu0 0.0
    %2992 = vmatpush1.msra.mxu0 0.0
    %2993 = vmatprep.mubr.f32.mxu0 0.0
    %2994 = vmatmul.mubr.f32.gmra.mrb[0].mxu0 %v2927
    %v2995 = vpop.f32.mrb[0].mxu0
    %v2996 = vadd.f32 %v625, %v2995
    %v2997 = vpop.f32.mrb[0].mxu0
    %2998 = vdwg.mxu0
    %v2999 = vtanh.pop %v2996
    %s3000 = scalar_lea.vmem %s2, 10
    %v3001 = vld [vmem:[%s3000] sm:$0x3]
    %3003 = vset.pattern.permute.xlu0 0
    %3004 = vperm.xlu0 %3003, %v3001
    %v3005 = vpop.permute.xlu0 %3004
    %v3008 = vsel %vm731, %v2999, 0
    %3010 = vmatprep.subr.mxu0 0.0
    %3011 = vmatpush1.msra.mxu0 %v531
    %3012 = vmatprep.subr.mxu0 0.0
    %3013 = vmatpush1.msra.mxu0 %v532
    %3014 = vmatprep.subr.mxu0 0.0
    %3015 = vmatpush1.msra.mxu0 %v533
    %3016 = vmatprep.subr.mxu0 0.0
    %3017 = vmatpush1.msra.mxu0 %v534
    %3018 = vmatprep.subr.mxu0 0.0
    %3019 = vmatpush1.msra.mxu0 %v535
    %3020 = vmatprep.subr.mxu0 0.0
    %3021 = vmatpush1.msra.mxu0 %v536
    %3022 = vmatprep.subr.mxu0 0.0
    %3023 = vmatpush1.msra.mxu0 %v537
    %3024 = vmatprep.subr.mxu0 0.0
    %3025 = vmatpush1.msra.mxu0 %v538
    %3026 = vmatprep.subr.mxu0 0.0
    %3027 = vmatpush1.msra.mxu0 0.0
    %3028 = vmatprep.subr.mxu0 0.0
    %3029 = vmatpush1.msra.mxu0 0.0
    %3030 = vmatprep.subr.mxu0 0.0
    %3031 = vmatpush1.msra.mxu0 0.0
    %3032 = vmatprep.subr.mxu0 0.0
    %3033 = vmatpush1.msra.mxu0 0.0
    %3034 = vmatprep.subr.mxu0 0.0
    %3035 = vmatpush1.msra.mxu0 0.0
    %3036 = vmatprep.subr.mxu0 0.0
    %3037 = vmatpush1.msra.mxu0 0.0
    %3038 = vmatprep.subr.mxu0 0.0
    %3039 = vmatpush1.msra.mxu0 0.0
    %3040 = vmatprep.subr.mxu0 0.0
    %3041 = vmatpush1.msra.mxu0 0.0
    %3042 = vmatprep.subr.mxu0 0.0
    %3043 = vmatpush1.msra.mxu0 0.0
    %3044 = vmatprep.subr.mxu0 0.0
    %3045 = vmatpush1.msra.mxu0 0.0
    %3046 = vmatprep.subr.mxu0 0.0
    %3047 = vmatpush1.msra.mxu0 0.0
    %3048 = vmatprep.subr.mxu0 0.0
    %3049 = vmatpush1.msra.mxu0 0.0
    %3050 = vmatprep.subr.mxu0 0.0
    %3051 = vmatpush1.msra.mxu0 0.0
    %3052 = vmatprep.subr.mxu0 0.0
    %3053 = vmatpush1.msra.mxu0 0.0
    %3054 = vmatprep.subr.mxu0 0.0
    %3055 = vmatpush1.msra.mxu0 0.0
    %3056 = vmatprep.subr.mxu0 0.0
    %3057 = vmatpush1.msra.mxu0 0.0
    %3058 = vmatprep.subr.mxu0 0.0
    %3059 = vmatpush1.msra.mxu0 0.0
    %3060 = vmatprep.subr.mxu0 0.0
    %3061 = vmatpush1.msra.mxu0 0.0
    %3062 = vmatprep.subr.mxu0 0.0
    %3063 = vmatpush1.msra.mxu0 0.0
    %3064 = vmatprep.subr.mxu0 0.0
    %3065 = vmatpush1.msra.mxu0 0.0
    %3066 = vmatprep.subr.mxu0 0.0
    %3067 = vmatpush1.msra.mxu0 0.0
    %3068 = vmatprep.subr.mxu0 0.0
    %3069 = vmatpush1.msra.mxu0 0.0
    %3070 = vmatprep.subr.mxu0 0.0
    %3071 = vmatpush1.msra.mxu0 0.0
    %3072 = vmatprep.subr.mxu0 0.0
    %3073 = vmatpush1.msra.mxu0 0.0
    %3074 = vmatprep.mubr.f32.mxu0 0.0
    %3075 = vmatmul.mubr.f32.gmra.mrb[0].mxu0 %v3008
    %v3076 = vpop.f32.mrb[0].mxu0
    %v3077 = vadd.f32 %v3005, %v3076
    %v3078 = vpop.f32.mrb[0].mxu0
    %3079 = vdwg.mxu0
    %3080 = vmatprep.subr.mxu0 0.0
    %3081 = vmatpush1.msra.mxu0 %v539
    %3082 = vmatprep.subr.mxu0 0.0
    %3083 = vmatpush1.msra.mxu0 %v540
    %3084 = vmatprep.subr.mxu0 0.0
    %3085 = vmatpush1.msra.mxu0 %v541
    %3086 = vmatprep.subr.mxu0 0.0
    %3087 = vmatpush1.msra.mxu0 %v542
    %3088 = vmatprep.subr.mxu0 0.0
    %3089 = vmatpush1.msra.mxu0 0.0
    %3090 = vmatprep.subr.mxu0 0.0
    %3091 = vmatpush1.msra.mxu0 0.0
    %3092 = vmatprep.subr.mxu0 0.0
    %3093 = vmatpush1.msra.mxu0 0.0
    %3094 = vmatprep.subr.mxu0 0.0
    %3095 = vmatpush1.msra.mxu0 0.0
    %3096 = vmatprep.subr.mxu0 0.0
    %3097 = vmatpush1.msra.mxu0 0.0
    %3098 = vmatprep.subr.mxu0 0.0
    %3099 = vmatpush1.msra.mxu0 0.0
    %3100 = vmatprep.subr.mxu0 0.0
    %3101 = vmatpush1.msra.mxu0 0.0
    %3102 = vmatprep.subr.mxu0 0.0
    %3103 = vmatpush1.msra.mxu0 0.0
    %3104 = vmatprep.subr.mxu0 0.0
    %3105 = vmatpush1.msra.mxu0 0.0
    %3106 = vmatprep.subr.mxu0 0.0
    %3107 = vmatpush1.msra.mxu0 0.0
    %3108 = vmatprep.subr.mxu0 0.0
    %3109 = vmatpush1.msra.mxu0 0.0
    %3110 = vmatprep.subr.mxu0 0.0
    %3111 = vmatpush1.msra.mxu0 0.0
    %3112 = vmatprep.subr.mxu0 0.0
    %3113 = vmatpush1.msra.mxu0 0.0
    %3114 = vmatprep.subr.mxu0 0.0
    %3115 = vmatpush1.msra.mxu0 0.0
    %3116 = vmatprep.subr.mxu0 0.0
    %3117 = vmatpush1.msra.mxu0 0.0
    %3118 = vmatprep.subr.mxu0 0.0
    %3119 = vmatpush1.msra.mxu0 0.0
    %3120 = vmatprep.subr.mxu0 0.0
    %3121 = vmatpush1.msra.mxu0 0.0
    %3122 = vmatprep.subr.mxu0 0.0
    %3123 = vmatpush1.msra.mxu0 0.0
    %3124 = vmatprep.subr.mxu0 0.0
    %3125 = vmatpush1.msra.mxu0 0.0
    %3126 = vmatprep.subr.mxu0 0.0
    %3127 = vmatpush1.msra.mxu0 0.0
    %3128 = vmatprep.subr.mxu0 0.0
    %3129 = vmatpush1.msra.mxu0 0.0
    %3130 = vmatprep.subr.mxu0 0.0
    %3131 = vmatpush1.msra.mxu0 0.0
    %3132 = vmatprep.subr.mxu0 0.0
    %3133 = vmatpush1.msra.mxu0 0.0
    %3134 = vmatprep.subr.mxu0 0.0
    %3135 = vmatpush1.msra.mxu0 0.0
    %3136 = vmatprep.subr.mxu0 0.0
    %3137 = vmatpush1.msra.mxu0 0.0
    %3138 = vmatprep.subr.mxu0 0.0
    %3139 = vmatpush1.msra.mxu0 0.0
    %3140 = vmatprep.subr.mxu0 0.0
    %3141 = vmatpush1.msra.mxu0 0.0
    %3142 = vmatprep.subr.mxu0 0.0
    %3143 = vmatpush1.msra.mxu0 0.0
    %3144 = vmatprep.mubr.f32.mxu0 0.0
    %3145 = vmatmul.mubr.f32.gmra.mrb[0].mxu0 %v2927
    %v3146 = vpop.f32.mrb[0].mxu0
    %v3147 = vadd.f32 0.0, %v3146
    %v3148 = vpop.f32.mrb[0].mxu0
    %3149 = vdwg.mxu0
    %3150 = vmatprep.subr.mxu0 0.0
    %3151 = vmatpush1.msra.mxu0 %v514
    %3152 = vmatprep.subr.mxu0 0.0
    %3153 = vmatpush1.msra.mxu0 %v515
    %3154 = vmatprep.subr.mxu0 0.0
    %3155 = vmatpush1.msra.mxu0 %v516
    %3156 = vmatprep.subr.mxu0 0.0
    %3157 = vmatpush1.msra.mxu0 %v517
    %3158 = vmatprep.subr.mxu0 0.0
    %3159 = vmatpush1.msra.mxu0 0.0
    %3160 = vmatprep.subr.mxu0 0.0
    %3161 = vmatpush1.msra.mxu0 0.0
    %3162 = vmatprep.subr.mxu0 0.0
    %3163 = vmatpush1.msra.mxu0 0.0
    %3164 = vmatprep.subr.mxu0 0.0
    %3165 = vmatpush1.msra.mxu0 0.0
    %3166 = vmatprep.subr.mxu0 0.0
    %3167 = vmatpush1.msra.mxu0 0.0
    %3168 = vmatprep.subr.mxu0 0.0
    %3169 = vmatpush1.msra.mxu0 0.0
    %3170 = vmatprep.subr.mxu0 0.0
    %3171 = vmatpush1.msra.mxu0 0.0
    %3172 = vmatprep.subr.mxu0 0.0
    %3173 = vmatpush1.msra.mxu0 0.0
    %3174 = vmatprep.subr.mxu0 0.0
    %3175 = vmatpush1.msra.mxu0 0.0
    %3176 = vmatprep.subr.mxu0 0.0
    %3177 = vmatpush1.msra.mxu0 0.0
    %3178 = vmatprep.subr.mxu0 0.0
    %3179 = vmatpush1.msra.mxu0 0.0
    %3180 = vmatprep.subr.mxu0 0.0
    %3181 = vmatpush1.msra.mxu0 0.0
    %3182 = vmatprep.subr.mxu0 0.0
    %3183 = vmatpush1.msra.mxu0 0.0
    %3184 = vmatprep.subr.mxu0 0.0
    %3185 = vmatpush1.msra.mxu0 0.0
    %3186 = vmatprep.subr.mxu0 0.0
    %3187 = vmatpush1.msra.mxu0 0.0
    %3188 = vmatprep.subr.mxu0 0.0
    %3189 = vmatpush1.msra.mxu0 0.0
    %3190 = vmatprep.subr.mxu0 0.0
    %3191 = vmatpush1.msra.mxu0 0.0
    %3192 = vmatprep.subr.mxu0 0.0
    %3193 = vmatpush1.msra.mxu0 0.0
    %3194 = vmatprep.subr.mxu0 0.0
    %3195 = vmatpush1.msra.mxu0 0.0
    %3196 = vmatprep.subr.mxu0 0.0
    %3197 = vmatpush1.msra.mxu0 0.0
    %3198 = vmatprep.subr.mxu0 0.0
    %3199 = vmatpush1.msra.mxu0 0.0
    %3200 = vmatprep.subr.mxu0 0.0
    %3201 = vmatpush1.msra.mxu0 0.0
    %3202 = vmatprep.subr.mxu0 0.0
    %3203 = vmatpush1.msra.mxu0 0.0
    %3204 = vmatprep.subr.mxu0 0.0
    %3205 = vmatpush1.msra.mxu0 0.0
    %3206 = vmatprep.subr.mxu0 0.0
    %3207 = vmatpush1.msra.mxu0 0.0
    %3208 = vmatprep.subr.mxu0 0.0
    %3209 = vmatpush1.msra.mxu0 0.0
    %3210 = vmatprep.subr.mxu0 0.0
    %3211 = vmatpush1.msra.mxu0 0.0
    %3212 = vmatprep.subr.mxu0 0.0
    %3213 = vmatpush1.msra.mxu0 0.0
    %3214 = vmatprep.mubr.f32.mxu0 0.0
    %3215 = vmatmul.mubr.f32.gmra.mrb[0].mxu0 %v2927
    %v3216 = vpop.f32.mrb[0].mxu0
    %v3217 = vadd.f32 0.0, %v3216
    %v3218 = vpop.f32.mrb[0].mxu0
    %3219 = vdwg.mxu0
    %v3220 = vadd.f32 %v243, %v3217
    %v3221 = vxor.u32 %v3220, 2147483648
    %v3222 = vmul.f32 %v3221, 1.442695
    %v3223 = vpow.pop %v3222
    %v3224 = vadd.f32 %v3223, 1.0
    %v3225 = vrcp.pop %v3224
    %v3226 = vmul.f32 1.0, %v3225
    %3227 = vmatprep.subr.mxu0 0.0
    %3228 = vmatpush1.msra.mxu0 %v518
    %3229 = vmatprep.subr.mxu0 0.0
    %3230 = vmatpush1.msra.mxu0 %v519
    %3231 = vmatprep.subr.mxu0 0.0
    %3232 = vmatpush1.msra.mxu0 %v520
    %3233 = vmatprep.subr.mxu0 0.0
    %3234 = vmatpush1.msra.mxu0 %v521
    %3235 = vmatprep.subr.mxu0 0.0
    %3236 = vmatpush1.msra.mxu0 0.0
    %3237 = vmatprep.subr.mxu0 0.0
    %3238 = vmatpush1.msra.mxu0 0.0
    %3239 = vmatprep.subr.mxu0 0.0
    %3240 = vmatpush1.msra.mxu0 0.0
    %3241 = vmatprep.subr.mxu0 0.0
    %3242 = vmatpush1.msra.mxu0 0.0
    %3243 = vmatprep.subr.mxu0 0.0
    %3244 = vmatpush1.msra.mxu0 0.0
    %3245 = vmatprep.subr.mxu0 0.0
    %3246 = vmatpush1.msra.mxu0 0.0
    %3247 = vmatprep.subr.mxu0 0.0
    %3248 = vmatpush1.msra.mxu0 0.0
    %3249 = vmatprep.subr.mxu0 0.0
    %3250 = vmatpush1.msra.mxu0 0.0
    %3251 = vmatprep.subr.mxu0 0.0
    %3252 = vmatpush1.msra.mxu0 0.0
    %3253 = vmatprep.subr.mxu0 0.0
    %3254 = vmatpush1.msra.mxu0 0.0
    %3255 = vmatprep.subr.mxu0 0.0
    %3256 = vmatpush1.msra.mxu0 0.0
    %3257 = vmatprep.subr.mxu0 0.0
    %3258 = vmatpush1.msra.mxu0 0.0
    %3259 = vmatprep.subr.mxu0 0.0
    %3260 = vmatpush1.msra.mxu0 0.0
    %3261 = vmatprep.subr.mxu0 0.0
    %3262 = vmatpush1.msra.mxu0 0.0
    %3263 = vmatprep.subr.mxu0 0.0
    %3264 = vmatpush1.msra.mxu0 0.0
    %3265 = vmatprep.subr.mxu0 0.0
    %3266 = vmatpush1.msra.mxu0 0.0
    %3267 = vmatprep.subr.mxu0 0.0
    %3268 = vmatpush1.msra.mxu0 0.0
    %3269 = vmatprep.subr.mxu0 0.0
    %3270 = vmatpush1.msra.mxu0 0.0
    %3271 = vmatprep.subr.mxu0 0.0
    %3272 = vmatpush1.msra.mxu0 0.0
    %3273 = vmatprep.subr.mxu0 0.0
    %3274 = vmatpush1.msra.mxu0 0.0
    %3275 = vmatprep.subr.mxu0 0.0
    %3276 = vmatpush1.msra.mxu0 0.0
    %3277 = vmatprep.subr.mxu0 0.0
    %3278 = vmatpush1.msra.mxu0 0.0
    %3279 = vmatprep.subr.mxu0 0.0
    %3280 = vmatpush1.msra.mxu0 0.0
    %3281 = vmatprep.subr.mxu0 0.0
    %3282 = vmatpush1.msra.mxu0 0.0
    %3283 = vmatprep.subr.mxu0 0.0
    %3284 = vmatpush1.msra.mxu0 0.0
    %3285 = vmatprep.subr.mxu0 0.0
    %3286 = vmatpush1.msra.mxu0 0.0
    %3287 = vmatprep.subr.mxu0 0.0
    %3288 = vmatpush1.msra.mxu0 0.0
    %3289 = vmatprep.subr.mxu0 0.0
    %3290 = vmatpush1.msra.mxu0 0.0
    %3291 = vmatprep.mubr.f32.mxu0 0.0
    %3292 = vmatmul.mubr.f32.gmra.mrb[0].mxu0 %v2927
    %v3293 = vpop.f32.mrb[0].mxu0
    %v3294 = vadd.f32 0.0, %v3293
    %v3295 = vpop.f32.mrb[0].mxu0
    %3296 = vdwg.mxu0
    %v3297 = vadd.f32 %v373, %v3294
    %v3298 = vxor.u32 %v3297, 2147483648
    %v3299 = vmul.f32 %v3298, 1.442695
    %v3300 = vpow.pop %v3299
    %v3301 = vadd.f32 %v3300, 1.0
    %v3302 = vrcp.pop %v3301
    %v3303 = vmul.f32 1.0, %v3302
    %3304 = vmatprep.subr.mxu0 0.0
    %3305 = vmatpush1.msra.mxu0 %v522
    %3306 = vmatprep.subr.mxu0 0.0
    %3307 = vmatpush1.msra.mxu0 %v523
    %3308 = vmatprep.subr.mxu0 0.0
    %3309 = vmatpush1.msra.mxu0 %v524
    %3310 = vmatprep.subr.mxu0 0.0
    %3311 = vmatpush1.msra.mxu0 %v525
    %3312 = vmatprep.subr.mxu0 0.0
    %3313 = vmatpush1.msra.mxu0 0.0
    %3314 = vmatprep.subr.mxu0 0.0
    %3315 = vmatpush1.msra.mxu0 0.0
    %3316 = vmatprep.subr.mxu0 0.0
    %3317 = vmatpush1.msra.mxu0 0.0
    %3318 = vmatprep.subr.mxu0 0.0
    %3319 = vmatpush1.msra.mxu0 0.0
    %3320 = vmatprep.subr.mxu0 0.0
    %3321 = vmatpush1.msra.mxu0 0.0
    %3322 = vmatprep.subr.mxu0 0.0
    %3323 = vmatpush1.msra.mxu0 0.0
    %3324 = vmatprep.subr.mxu0 0.0
    %3325 = vmatpush1.msra.mxu0 0.0
    %3326 = vmatprep.subr.mxu0 0.0
    %3327 = vmatpush1.msra.mxu0 0.0
    %3328 = vmatprep.subr.mxu0 0.0
    %3329 = vmatpush1.msra.mxu0 0.0
    %3330 = vmatprep.subr.mxu0 0.0
    %3331 = vmatpush1.msra.mxu0 0.0
    %3332 = vmatprep.subr.mxu0 0.0
    %3333 = vmatpush1.msra.mxu0 0.0
    %3334 = vmatprep.subr.mxu0 0.0
    %3335 = vmatpush1.msra.mxu0 0.0
    %3336 = vmatprep.subr.mxu0 0.0
    %3337 = vmatpush1.msra.mxu0 0.0
    %3338 = vmatprep.subr.mxu0 0.0
    %3339 = vmatpush1.msra.mxu0 0.0
    %3340 = vmatprep.subr.mxu0 0.0
    %3341 = vmatpush1.msra.mxu0 0.0
    %3342 = vmatprep.subr.mxu0 0.0
    %3343 = vmatpush1.msra.mxu0 0.0
    %3344 = vmatprep.subr.mxu0 0.0
    %3345 = vmatpush1.msra.mxu0 0.0
    %3346 = vmatprep.subr.mxu0 0.0
    %3347 = vmatpush1.msra.mxu0 0.0
    %3348 = vmatprep.subr.mxu0 0.0
    %3349 = vmatpush1.msra.mxu0 0.0
    %3350 = vmatprep.subr.mxu0 0.0
    %3351 = vmatpush1.msra.mxu0 0.0
    %3352 = vmatprep.subr.mxu0 0.0
    %3353 = vmatpush1.msra.mxu0 0.0
    %3354 = vmatprep.subr.mxu0 0.0
    %3355 = vmatpush1.msra.mxu0 0.0
    %3356 = vmatprep.subr.mxu0 0.0
    %3357 = vmatpush1.msra.mxu0 0.0
    %3358 = vmatprep.subr.mxu0 0.0
    %3359 = vmatpush1.msra.mxu0 0.0
    %3360 = vmatprep.subr.mxu0 0.0
    %3361 = vmatpush1.msra.mxu0 0.0
    %3362 = vmatprep.subr.mxu0 0.0
    %3363 = vmatpush1.msra.mxu0 0.0
    %3364 = vmatprep.subr.mxu0 0.0
    %3365 = vmatpush1.msra.mxu0 0.0
    %3366 = vmatprep.subr.mxu0 0.0
    %3367 = vmatpush1.msra.mxu0 0.0
    %3368 = vmatprep.mubr.f32.mxu0 0.0
    %3369 = vmatmul.mubr.f32.gmra.mrb[0].mxu0 %v2927
    %v3370 = vpop.f32.mrb[0].mxu0
    %v3371 = vadd.f32 %v644, %v3370
    %v3372 = vpop.f32.mrb[0].mxu0
    %3373 = vdwg.mxu0
    %v3374 = vmul.f32 %v3226, %v3371
    %v3375 = vadd.f32 %v503, %v3374
    %v3376 = vtanh.pop %v3375
    %v3377 = vsub.f32 1.0, %v3303
    %v3378 = vmul.f32 %v3377, %v3376
    %v3379 = vmul.f32 %v3303, %v2925
    %v3380 = vadd.f32 %v3378, %v3379
    %v3382 = vsel %vm130, %v3380, 0
    %3384 = vmatprep.subr.mxu0 0.0
    %3385 = vmatpush1.msra.mxu0 %v527
    %3386 = vmatprep.subr.mxu0 0.0
    %3387 = vmatpush1.msra.mxu0 %v528
    %3388 = vmatprep.subr.mxu0 0.0
    %3389 = vmatpush1.msra.mxu0 %v529
    %3390 = vmatprep.subr.mxu0 0.0
    %3391 = vmatpush1.msra.mxu0 %v530
    %3392 = vmatprep.subr.mxu0 0.0
    %3393 = vmatpush1.msra.mxu0 0.0
    %3394 = vmatprep.subr.mxu0 0.0
    %3395 = vmatpush1.msra.mxu0 0.0
    %3396 = vmatprep.subr.mxu0 0.0
    %3397 = vmatpush1.msra.mxu0 0.0
    %3398 = vmatprep.subr.mxu0 0.0
    %3399 = vmatpush1.msra.mxu0 0.0
    %3400 = vmatprep.subr.mxu0 0.0
    %3401 = vmatpush1.msra.mxu0 0.0
    %3402 = vmatprep.subr.mxu0 0.0
    %3403 = vmatpush1.msra.mxu0 0.0
    %3404 = vmatprep.subr.mxu0 0.0
    %3405 = vmatpush1.msra.mxu0 0.0
    %3406 = vmatprep.subr.mxu0 0.0
    %3407 = vmatpush1.msra.mxu0 0.0
    %3408 = vmatprep.subr.mxu0 0.0
    %3409 = vmatpush1.msra.mxu0 0.0
    %3410 = vmatprep.subr.mxu0 0.0
    %3411 = vmatpush1.msra.mxu0 0.0
    %3412 = vmatprep.subr.mxu0 0.0
    %3413 = vmatpush1.msra.mxu0 0.0
    %3414 = vmatprep.subr.mxu0 0.0
    %3415 = vmatpush1.msra.mxu0 0.0
    %3416 = vmatprep.subr.mxu0 0.0
    %3417 = vmatpush1.msra.mxu0 0.0
    %3418 = vmatprep.subr.mxu0 0.0
    %3419 = vmatpush1.msra.mxu0 0.0
    %3420 = vmatprep.subr.mxu0 0.0
    %3421 = vmatpush1.msra.mxu0 0.0
    %3422 = vmatprep.subr.mxu0 0.0
    %3423 = vmatpush1.msra.mxu0 0.0
    %3424 = vmatprep.subr.mxu0 0.0
    %3425 = vmatpush1.msra.mxu0 0.0
    %3426 = vmatprep.subr.mxu0 0.0
    %3427 = vmatpush1.msra.mxu0 0.0
    %3428 = vmatprep.subr.mxu0 0.0
    %3429 = vmatpush1.msra.mxu0 0.0
    %3430 = vmatprep.subr.mxu0 0.0
    %3431 = vmatpush1.msra.mxu0 0.0
    %3432 = vmatprep.subr.mxu0 0.0
    %3433 = vmatpush1.msra.mxu0 0.0
    %3434 = vmatprep.subr.mxu0 0.0
    %3435 = vmatpush1.msra.mxu0 0.0
    %3436 = vmatprep.subr.mxu0 0.0
    %3437 = vmatpush1.msra.mxu0 0.0
    %3438 = vmatprep.subr.mxu0 0.0
    %3439 = vmatpush1.msra.mxu0 0.0
    %3440 = vmatprep.subr.mxu0 0.0
    %3441 = vmatpush1.msra.mxu0 0.0
    %3442 = vmatprep.subr.mxu0 0.0
    %3443 = vmatpush1.msra.mxu0 0.0
    %3444 = vmatprep.subr.mxu0 0.0
    %3445 = vmatpush1.msra.mxu0 0.0
    %3446 = vmatprep.subr.mxu0 0.0
    %3447 = vmatpush1.msra.mxu0 0.0
    %3448 = vmatprep.mubr.f32.mxu0 0.0
    %3449 = vmatmul.mubr.f32.gmra.mrb[0].mxu0 %v3382
    %v3450 = vpop.f32.mrb[0].mxu0
    %v3451 = vadd.f32 %v625, %v3450
    %v3452 = vpop.f32.mrb[0].mxu0
    %3453 = vdwg.mxu0
    %v3454 = vtanh.pop %v3451
    %s3455 = scalar_lea.vmem %s2, 12
    %v3456 = vld [vmem:[%s3455] sm:$0x3]
    %3458 = vset.pattern.permute.xlu0 0
    %3459 = vperm.xlu0 %3458, %v3456
    %v3460 = vpop.permute.xlu0 %3459
    %v3463 = vsel %vm731, %v3454, 0
    %3465 = vmatprep.subr.mxu0 0.0
    %3466 = vmatpush1.msra.mxu0 %v531
    %3467 = vmatprep.subr.mxu0 0.0
    %3468 = vmatpush1.msra.mxu0 %v532
    %3469 = vmatprep.subr.mxu0 0.0
    %3470 = vmatpush1.msra.mxu0 %v533
    %3471 = vmatprep.subr.mxu0 0.0
    %3472 = vmatpush1.msra.mxu0 %v534
    %3473 = vmatprep.subr.mxu0 0.0
    %3474 = vmatpush1.msra.mxu0 %v535
    %3475 = vmatprep.subr.mxu0 0.0
    %3476 = vmatpush1.msra.mxu0 %v536
    %3477 = vmatprep.subr.mxu0 0.0
    %3478 = vmatpush1.msra.mxu0 %v537
    %3479 = vmatprep.subr.mxu0 0.0
    %3480 = vmatpush1.msra.mxu0 %v538
    %3481 = vmatprep.subr.mxu0 0.0
    %3482 = vmatpush1.msra.mxu0 0.0
    %3483 = vmatprep.subr.mxu0 0.0
    %3484 = vmatpush1.msra.mxu0 0.0
    %3485 = vmatprep.subr.mxu0 0.0
    %3486 = vmatpush1.msra.mxu0 0.0
    %3487 = vmatprep.subr.mxu0 0.0
    %3488 = vmatpush1.msra.mxu0 0.0
    %3489 = vmatprep.subr.mxu0 0.0
    %3490 = vmatpush1.msra.mxu0 0.0
    %3491 = vmatprep.subr.mxu0 0.0
    %3492 = vmatpush1.msra.mxu0 0.0
    %3493 = vmatprep.subr.mxu0 0.0
    %3494 = vmatpush1.msra.mxu0 0.0
    %3495 = vmatprep.subr.mxu0 0.0
    %3496 = vmatpush1.msra.mxu0 0.0
    %3497 = vmatprep.subr.mxu0 0.0
    %3498 = vmatpush1.msra.mxu0 0.0
    %3499 = vmatprep.subr.mxu0 0.0
    %3500 = vmatpush1.msra.mxu0 0.0
    %3501 = vmatprep.subr.mxu0 0.0
    %3502 = vmatpush1.msra.mxu0 0.0
    %3503 = vmatprep.subr.mxu0 0.0
    %3504 = vmatpush1.msra.mxu0 0.0
    %3505 = vmatprep.subr.mxu0 0.0
    %3506 = vmatpush1.msra.mxu0 0.0
    %3507 = vmatprep.subr.mxu0 0.0
    %3508 = vmatpush1.msra.mxu0 0.0
    %3509 = vmatprep.subr.mxu0 0.0
    %3510 = vmatpush1.msra.mxu0 0.0
    %3511 = vmatprep.subr.mxu0 0.0
    %3512 = vmatpush1.msra.mxu0 0.0
    %3513 = vmatprep.subr.mxu0 0.0
    %3514 = vmatpush1.msra.mxu0 0.0
    %3515 = vmatprep.subr.mxu0 0.0
    %3516 = vmatpush1.msra.mxu0 0.0
    %3517 = vmatprep.subr.mxu0 0.0
    %3518 = vmatpush1.msra.mxu0 0.0
    %3519 = vmatprep.subr.mxu0 0.0
    %3520 = vmatpush1.msra.mxu0 0.0
    %3521 = vmatprep.subr.mxu0 0.0
    %3522 = vmatpush1.msra.mxu0 0.0
    %3523 = vmatprep.subr.mxu0 0.0
    %3524 = vmatpush1.msra.mxu0 0.0
    %3525 = vmatprep.subr.mxu0 0.0
    %3526 = vmatpush1.msra.mxu0 0.0
    %3527 = vmatprep.subr.mxu0 0.0
    %3528 = vmatpush1.msra.mxu0 0.0
    %3529 = vmatprep.mubr.f32.mxu0 0.0
    %3530 = vmatmul.mubr.f32.gmra.mrb[0].mxu0 %v3463
    %v3531 = vpop.f32.mrb[0].mxu0
    %v3532 = vadd.f32 %v3460, %v3531
    %v3533 = vpop.f32.mrb[0].mxu0
    %3534 = vdwg.mxu0
    %3535 = vmatprep.subr.mxu0 0.0
    %3536 = vmatpush1.msra.mxu0 %v539
    %3537 = vmatprep.subr.mxu0 0.0
    %3538 = vmatpush1.msra.mxu0 %v540
    %3539 = vmatprep.subr.mxu0 0.0
    %3540 = vmatpush1.msra.mxu0 %v541
    %3541 = vmatprep.subr.mxu0 0.0
    %3542 = vmatpush1.msra.mxu0 %v542
    %3543 = vmatprep.subr.mxu0 0.0
    %3544 = vmatpush1.msra.mxu0 0.0
    %3545 = vmatprep.subr.mxu0 0.0
    %3546 = vmatpush1.msra.mxu0 0.0
    %3547 = vmatprep.subr.mxu0 0.0
    %3548 = vmatpush1.msra.mxu0 0.0
    %3549 = vmatprep.subr.mxu0 0.0
    %3550 = vmatpush1.msra.mxu0 0.0
    %3551 = vmatprep.subr.mxu0 0.0
    %3552 = vmatpush1.msra.mxu0 0.0
    %3553 = vmatprep.subr.mxu0 0.0
    %3554 = vmatpush1.msra.mxu0 0.0
    %3555 = vmatprep.subr.mxu0 0.0
    %3556 = vmatpush1.msra.mxu0 0.0
    %3557 = vmatprep.subr.mxu0 0.0
    %3558 = vmatpush1.msra.mxu0 0.0
    %3559 = vmatprep.subr.mxu0 0.0
    %3560 = vmatpush1.msra.mxu0 0.0
    %3561 = vmatprep.subr.mxu0 0.0
    %3562 = vmatpush1.msra.mxu0 0.0
    %3563 = vmatprep.subr.mxu0 0.0
    %3564 = vmatpush1.msra.mxu0 0.0
    %3565 = vmatprep.subr.mxu0 0.0
    %3566 = vmatpush1.msra.mxu0 0.0
    %3567 = vmatprep.subr.mxu0 0.0
    %3568 = vmatpush1.msra.mxu0 0.0
    %3569 = vmatprep.subr.mxu0 0.0
    %3570 = vmatpush1.msra.mxu0 0.0
    %3571 = vmatprep.subr.mxu0 0.0
    %3572 = vmatpush1.msra.mxu0 0.0
    %3573 = vmatprep.subr.mxu0 0.0
    %3574 = vmatpush1.msra.mxu0 0.0
    %3575 = vmatprep.subr.mxu0 0.0
    %3576 = vmatpush1.msra.mxu0 0.0
    %3577 = vmatprep.subr.mxu0 0.0
    %3578 = vmatpush1.msra.mxu0 0.0
    %3579 = vmatprep.subr.mxu0 0.0
    %3580 = vmatpush1.msra.mxu0 0.0
    %3581 = vmatprep.subr.mxu0 0.0
    %3582 = vmatpush1.msra.mxu0 0.0
    %3583 = vmatprep.subr.mxu0 0.0
    %3584 = vmatpush1.msra.mxu0 0.0
    %3585 = vmatprep.subr.mxu0 0.0
    %3586 = vmatpush1.msra.mxu0 0.0
    %3587 = vmatprep.subr.mxu0 0.0
    %3588 = vmatpush1.msra.mxu0 0.0
    %3589 = vmatprep.subr.mxu0 0.0
    %3590 = vmatpush1.msra.mxu0 0.0
    %3591 = vmatprep.subr.mxu0 0.0
    %3592 = vmatpush1.msra.mxu0 0.0
    %3593 = vmatprep.subr.mxu0 0.0
    %3594 = vmatpush1.msra.mxu0 0.0
    %3595 = vmatprep.subr.mxu0 0.0
    %3596 = vmatpush1.msra.mxu0 0.0
    %3597 = vmatprep.subr.mxu0 0.0
    %3598 = vmatpush1.msra.mxu0 0.0
    %3599 = vmatprep.mubr.f32.mxu0 0.0
    %3600 = vmatmul.mubr.f32.gmra.mrb[0].mxu0 %v3382
    %v3601 = vpop.f32.mrb[0].mxu0
    %v3602 = vadd.f32 0.0, %v3601
    %v3603 = vpop.f32.mrb[0].mxu0
    %3604 = vdwg.mxu0
    %3605 = vmatprep.subr.mxu0 0.0
    %3606 = vmatpush1.msra.mxu0 %v514
    %3607 = vmatprep.subr.mxu0 0.0
    %3608 = vmatpush1.msra.mxu0 %v515
    %3609 = vmatprep.subr.mxu0 0.0
    %3610 = vmatpush1.msra.mxu0 %v516
    %3611 = vmatprep.subr.mxu0 0.0
    %3612 = vmatpush1.msra.mxu0 %v517
    %3613 = vmatprep.subr.mxu0 0.0
    %3614 = vmatpush1.msra.mxu0 0.0
    %3615 = vmatprep.subr.mxu0 0.0
    %3616 = vmatpush1.msra.mxu0 0.0
    %3617 = vmatprep.subr.mxu0 0.0
    %3618 = vmatpush1.msra.mxu0 0.0
    %3619 = vmatprep.subr.mxu0 0.0
    %3620 = vmatpush1.msra.mxu0 0.0
    %3621 = vmatprep.subr.mxu0 0.0
    %3622 = vmatpush1.msra.mxu0 0.0
    %3623 = vmatprep.subr.mxu0 0.0
    %3624 = vmatpush1.msra.mxu0 0.0
    %3625 = vmatprep.subr.mxu0 0.0
    %3626 = vmatpush1.msra.mxu0 0.0
    %3627 = vmatprep.subr.mxu0 0.0
    %3628 = vmatpush1.msra.mxu0 0.0
    %3629 = vmatprep.subr.mxu0 0.0
    %3630 = vmatpush1.msra.mxu0 0.0
    %3631 = vmatprep.subr.mxu0 0.0
    %3632 = vmatpush1.msra.mxu0 0.0
    %3633 = vmatprep.subr.mxu0 0.0
    %3634 = vmatpush1.msra.mxu0 0.0
    %3635 = vmatprep.subr.mxu0 0.0
    %3636 = vmatpush1.msra.mxu0 0.0
    %3637 = vmatprep.subr.mxu0 0.0
    %3638 = vmatpush1.msra.mxu0 0.0
    %3639 = vmatprep.subr.mxu0 0.0
    %3640 = vmatpush1.msra.mxu0 0.0
    %3641 = vmatprep.subr.mxu0 0.0
    %3642 = vmatpush1.msra.mxu0 0.0
    %3643 = vmatprep.subr.mxu0 0.0
    %3644 = vmatpush1.msra.mxu0 0.0
    %3645 = vmatprep.subr.mxu0 0.0
    %3646 = vmatpush1.msra.mxu0 0.0
    %3647 = vmatprep.subr.mxu0 0.0
    %3648 = vmatpush1.msra.mxu0 0.0
    %3649 = vmatprep.subr.mxu0 0.0
    %3650 = vmatpush1.msra.mxu0 0.0
    %3651 = vmatprep.subr.mxu0 0.0
    %3652 = vmatpush1.msra.mxu0 0.0
    %3653 = vmatprep.subr.mxu0 0.0
    %3654 = vmatpush1.msra.mxu0 0.0
    %3655 = vmatprep.subr.mxu0 0.0
    %3656 = vmatpush1.msra.mxu0 0.0
    %3657 = vmatprep.subr.mxu0 0.0
    %3658 = vmatpush1.msra.mxu0 0.0
    %3659 = vmatprep.subr.mxu0 0.0
    %3660 = vmatpush1.msra.mxu0 0.0
    %3661 = vmatprep.subr.mxu0 0.0
    %3662 = vmatpush1.msra.mxu0 0.0
    %3663 = vmatprep.subr.mxu0 0.0
    %3664 = vmatpush1.msra.mxu0 0.0
    %3665 = vmatprep.subr.mxu0 0.0
    %3666 = vmatpush1.msra.mxu0 0.0
    %3667 = vmatprep.subr.mxu0 0.0
    %3668 = vmatpush1.msra.mxu0 0.0
    %3669 = vmatprep.mubr.f32.mxu0 0.0
    %3670 = vmatmul.mubr.f32.gmra.mrb[0].mxu0 %v3382
    %v3671 = vpop.f32.mrb[0].mxu0
    %v3672 = vadd.f32 0.0, %v3671
    %v3673 = vpop.f32.mrb[0].mxu0
    %3674 = vdwg.mxu0
    %v3675 = vadd.f32 %v245, %v3672
    %v3676 = vxor.u32 %v3675, 2147483648
    %v3677 = vmul.f32 %v3676, 1.442695
    %v3678 = vpow.pop %v3677
    %v3679 = vadd.f32 %v3678, 1.0
    %v3680 = vrcp.pop %v3679
    %v3681 = vmul.f32 1.0, %v3680
    %3682 = vmatprep.subr.mxu0 0.0
    %3683 = vmatpush1.msra.mxu0 %v518
    %3684 = vmatprep.subr.mxu0 0.0
    %3685 = vmatpush1.msra.mxu0 %v519
    %3686 = vmatprep.subr.mxu0 0.0
    %3687 = vmatpush1.msra.mxu0 %v520
    %3688 = vmatprep.subr.mxu0 0.0
    %3689 = vmatpush1.msra.mxu0 %v521
    %3690 = vmatprep.subr.mxu0 0.0
    %3691 = vmatpush1.msra.mxu0 0.0
    %3692 = vmatprep.subr.mxu0 0.0
    %3693 = vmatpush1.msra.mxu0 0.0
    %3694 = vmatprep.subr.mxu0 0.0
    %3695 = vmatpush1.msra.mxu0 0.0
    %3696 = vmatprep.subr.mxu0 0.0
    %3697 = vmatpush1.msra.mxu0 0.0
    %3698 = vmatprep.subr.mxu0 0.0
    %3699 = vmatpush1.msra.mxu0 0.0
    %3700 = vmatprep.subr.mxu0 0.0
    %3701 = vmatpush1.msra.mxu0 0.0
    %3702 = vmatprep.subr.mxu0 0.0
    %3703 = vmatpush1.msra.mxu0 0.0
    %3704 = vmatprep.subr.mxu0 0.0
    %3705 = vmatpush1.msra.mxu0 0.0
    %3706 = vmatprep.subr.mxu0 0.0
    %3707 = vmatpush1.msra.mxu0 0.0
    %3708 = vmatprep.subr.mxu0 0.0
    %3709 = vmatpush1.msra.mxu0 0.0
    %3710 = vmatprep.subr.mxu0 0.0
    %3711 = vmatpush1.msra.mxu0 0.0
    %3712 = vmatprep.subr.mxu0 0.0
    %3713 = vmatpush1.msra.mxu0 0.0
    %3714 = vmatprep.subr.mxu0 0.0
    %3715 = vmatpush1.msra.mxu0 0.0
    %3716 = vmatprep.subr.mxu0 0.0
    %3717 = vmatpush1.msra.mxu0 0.0
    %3718 = vmatprep.subr.mxu0 0.0
    %3719 = vmatpush1.msra.mxu0 0.0
    %3720 = vmatprep.subr.mxu0 0.0
    %3721 = vmatpush1.msra.mxu0 0.0
    %3722 = vmatprep.subr.mxu0 0.0
    %3723 = vmatpush1.msra.mxu0 0.0
    %3724 = vmatprep.subr.mxu0 0.0
    %3725 = vmatpush1.msra.mxu0 0.0
    %3726 = vmatprep.subr.mxu0 0.0
    %3727 = vmatpush1.msra.mxu0 0.0
    %3728 = vmatprep.subr.mxu0 0.0
    %3729 = vmatpush1.msra.mxu0 0.0
    %3730 = vmatprep.subr.mxu0 0.0
    %3731 = vmatpush1.msra.mxu0 0.0
    %3732 = vmatprep.subr.mxu0 0.0
    %3733 = vmatpush1.msra.mxu0 0.0
    %3734 = vmatprep.subr.mxu0 0.0
    %3735 = vmatpush1.msra.mxu0 0.0
    %3736 = vmatprep.subr.mxu0 0.0
    %3737 = vmatpush1.msra.mxu0 0.0
    %3738 = vmatprep.subr.mxu0 0.0
    %3739 = vmatpush1.msra.mxu0 0.0
    %3740 = vmatprep.subr.mxu0 0.0
    %3741 = vmatpush1.msra.mxu0 0.0
    %3742 = vmatprep.subr.mxu0 0.0
    %3743 = vmatpush1.msra.mxu0 0.0
    %3744 = vmatprep.subr.mxu0 0.0
    %3745 = vmatpush1.msra.mxu0 0.0
    %3746 = vmatprep.mubr.f32.mxu0 0.0
    %3747 = vmatmul.mubr.f32.gmra.mrb[0].mxu0 %v3382
    %v3748 = vpop.f32.mrb[0].mxu0
    %v3749 = vadd.f32 0.0, %v3748
    %v3750 = vpop.f32.mrb[0].mxu0
    %3751 = vdwg.mxu0
    %v3752 = vadd.f32 %v375, %v3749
    %v3753 = vxor.u32 %v3752, 2147483648
    %v3754 = vmul.f32 %v3753, 1.442695
    %v3755 = vpow.pop %v3754
    %v3756 = vadd.f32 %v3755, 1.0
    %v3757 = vrcp.pop %v3756
    %v3758 = vmul.f32 1.0, %v3757
    %3759 = vmatprep.subr.mxu0 0.0
    %3760 = vmatpush1.msra.mxu0 %v522
    %3761 = vmatprep.subr.mxu0 0.0
    %3762 = vmatpush1.msra.mxu0 %v523
    %3763 = vmatprep.subr.mxu0 0.0
    %3764 = vmatpush1.msra.mxu0 %v524
    %3765 = vmatprep.subr.mxu0 0.0
    %3766 = vmatpush1.msra.mxu0 %v525
    %3767 = vmatprep.subr.mxu0 0.0
    %3768 = vmatpush1.msra.mxu0 0.0
    %3769 = vmatprep.subr.mxu0 0.0
    %3770 = vmatpush1.msra.mxu0 0.0
    %3771 = vmatprep.subr.mxu0 0.0
    %3772 = vmatpush1.msra.mxu0 0.0
    %3773 = vmatprep.subr.mxu0 0.0
    %3774 = vmatpush1.msra.mxu0 0.0
    %3775 = vmatprep.subr.mxu0 0.0
    %3776 = vmatpush1.msra.mxu0 0.0
    %3777 = vmatprep.subr.mxu0 0.0
    %3778 = vmatpush1.msra.mxu0 0.0
    %3779 = vmatprep.subr.mxu0 0.0
    %3780 = vmatpush1.msra.mxu0 0.0
    %3781 = vmatprep.subr.mxu0 0.0
    %3782 = vmatpush1.msra.mxu0 0.0
    %3783 = vmatprep.subr.mxu0 0.0
    %3784 = vmatpush1.msra.mxu0 0.0
    %3785 = vmatprep.subr.mxu0 0.0
    %3786 = vmatpush1.msra.mxu0 0.0
    %3787 = vmatprep.subr.mxu0 0.0
    %3788 = vmatpush1.msra.mxu0 0.0
    %3789 = vmatprep.subr.mxu0 0.0
    %3790 = vmatpush1.msra.mxu0 0.0
    %3791 = vmatprep.subr.mxu0 0.0
    %3792 = vmatpush1.msra.mxu0 0.0
    %3793 = vmatprep.subr.mxu0 0.0
    %3794 = vmatpush1.msra.mxu0 0.0
    %3795 = vmatprep.subr.mxu0 0.0
    %3796 = vmatpush1.msra.mxu0 0.0
    %3797 = vmatprep.subr.mxu0 0.0
    %3798 = vmatpush1.msra.mxu0 0.0
    %3799 = vmatprep.subr.mxu0 0.0
    %3800 = vmatpush1.msra.mxu0 0.0
    %3801 = vmatprep.subr.mxu0 0.0
    %3802 = vmatpush1.msra.mxu0 0.0
    %3803 = vmatprep.subr.mxu0 0.0
    %3804 = vmatpush1.msra.mxu0 0.0
    %3805 = vmatprep.subr.mxu0 0.0
    %3806 = vmatpush1.msra.mxu0 0.0
    %3807 = vmatprep.subr.mxu0 0.0
    %3808 = vmatpush1.msra.mxu0 0.0
    %3809 = vmatprep.subr.mxu0 0.0
    %3810 = vmatpush1.msra.mxu0 0.0
    %3811 = vmatprep.subr.mxu0 0.0
    %3812 = vmatpush1.msra.mxu0 0.0
    %3813 = vmatprep.subr.mxu0 0.0
    %3814 = vmatpush1.msra.mxu0 0.0
    %3815 = vmatprep.subr.mxu0 0.0
    %3816 = vmatpush1.msra.mxu0 0.0
    %3817 = vmatprep.subr.mxu0 0.0
    %3818 = vmatpush1.msra.mxu0 0.0
    %3819 = vmatprep.subr.mxu0 0.0
    %3820 = vmatpush1.msra.mxu0 0.0
    %3821 = vmatprep.subr.mxu0 0.0
    %3822 = vmatpush1.msra.mxu0 0.0
    %3823 = vmatprep.mubr.f32.mxu0 0.0
    %3824 = vmatmul.mubr.f32.gmra.mrb[0].mxu0 %v3382
    %v3825 = vpop.f32.mrb[0].mxu0
    %v3826 = vadd.f32 %v644, %v3825
    %v3827 = vpop.f32.mrb[0].mxu0
    %3828 = vdwg.mxu0
    %v3829 = vmul.f32 %v3681, %v3826
    %v3830 = vadd.f32 %v505, %v3829
    %v3831 = vtanh.pop %v3830
    %v3832 = vsub.f32 1.0, %v3758
    %v3833 = vmul.f32 %v3832, %v3831
    %v3834 = vmul.f32 %v3758, %v3380
    %v3835 = vadd.f32 %v3833, %v3834
    %v3837 = vsel %vm130, %v3835, 0
    %3839 = vmatprep.subr.mxu0 0.0
    %3840 = vmatpush1.msra.mxu0 %v527
    %3841 = vmatprep.subr.mxu0 0.0
    %3842 = vmatpush1.msra.mxu0 %v528
    %3843 = vmatprep.subr.mxu0 0.0
    %3844 = vmatpush1.msra.mxu0 %v529
    %3845 = vmatprep.subr.mxu0 0.0
    %3846 = vmatpush1.msra.mxu0 %v530
    %3847 = vmatprep.subr.mxu0 0.0
    %3848 = vmatpush1.msra.mxu0 0.0
    %3849 = vmatprep.subr.mxu0 0.0
    %3850 = vmatpush1.msra.mxu0 0.0
    %3851 = vmatprep.subr.mxu0 0.0
    %3852 = vmatpush1.msra.mxu0 0.0
    %3853 = vmatprep.subr.mxu0 0.0
    %3854 = vmatpush1.msra.mxu0 0.0
    %3855 = vmatprep.subr.mxu0 0.0
    %3856 = vmatpush1.msra.mxu0 0.0
    %3857 = vmatprep.subr.mxu0 0.0
    %3858 = vmatpush1.msra.mxu0 0.0
    %3859 = vmatprep.subr.mxu0 0.0
    %3860 = vmatpush1.msra.mxu0 0.0
    %3861 = vmatprep.subr.mxu0 0.0
    %3862 = vmatpush1.msra.mxu0 0.0
    %3863 = vmatprep.subr.mxu0 0.0
    %3864 = vmatpush1.msra.mxu0 0.0
    %3865 = vmatprep.subr.mxu0 0.0
    %3866 = vmatpush1.msra.mxu0 0.0
    %3867 = vmatprep.subr.mxu0 0.0
    %3868 = vmatpush1.msra.mxu0 0.0
    %3869 = vmatprep.subr.mxu0 0.0
    %3870 = vmatpush1.msra.mxu0 0.0
    %3871 = vmatprep.subr.mxu0 0.0
    %3872 = vmatpush1.msra.mxu0 0.0
    %3873 = vmatprep.subr.mxu0 0.0
    %3874 = vmatpush1.msra.mxu0 0.0
    %3875 = vmatprep.subr.mxu0 0.0
    %3876 = vmatpush1.msra.mxu0 0.0
    %3877 = vmatprep.subr.mxu0 0.0
    %3878 = vmatpush1.msra.mxu0 0.0
    %3879 = vmatprep.subr.mxu0 0.0
    %3880 = vmatpush1.msra.mxu0 0.0
    %3881 = vmatprep.subr.mxu0 0.0
    %3882 = vmatpush1.msra.mxu0 0.0
    %3883 = vmatprep.subr.mxu0 0.0
    %3884 = vmatpush1.msra.mxu0 0.0
    %3885 = vmatprep.subr.mxu0 0.0
    %3886 = vmatpush1.msra.mxu0 0.0
    %3887 = vmatprep.subr.mxu0 0.0
    %3888 = vmatpush1.msra.mxu0 0.0
    %3889 = vmatprep.subr.mxu0 0.0
    %3890 = vmatpush1.msra.mxu0 0.0
    %3891 = vmatprep.subr.mxu0 0.0
    %3892 = vmatpush1.msra.mxu0 0.0
    %3893 = vmatprep.subr.mxu0 0.0
    %3894 = vmatpush1.msra.mxu0 0.0
    %3895 = vmatprep.subr.mxu0 0.0
    %3896 = vmatpush1.msra.mxu0 0.0
    %3897 = vmatprep.subr.mxu0 0.0
    %3898 = vmatpush1.msra.mxu0 0.0
    %3899 = vmatprep.subr.mxu0 0.0
    %3900 = vmatpush1.msra.mxu0 0.0
    %3901 = vmatprep.subr.mxu0 0.0
    %3902 = vmatpush1.msra.mxu0 0.0
    %3903 = vmatprep.mubr.f32.mxu0 0.0
    %3904 = vmatmul.mubr.f32.gmra.mrb[0].mxu0 %v3837
    %v3905 = vpop.f32.mrb[0].mxu0
    %v3906 = vadd.f32 %v625, %v3905
    %v3907 = vpop.f32.mrb[0].mxu0
    %3908 = vdwg.mxu0
    %v3909 = vtanh.pop %v3906
    %s3910 = scalar_lea.vmem %s2, 14
    %v3911 = vld [vmem:[%s3910] sm:$0x3]
    %3913 = vset.pattern.permute.xlu0 0
    %3914 = vperm.xlu0 %3913, %v3911
    %v3915 = vpop.permute.xlu0 %3914
    %v3918 = vsel %vm731, %v3909, 0
    %3920 = vmatprep.subr.mxu0 0.0
    %3921 = vmatpush1.msra.mxu0 %v531
    %3922 = vmatprep.subr.mxu0 0.0
    %3923 = vmatpush1.msra.mxu0 %v532
    %3924 = vmatprep.subr.mxu0 0.0
    %3925 = vmatpush1.msra.mxu0 %v533
    %3926 = vmatprep.subr.mxu0 0.0
    %3927 = vmatpush1.msra.mxu0 %v534
    %3928 = vmatprep.subr.mxu0 0.0
    %3929 = vmatpush1.msra.mxu0 %v535
    %3930 = vmatprep.subr.mxu0 0.0
    %3931 = vmatpush1.msra.mxu0 %v536
    %3932 = vmatprep.subr.mxu0 0.0
    %3933 = vmatpush1.msra.mxu0 %v537
    %3934 = vmatprep.subr.mxu0 0.0
    %3935 = vmatpush1.msra.mxu0 %v538
    %3936 = vmatprep.subr.mxu0 0.0
    %3937 = vmatpush1.msra.mxu0 0.0
    %3938 = vmatprep.subr.mxu0 0.0
    %3939 = vmatpush1.msra.mxu0 0.0
    %3940 = vmatprep.subr.mxu0 0.0
    %3941 = vmatpush1.msra.mxu0 0.0
    %3942 = vmatprep.subr.mxu0 0.0
    %3943 = vmatpush1.msra.mxu0 0.0
    %3944 = vmatprep.subr.mxu0 0.0
    %3945 = vmatpush1.msra.mxu0 0.0
    %3946 = vmatprep.subr.mxu0 0.0
    %3947 = vmatpush1.msra.mxu0 0.0
    %3948 = vmatprep.subr.mxu0 0.0
    %3949 = vmatpush1.msra.mxu0 0.0
    %3950 = vmatprep.subr.mxu0 0.0
    %3951 = vmatpush1.msra.mxu0 0.0
    %3952 = vmatprep.subr.mxu0 0.0
    %3953 = vmatpush1.msra.mxu0 0.0
    %3954 = vmatprep.subr.mxu0 0.0
    %3955 = vmatpush1.msra.mxu0 0.0
    %3956 = vmatprep.subr.mxu0 0.0
    %3957 = vmatpush1.msra.mxu0 0.0
    %3958 = vmatprep.subr.mxu0 0.0
    %3959 = vmatpush1.msra.mxu0 0.0
    %3960 = vmatprep.subr.mxu0 0.0
    %3961 = vmatpush1.msra.mxu0 0.0
    %3962 = vmatprep.subr.mxu0 0.0
    %3963 = vmatpush1.msra.mxu0 0.0
    %3964 = vmatprep.subr.mxu0 0.0
    %3965 = vmatpush1.msra.mxu0 0.0
    %3966 = vmatprep.subr.mxu0 0.0
    %3967 = vmatpush1.msra.mxu0 0.0
    %3968 = vmatprep.subr.mxu0 0.0
    %3969 = vmatpush1.msra.mxu0 0.0
    %3970 = vmatprep.subr.mxu0 0.0
    %3971 = vmatpush1.msra.mxu0 0.0
    %3972 = vmatprep.subr.mxu0 0.0
    %3973 = vmatpush1.msra.mxu0 0.0
    %3974 = vmatprep.subr.mxu0 0.0
    %3975 = vmatpush1.msra.mxu0 0.0
    %3976 = vmatprep.subr.mxu0 0.0
    %3977 = vmatpush1.msra.mxu0 0.0
    %3978 = vmatprep.subr.mxu0 0.0
    %3979 = vmatpush1.msra.mxu0 0.0
    %3980 = vmatprep.subr.mxu0 0.0
    %3981 = vmatpush1.msra.mxu0 0.0
    %3982 = vmatprep.subr.mxu0 0.0
    %3983 = vmatpush1.msra.mxu0 0.0
    %3984 = vmatprep.mubr.f32.mxu0 0.0
    %3985 = vmatmul.mubr.f32.gmra.mrb[0].mxu0 %v3918
    %v3986 = vpop.f32.mrb[0].mxu0
    %v3987 = vadd.f32 %v3915, %v3986
    %v3988 = vpop.f32.mrb[0].mxu0
    %3989 = vdwg.mxu0
    %3990 = vmatprep.subr.mxu0 0.0
    %3991 = vmatpush1.msra.mxu0 %v539
    %3992 = vmatprep.subr.mxu0 0.0
    %3993 = vmatpush1.msra.mxu0 %v540
    %3994 = vmatprep.subr.mxu0 0.0
    %3995 = vmatpush1.msra.mxu0 %v541
    %3996 = vmatprep.subr.mxu0 0.0
    %3997 = vmatpush1.msra.mxu0 %v542
    %3998 = vmatprep.subr.mxu0 0.0
    %3999 = vmatpush1.msra.mxu0 0.0
    %4000 = vmatprep.subr.mxu0 0.0
    %4001 = vmatpush1.msra.mxu0 0.0
    %4002 = vmatprep.subr.mxu0 0.0
    %4003 = vmatpush1.msra.mxu0 0.0
    %4004 = vmatprep.subr.mxu0 0.0
    %4005 = vmatpush1.msra.mxu0 0.0
    %4006 = vmatprep.subr.mxu0 0.0
    %4007 = vmatpush1.msra.mxu0 0.0
    %4008 = vmatprep.subr.mxu0 0.0
    %4009 = vmatpush1.msra.mxu0 0.0
    %4010 = vmatprep.subr.mxu0 0.0
    %4011 = vmatpush1.msra.mxu0 0.0
    %4012 = vmatprep.subr.mxu0 0.0
    %4013 = vmatpush1.msra.mxu0 0.0
    %4014 = vmatprep.subr.mxu0 0.0
    %4015 = vmatpush1.msra.mxu0 0.0
    %4016 = vmatprep.subr.mxu0 0.0
    %4017 = vmatpush1.msra.mxu0 0.0
    %4018 = vmatprep.subr.mxu0 0.0
    %4019 = vmatpush1.msra.mxu0 0.0
    %4020 = vmatprep.subr.mxu0 0.0
    %4021 = vmatpush1.msra.mxu0 0.0
    %4022 = vmatprep.subr.mxu0 0.0
    %4023 = vmatpush1.msra.mxu0 0.0
    %4024 = vmatprep.subr.mxu0 0.0
    %4025 = vmatpush1.msra.mxu0 0.0
    %4026 = vmatprep.subr.mxu0 0.0
    %4027 = vmatpush1.msra.mxu0 0.0
    %4028 = vmatprep.subr.mxu0 0.0
    %4029 = vmatpush1.msra.mxu0 0.0
    %4030 = vmatprep.subr.mxu0 0.0
    %4031 = vmatpush1.msra.mxu0 0.0
    %4032 = vmatprep.subr.mxu0 0.0
    %4033 = vmatpush1.msra.mxu0 0.0
    %4034 = vmatprep.subr.mxu0 0.0
    %4035 = vmatpush1.msra.mxu0 0.0
    %4036 = vmatprep.subr.mxu0 0.0
    %4037 = vmatpush1.msra.mxu0 0.0
    %4038 = vmatprep.subr.mxu0 0.0
    %4039 = vmatpush1.msra.mxu0 0.0
    %4040 = vmatprep.subr.mxu0 0.0
    %4041 = vmatpush1.msra.mxu0 0.0
    %4042 = vmatprep.subr.mxu0 0.0
    %4043 = vmatpush1.msra.mxu0 0.0
    %4044 = vmatprep.subr.mxu0 0.0
    %4045 = vmatpush1.msra.mxu0 0.0
    %4046 = vmatprep.subr.mxu0 0.0
    %4047 = vmatpush1.msra.mxu0 0.0
    %4048 = vmatprep.subr.mxu0 0.0
    %4049 = vmatpush1.msra.mxu0 0.0
    %4050 = vmatprep.subr.mxu0 0.0
    %4051 = vmatpush1.msra.mxu0 0.0
    %4052 = vmatprep.subr.mxu0 0.0
    %4053 = vmatpush1.msra.mxu0 0.0
    %4054 = vmatprep.mubr.f32.mxu0 0.0
    %4055 = vmatmul.mubr.f32.gmra.mrb[0].mxu0 %v3837
    %v4056 = vpop.f32.mrb[0].mxu0
    %v4057 = vadd.f32 0.0, %v4056
    %v4058 = vpop.f32.mrb[0].mxu0
    %4059 = vdwg.mxu0
    %v4060 = vmax.f32 %v802, %v1257
    %v4061 = vmax.f32 %v1712, %v2167
    %v4062 = vmax.f32 %v2622, %v3077
    %v4063 = vmax.f32 %v3532, %v3987
    %v4064 = vmax.f32 %v4060, %v4061
    %v4065 = vmax.f32 %v4062, %v4063
    %v4066 = vmax.f32 %v4064, %v4065
    %v4067 = vsub.f32 %v802, %v4066
    %v4068 = vmul.f32 %v4067, 1.442695
    %v4069 = vpow.pop %v4068
    %v4070 = vsub.f32 %v1257, %v4066
    %v4071 = vmul.f32 %v4070, 1.442695
    %v4072 = vpow.pop %v4071
    %v4073 = vsub.f32 %v1712, %v4066
    %v4074 = vmul.f32 %v4073, 1.442695
    %v4075 = vpow.pop %v4074
    %v4076 = vsub.f32 %v2167, %v4066
    %v4077 = vmul.f32 %v4076, 1.442695
    %v4078 = vpow.pop %v4077
    %v4079 = vsub.f32 %v2622, %v4066
    %v4080 = vmul.f32 %v4079, 1.442695
    %v4081 = vpow.pop %v4080
    %v4082 = vsub.f32 %v3077, %v4066
    %v4083 = vmul.f32 %v4082, 1.442695
    %v4084 = vpow.pop %v4083
    %v4085 = vsub.f32 %v3532, %v4066
    %v4086 = vmul.f32 %v4085, 1.442695
    %v4087 = vpow.pop %v4086
    %v4088 = vsub.f32 %v3987, %v4066
    %v4089 = vmul.f32 %v4088, 1.442695
    %v4090 = vpow.pop %v4089
    %v4091 = vadd.f32 %v4069, %v4072
    %v4092 = vadd.f32 %v4075, %v4078
    %v4093 = vadd.f32 %v4081, %v4084
    %v4094 = vadd.f32 %v4087, %v4090
    %v4095 = vadd.f32 %v4091, %v4092
    %v4096 = vadd.f32 %v4093, %v4094
    %v4097 = vadd.f32 %v4095, %v4096
    %v4098 = vrcp.pop %v4097
    %v4099 = vmul.f32 %v4069, %v4098
    %v4100 = vmul.f32 %v4072, %v4098
    %v4101 = vmul.f32 %v4075, %v4098
    %v4102 = vmul.f32 %v4078, %v4098
    %v4103 = vmul.f32 %v4081, %v4098
    %v4104 = vmul.f32 %v4084, %v4098
    %v4105 = vmul.f32 %v4087, %v4098
    %v4106 = vmul.f32 %v4090, %v4098
    %v4107 = vmul.f32 %v4099, %v872
    %v4108 = vmul.f32 %v4100, %v1327
    %v4109 = vmul.f32 %v4101, %v1782
    %v4110 = vmul.f32 %v4102, %v2237
    %v4111 = vmul.f32 %v4103, %v2692
    %v4112 = vmul.f32 %v4104, %v3147
    %v4113 = vmul.f32 %v4105, %v3602
    %v4114 = vmul.f32 %v4106, %v4057
    %v4115 = vadd.f32 %v4107, %v4108
    %v4116 = vadd.f32 %v4109, %v4110
    %v4117 = vadd.f32 %v4111, %v4112
    %v4118 = vadd.f32 %v4113, %v4114
    %v4119 = vadd.f32 %v4115, %v4116
    %v4120 = vadd.f32 %v4117, %v4118
    %v4121 = vadd.f32 %v4119, %v4120
    %v4122 = vmul.f32 %v4099, %v4099
    %v4123 = vmul.f32 %v4100, %v4100
    %v4124 = vmul.f32 %v4101, %v4101
    %v4125 = vmul.f32 %v4102, %v4102
    %v4126 = vmul.f32 %v4103, %v4103
    %v4127 = vmul.f32 %v4104, %v4104
    %v4128 = vmul.f32 %v4105, %v4105
    %v4129 = vmul.f32 %v4106, %v4106
    %v4130 = vadd.f32 %v4122, %v4123
    %v4131 = vadd.f32 %v4124, %v4125
    %v4132 = vadd.f32 %v4126, %v4127
    %v4133 = vadd.f32 %v4128, %v4129
    %v4134 = vadd.f32 %v4130, %v4131
    %v4135 = vadd.f32 %v4132, %v4133
    %v4136 = vadd.f32 %v4134, %v4135
    %v4137 = vlaneseq
    %v4138 = vshrl.u32 %v4137, 7
    %v4139 = vsub.s32 0, %v4138
    %v4140 = vrot.slane %v4099, %v4139
    %4142 = vbcast.lane.b32.xlu0 %v4140, 256
    %v4143 = vpop.permute.xlu0 %4142
    %v4144 = vlaneseq
    %v4145 = vshrl.u32 %v4144, 7
    %v4146 = vsub.s32 1, %v4145
    %v4147 = vrot.slane %v4099, %v4146
    %4149 = vbcast.lane.b32.xlu0 %v4147, 256
    %v4150 = vpop.permute.xlu0 %4149
    %v4153 = vunpack.c.l.s4 1966171168
    %v4154 = vunpack.c.0.s8 %v4153
    %v4155 = vlaneseq
    %v4156 = vshrl.u32 %v4155, 7
    %v4157 = vsub.s32 %v4154, %v4156
    %v4158 = vrot.slane %v4099, %v4157
    %v4159 = vcombine.high %v4158, %v4158
    %v4161 = vunpack.c.l.s4 1966171168
    %v4162 = vunpack.c.0.s8 %v4161
    %v4163 = vlaneseq
    %v4164 = vshrl.u32 %v4163, 7
    %v4165 = vsub.s32 %v4162, %v4164
    %v4166 = vrot.slane %v4158, %v4165
    %v4168 = vunpack.c.l.s4 1966171168
    %v4169 = vunpack.c.0.s8 %v4168
    %v4170 = vlaneseq
    %v4171 = vshrl.u32 %v4170, 7
    %v4172 = vsub.s32 %v4169, %v4171
    %v4173 = vrot.slane %v4159, %v4172
    %v4174 = vlaneseq
    %v4175 = vshrl.u32 %v4174, 7
    %v4176 = vsub.s32 0, %v4175
    %v4177 = vrot.slane %v4166, %v4176
    %v4178 = vlaneseq
    %v4179 = vshrl.u32 %v4178, 7
    %v4180 = vsub.s32 0, %v4179
    %v4181 = vrot.slane %v4173, %v4180
    %v4184 = vmul.f32 %v4143, %v4177
    %v4185 = vmul.f32 %v4150, %v4181
    %v4186 = vlaneseq
    %v4187 = vshrl.u32 %v4186, 7
    %v4188 = vsub.s32 0, %v4187
    %v4189 = vrot.slane %v4100, %v4188
    %4191 = vbcast.lane.b32.xlu0 %v4189, 256
    %v4192 = vpop.permute.xlu0 %4191
    %v4193 = vlaneseq
    %v4194 = vshrl.u32 %v4193, 7
    %v4195 = vsub.s32 1, %v4194
    %v4196 = vrot.slane %v4100, %v4195
    %4198 = vbcast.lane.b32.xlu0 %v4196, 256
    %v4199 = vpop.permute.xlu0 %4198
    %v4202 = vunpack.c.l.s4 1966171168
    %v4203 = vunpack.c.0.s8 %v4202
    %v4204 = vlaneseq
    %v4205 = vshrl.u32 %v4204, 7
    %v4206 = vsub.s32 %v4203, %v4205
    %v4207 = vrot.slane %v4100, %v4206
    %v4208 = vcombine.high %v4207, %v4207
    %v4210 = vunpack.c.l.s4 1966171168
    %v4211 = vunpack.c.0.s8 %v4210
    %v4212 = vlaneseq
    %v4213 = vshrl.u32 %v4212, 7
    %v4214 = vsub.s32 %v4211, %v4213
    %v4215 = vrot.slane %v4207, %v4214
    %v4217 = vunpack.c.l.s4 1966171168
    %v4218 = vunpack.c.0.s8 %v4217
    %v4219 = vlaneseq
    %v4220 = vshrl.u32 %v4219, 7
    %v4221 = vsub.s32 %v4218, %v4220
    %v4222 = vrot.slane %v4208, %v4221
    %v4223 = vlaneseq
    %v4224 = vshrl.u32 %v4223, 7
    %v4225 = vsub.s32 0, %v4224
    %v4226 = vrot.slane %v4215, %v4225
    %v4227 = vlaneseq
    %v4228 = vshrl.u32 %v4227, 7
    %v4229 = vsub.s32 0, %v4228
    %v4230 = vrot.slane %v4222, %v4229
    %v4233 = vmul.f32 %v4192, %v4226
    %v4234 = vmul.f32 %v4199, %v4230
    %v4235 = vlaneseq
    %v4236 = vshrl.u32 %v4235, 7
    %v4237 = vsub.s32 0, %v4236
    %v4238 = vrot.slane %v4101, %v4237
    %4240 = vbcast.lane.b32.xlu0 %v4238, 256
    %v4241 = vpop.permute.xlu0 %4240
    %v4242 = vlaneseq
    %v4243 = vshrl.u32 %v4242, 7
    %v4244 = vsub.s32 1, %v4243
    %v4245 = vrot.slane %v4101, %v4244
    %4247 = vbcast.lane.b32.xlu0 %v4245, 256
    %v4248 = vpop.permute.xlu0 %4247
    %v4251 = vunpack.c.l.s4 1966171168
    %v4252 = vunpack.c.0.s8 %v4251
    %v4253 = vlaneseq
    %v4254 = vshrl.u32 %v4253, 7
    %v4255 = vsub.s32 %v4252, %v4254
    %v4256 = vrot.slane %v4101, %v4255
    %v4257 = vcombine.high %v4256, %v4256
    %v4259 = vunpack.c.l.s4 1966171168
    %v4260 = vunpack.c.0.s8 %v4259
    %v4261 = vlaneseq
    %v4262 = vshrl.u32 %v4261, 7
    %v4263 = vsub.s32 %v4260, %v4262
    %v4264 = vrot.slane %v4256, %v4263
    %v4266 = vunpack.c.l.s4 1966171168
    %v4267 = vunpack.c.0.s8 %v4266
    %v4268 = vlaneseq
    %v4269 = vshrl.u32 %v4268, 7
    %v4270 = vsub.s32 %v4267, %v4269
    %v4271 = vrot.slane %v4257, %v4270
    %v4272 = vlaneseq
    %v4273 = vshrl.u32 %v4272, 7
    %v4274 = vsub.s32 0, %v4273
    %v4275 = vrot.slane %v4264, %v4274
    %v4276 = vlaneseq
    %v4277 = vshrl.u32 %v4276, 7
    %v4278 = vsub.s32 0, %v4277
    %v4279 = vrot.slane %v4271, %v4278
    %v4282 = vmul.f32 %v4241, %v4275
    %v4283 = vmul.f32 %v4248, %v4279
    %v4284 = vlaneseq
    %v4285 = vshrl.u32 %v4284, 7
    %v4286 = vsub.s32 0, %v4285
    %v4287 = vrot.slane %v4102, %v4286
    %4289 = vbcast.lane.b32.xlu0 %v4287, 256
    %v4290 = vpop.permute.xlu0 %4289
    %v4291 = vlaneseq
    %v4292 = vshrl.u32 %v4291, 7
    %v4293 = vsub.s32 1, %v4292
    %v4294 = vrot.slane %v4102, %v4293
    %4296 = vbcast.lane.b32.xlu0 %v4294, 256
    %v4297 = vpop.permute.xlu0 %4296
    %v4300 = vunpack.c.l.s4 1966171168
    %v4301 = vunpack.c.0.s8 %v4300
    %v4302 = vlaneseq
    %v4303 = vshrl.u32 %v4302, 7
    %v4304 = vsub.s32 %v4301, %v4303
    %v4305 = vrot.slane %v4102, %v4304
    %v4306 = vcombine.high %v4305, %v4305
    %v4308 = vunpack.c.l.s4 1966171168
    %v4309 = vunpack.c.0.s8 %v4308
    %v4310 = vlaneseq
    %v4311 = vshrl.u32 %v4310, 7
    %v4312 = vsub.s32 %v4309, %v4311
    %v4313 = vrot.slane %v4305, %v4312
    %v4315 = vunpack.c.l.s4 1966171168
    %v4316 = vunpack.c.0.s8 %v4315
    %v4317 = vlaneseq
    %v4318 = vshrl.u32 %v4317, 7
    %v4319 = vsub.s32 %v4316, %v4318
    %v4320 = vrot.slane %v4306, %v4319
    %v4321 = vlaneseq
    %v4322 = vshrl.u32 %v4321, 7
    %v4323 = vsub.s32 0, %v4322
    %v4324 = vrot.slane %v4313, %v4323
    %v4325 = vlaneseq
    %v4326 = vshrl.u32 %v4325, 7
    %v4327 = vsub.s32 0, %v4326
    %v4328 = vrot.slane %v4320, %v4327
    %v4331 = vmul.f32 %v4290, %v4324
    %v4332 = vmul.f32 %v4297, %v4328
    %v4333 = vlaneseq
    %v4334 = vshrl.u32 %v4333, 7
    %v4335 = vsub.s32 0, %v4334
    %v4336 = vrot.slane %v4103, %v4335
    %4338 = vbcast.lane.b32.xlu0 %v4336, 256
    %v4339 = vpop.permute.xlu0 %4338
    %v4340 = vlaneseq
    %v4341 = vshrl.u32 %v4340, 7
    %v4342 = vsub.s32 1, %v4341
    %v4343 = vrot.slane %v4103, %v4342
    %4345 = vbcast.lane.b32.xlu0 %v4343, 256
    %v4346 = vpop.permute.xlu0 %4345
    %v4349 = vunpack.c.l.s4 1966171168
    %v4350 = vunpack.c.0.s8 %v4349
    %v4351 = vlaneseq
    %v4352 = vshrl.u32 %v4351, 7
    %v4353 = vsub.s32 %v4350, %v4352
    %v4354 = vrot.slane %v4103, %v4353
    %v4355 = vcombine.high %v4354, %v4354
    %v4357 = vunpack.c.l.s4 1966171168
    %v4358 = vunpack.c.0.s8 %v4357
    %v4359 = vlaneseq
    %v4360 = vshrl.u32 %v4359, 7
    %v4361 = vsub.s32 %v4358, %v4360
    %v4362 = vrot.slane %v4354, %v4361
    %v4364 = vunpack.c.l.s4 1966171168
    %v4365 = vunpack.c.0.s8 %v4364
    %v4366 = vlaneseq
    %v4367 = vshrl.u32 %v4366, 7
    %v4368 = vsub.s32 %v4365, %v4367
    %v4369 = vrot.slane %v4355, %v4368
    %v4370 = vlaneseq
    %v4371 = vshrl.u32 %v4370, 7
    %v4372 = vsub.s32 0, %v4371
    %v4373 = vrot.slane %v4362, %v4372
    %v4374 = vlaneseq
    %v4375 = vshrl.u32 %v4374, 7
    %v4376 = vsub.s32 0, %v4375
    %v4377 = vrot.slane %v4369, %v4376
    %v4380 = vmul.f32 %v4339, %v4373
    %v4381 = vmul.f32 %v4346, %v4377
    %v4382 = vlaneseq
    %v4383 = vshrl.u32 %v4382, 7
    %v4384 = vsub.s32 0, %v4383
    %v4385 = vrot.slane %v4104, %v4384
    %4387 = vbcast.lane.b32.xlu0 %v4385, 256
    %v4388 = vpop.permute.xlu0 %4387
    %v4389 = vlaneseq
    %v4390 = vshrl.u32 %v4389, 7
    %v4391 = vsub.s32 1, %v4390
    %v4392 = vrot.slane %v4104, %v4391
    %4394 = vbcast.lane.b32.xlu0 %v4392, 256
    %v4395 = vpop.permute.xlu0 %4394
    %v4398 = vunpack.c.l.s4 1966171168
    %v4399 = vunpack.c.0.s8 %v4398
    %v4400 = vlaneseq
    %v4401 = vshrl.u32 %v4400, 7
    %v4402 = vsub.s32 %v4399, %v4401
    %v4403 = vrot.slane %v4104, %v4402
    %v4404 = vcombine.high %v4403, %v4403
    %v4406 = vunpack.c.l.s4 1966171168
    %v4407 = vunpack.c.0.s8 %v4406
    %v4408 = vlaneseq
    %v4409 = vshrl.u32 %v4408, 7
    %v4410 = vsub.s32 %v4407, %v4409
    %v4411 = vrot.slane %v4403, %v4410
    %v4413 = vunpack.c.l.s4 1966171168
    %v4414 = vunpack.c.0.s8 %v4413
    %v4415 = vlaneseq
    %v4416 = vshrl.u32 %v4415, 7
    %v4417 = vsub.s32 %v4414, %v4416
    %v4418 = vrot.slane %v4404, %v4417
    %v4419 = vlaneseq
    %v4420 = vshrl.u32 %v4419, 7
    %v4421 = vsub.s32 0, %v4420
    %v4422 = vrot.slane %v4411, %v4421
    %v4423 = vlaneseq
    %v4424 = vshrl.u32 %v4423, 7
    %v4425 = vsub.s32 0, %v4424
    %v4426 = vrot.slane %v4418, %v4425
    %v4429 = vmul.f32 %v4388, %v4422
    %v4430 = vmul.f32 %v4395, %v4426
    %v4431 = vlaneseq
    %v4432 = vshrl.u32 %v4431, 7
    %v4433 = vsub.s32 0, %v4432
    %v4434 = vrot.slane %v4105, %v4433
    %4436 = vbcast.lane.b32.xlu0 %v4434, 256
    %v4437 = vpop.permute.xlu0 %4436
    %v4438 = vlaneseq
    %v4439 = vshrl.u32 %v4438, 7
    %v4440 = vsub.s32 1, %v4439
    %v4441 = vrot.slane %v4105, %v4440
    %4443 = vbcast.lane.b32.xlu0 %v4441, 256
    %v4444 = vpop.permute.xlu0 %4443
    %v4447 = vunpack.c.l.s4 1966171168
    %v4448 = vunpack.c.0.s8 %v4447
    %v4449 = vlaneseq
    %v4450 = vshrl.u32 %v4449, 7
    %v4451 = vsub.s32 %v4448, %v4450
    %v4452 = vrot.slane %v4105, %v4451
    %v4453 = vcombine.high %v4452, %v4452
    %v4455 = vunpack.c.l.s4 1966171168
    %v4456 = vunpack.c.0.s8 %v4455
    %v4457 = vlaneseq
    %v4458 = vshrl.u32 %v4457, 7
    %v4459 = vsub.s32 %v4456, %v4458
    %v4460 = vrot.slane %v4452, %v4459
    %v4462 = vunpack.c.l.s4 1966171168
    %v4463 = vunpack.c.0.s8 %v4462
    %v4464 = vlaneseq
    %v4465 = vshrl.u32 %v4464, 7
    %v4466 = vsub.s32 %v4463, %v4465
    %v4467 = vrot.slane %v4453, %v4466
    %v4468 = vlaneseq
    %v4469 = vshrl.u32 %v4468, 7
    %v4470 = vsub.s32 0, %v4469
    %v4471 = vrot.slane %v4460, %v4470
    %v4472 = vlaneseq
    %v4473 = vshrl.u32 %v4472, 7
    %v4474 = vsub.s32 0, %v4473
    %v4475 = vrot.slane %v4467, %v4474
    %v4478 = vmul.f32 %v4437, %v4471
    %v4479 = vmul.f32 %v4444, %v4475
    %v4480 = vlaneseq
    %v4481 = vshrl.u32 %v4480, 7
    %v4482 = vsub.s32 0, %v4481
    %v4483 = vrot.slane %v4106, %v4482
    %4485 = vbcast.lane.b32.xlu0 %v4483, 256
    %v4486 = vpop.permute.xlu0 %4485
    %v4487 = vlaneseq
    %v4488 = vshrl.u32 %v4487, 7
    %v4489 = vsub.s32 1, %v4488
    %v4490 = vrot.slane %v4106, %v4489
    %4492 = vbcast.lane.b32.xlu0 %v4490, 256
    %v4493 = vpop.permute.xlu0 %4492
    %v4496 = vunpack.c.l.s4 1966171168
    %v4497 = vunpack.c.0.s8 %v4496
    %v4498 = vlaneseq
    %v4499 = vshrl.u32 %v4498, 7
    %v4500 = vsub.s32 %v4497, %v4499
    %v4501 = vrot.slane %v4106, %v4500
    %v4502 = vcombine.high %v4501, %v4501
    %v4504 = vunpack.c.l.s4 1966171168
    %v4505 = vunpack.c.0.s8 %v4504
    %v4506 = vlaneseq
    %v4507 = vshrl.u32 %v4506, 7
    %v4508 = vsub.s32 %v4505, %v4507
    %v4509 = vrot.slane %v4501, %v4508
    %v4511 = vunpack.c.l.s4 1966171168
    %v4512 = vunpack.c.0.s8 %v4511
    %v4513 = vlaneseq
    %v4514 = vshrl.u32 %v4513, 7
    %v4515 = vsub.s32 %v4512, %v4514
    %v4516 = vrot.slane %v4502, %v4515
    %v4517 = vlaneseq
    %v4518 = vshrl.u32 %v4517, 7
    %v4519 = vsub.s32 0, %v4518
    %v4520 = vrot.slane %v4509, %v4519
    %v4521 = vlaneseq
    %v4522 = vshrl.u32 %v4521, 7
    %v4523 = vsub.s32 0, %v4522
    %v4524 = vrot.slane %v4516, %v4523
    %v4527 = vmul.f32 %v4486, %v4520
    %v4528 = vmul.f32 %v4493, %v4524
    %v4529 = vadd.f32 %v4184, %v4233
    %v4530 = vadd.f32 %v4185, %v4234
    %v4531 = vadd.f32 %v4282, %v4331
    %v4532 = vadd.f32 %v4283, %v4332
    %v4533 = vadd.f32 %v4380, %v4429
    %v4534 = vadd.f32 %v4381, %v4430
    %v4535 = vadd.f32 %v4478, %v4527
    %v4536 = vadd.f32 %v4479, %v4528
    %v4537 = vadd.f32 %v4529, %v4531
    %v4538 = vadd.f32 %v4530, %v4532
    %v4539 = vadd.f32 %v4533, %v4535
    %v4540 = vadd.f32 %v4534, %v4536
    %v4541 = vadd.f32 %v4537, %v4539
    %v4542 = vadd.f32 %v4538, %v4540
    %v4543 = vld [vmem:[%s18] sm:$0xff]
    %v4544 = vld [vmem:[%s18 + $0x8] sm:$0xff]
    %v4545 = vld [vmem:[%s18 + $0x10] sm:$0xff]
    %v4546 = vld [vmem:[%s18 + $0x18] sm:$0xff]
    %4547 = vmatprep.subr.mxu0 0.0
    %4548 = vmatpush1.msra.mxu0 %v4543
    %4549 = vmatprep.subr.mxu0 0.0
    %4550 = vmatpush1.msra.mxu0 %v4544
    %4551 = vmatprep.subr.mxu0 0.0
    %4552 = vmatpush1.msra.mxu0 %v4545
    %4553 = vmatprep.subr.mxu0 0.0
    %4554 = vmatpush1.msra.mxu0 %v4546
    %4555 = vmatprep.subr.mxu0 0.0
    %4556 = vmatpush1.msra.mxu0 0.0
    %4557 = vmatprep.subr.mxu0 0.0
    %4558 = vmatpush1.msra.mxu0 0.0
    %4559 = vmatprep.subr.mxu0 0.0
    %4560 = vmatpush1.msra.mxu0 0.0
    %4561 = vmatprep.subr.mxu0 0.0
    %4562 = vmatpush1.msra.mxu0 0.0
    %4563 = vmatprep.subr.mxu0 0.0
    %4564 = vmatpush1.msra.mxu0 0.0
    %4565 = vmatprep.subr.mxu0 0.0
    %4566 = vmatpush1.msra.mxu0 0.0
    %4567 = vmatprep.subr.mxu0 0.0
    %4568 = vmatpush1.msra.mxu0 0.0
    %4569 = vmatprep.subr.mxu0 0.0
    %4570 = vmatpush1.msra.mxu0 0.0
    %4571 = vmatprep.subr.mxu0 0.0
    %4572 = vmatpush1.msra.mxu0 0.0
    %4573 = vmatprep.subr.mxu0 0.0
    %4574 = vmatpush1.msra.mxu0 0.0
    %4575 = vmatprep.subr.mxu0 0.0
    %4576 = vmatpush1.msra.mxu0 0.0
    %4577 = vmatprep.subr.mxu0 0.0
    %4578 = vmatpush1.msra.mxu0 0.0
    %4579 = vmatprep.subr.mxu0 0.0
    %4580 = vmatpush1.msra.mxu0 0.0
    %4581 = vmatprep.subr.mxu0 0.0
    %4582 = vmatpush1.msra.mxu0 0.0
    %4583 = vmatprep.subr.mxu0 0.0
    %4584 = vmatpush1.msra.mxu0 0.0
    %4585 = vmatprep.subr.mxu0 0.0
    %4586 = vmatpush1.msra.mxu0 0.0
    %4587 = vmatprep.subr.mxu0 0.0
    %4588 = vmatpush1.msra.mxu0 0.0
    %4589 = vmatprep.subr.mxu0 0.0
    %4590 = vmatpush1.msra.mxu0 0.0
    %4591 = vmatprep.subr.mxu0 0.0
    %4592 = vmatpush1.msra.mxu0 0.0
    %4593 = vmatprep.subr.mxu0 0.0
    %4594 = vmatpush1.msra.mxu0 0.0
    %4595 = vmatprep.subr.mxu0 0.0
    %4596 = vmatpush1.msra.mxu0 0.0
    %4597 = vmatprep.subr.mxu0 0.0
    %4598 = vmatpush1.msra.mxu0 0.0
    %4599 = vmatprep.subr.mxu0 0.0
    %4600 = vmatpush1.msra.mxu0 0.0
    %4601 = vmatprep.subr.mxu0 0.0
    %4602 = vmatpush1.msra.mxu0 0.0
    %4603 = vmatprep.subr.mxu0 0.0
    %4604 = vmatpush1.msra.mxu0 0.0
    %4605 = vmatprep.subr.mxu0 0.0
    %4606 = vmatpush1.msra.mxu0 0.0
    %4607 = vmatprep.subr.mxu0 0.0
    %4608 = vmatpush1.msra.mxu0 0.0
    %4609 = vmatprep.subr.mxu0 0.0
    %4610 = vmatpush1.msra.mxu0 0.0
    %4611 = vmatprep.mubr.f32.mxu0 0.0
    %4612 = vmatmul.mubr.f32.gmra.mrb[0].mxu0 %v556
    %v4613 = vpop.f32.mrb[0].mxu0
    %v4614 = vadd.f32 0.0, %v4613
    %v4615 = vpop.f32.mrb[0].mxu0
    %4616 = vdwg.mxu0
    %v4617 = vadd.f32 %v4121, %v4614
    %v4618 = vld [vmem:[%s19] sm:$0x1]
    %v4620 = vlaneseq
    %v4621 = vshrl.u32 %v4620, 7
    %v4622 = vsub.s32 0, %v4621
    %v4623 = vrot.slane %v4618, %v4622
    %v4625 = vadd.f32 %v4617, %v4623
    %vm4626 = vcmask 9216
    %4627 = vst.msk [vmem:[#allocation2] sm:$0x3] %vm4626, %v4625
    %v4628 = vmul.f32 %v4541, %v4541
    %v4629 = vmul.f32 %v4542, %v4542
    %v4630 = vsel %vm4626, %v4628, 0.0
    %v4631 = vsel %vm4626, %v4629, 0.0
    %v4632 = vadd.f32 %v4630, %v4631
    %4633 = vadd.xlane.f32.xlu0 %v4632
    %v4634 = vpop.xlane.xlu0 %4633
    %v4635 = vrot.slane %v4634, 4
    %v4636 = vadd.f32 %v4634, %v4635
    %v4637 = vrot.slane %v4636, 2
    %v4638 = vadd.f32 %v4636, %v4637
    %v4639 = vrot.slane %v4638, 1
    %v4640 = vadd.f32 %v4638, %v4639
    %s4641 = vtos %v4640
    %v4642 = vsel %vm4626, %v4136, 0.0
    %4643 = vadd.xlane.f32.xlu0 %v4642
    %v4644 = vpop.xlane.xlu0 %4643
    %v4645 = vrot.slane %v4644, 4
    %v4646 = vadd.f32 %v4644, %v4645
    %v4647 = vrot.slane %v4646, 2
    %v4648 = vadd.f32 %v4646, %v4647
    %v4649 = vrot.slane %v4648, 1
    %v4650 = vadd.f32 %v4648, %v4649
    %s4651 = vtos %v4650
    %s4652 = smul.f32 %s4651, 2.0
    %s4653 = ssub.f32 %s4641, %s4652
    %s4654 = sadd.f32 %s4653, 16.0
    %s4655 = smax.f32 %s4654, 0.0
    %v4656 = vstv %s4655
    %v4657 = vrsqrt.pop %v4656
    %v4658 = vmul.f32 %v4656, %v4657
    %vm4659 = vcmp.eq.f32.partialorder %v4656, inf
    %v4660 = vsel %vm4659, %v4656, %v4658
    %vm4661 = vcmp.eq.f32.partialorder %v4656, 0.0
    %v4662 = vand.u32 %v4656, 2147483648
    %v4663 = vsel %vm4661, %v4662, %v4660
    %s4664 = vtos %v4663
    %v4665 = vrcp.pop 8.0
    %s4666 = vtos %v4665
    %s4667 = smul.f32 %s4664, %s4666
    %v4668 = vstv %s4667
    %vm4669 = vcmask 0
    %4670 = vst.msk [vmem:[#allocation4] sm:$0x1] %vm4669, %v4668
    // Predicated region
    $region82: #{dat_gru_forward.1} parent=1 // pred_check
      _
    $region83: #{dat_gru_forward.1} parent=1 // pred_check_branch
      %4672 = sbr.rel (0) target = $region85
    $region84: #{dat_gru_forward.1} parent=1 // pred_region
      %s4674 = ssub.s32 32, 32
      %4675 = vsyncadd [#allocation3], %s4674
      %s4677 = sshll.u32 [#allocation2], 4
      %s4678 = int_to_ptr.vmem [resolvable:$true] %s4677
      %4680 = dma.vmem_to_hbm [thread:$0]  %s4678, 32, %s20, [#allocation3]
    $region85: #{dat_gru_forward.1} parent=1 // pred_fallthru
      _
    // Predicated region
    $region86: #{dat_gru_forward.1} parent=1 // pred_check
      _
    $region87: #{dat_gru_forward.1} parent=1 // pred_check_branch
      %4682 = sbr.rel (0) target = $region89
    $region88: #{dat_gru_forward.1} parent=1 // pred_region
      %s4684 = ssub.s32 16, 16
      %4685 = vsyncadd [#allocation5], %s4684
      %s4687 = sshll.u32 [#allocation4], 4
      %s4688 = int_to_ptr.vmem [resolvable:$true] %s4687
      %4690 = dma.vmem_to_hbm [thread:$0]  %s4688, 16, %s21, [#allocation5]
    $region89: #{dat_gru_forward.1} parent=1 // pred_fallthru
      _
    // Predicated region
    $region90: #{dat_gru_forward.1} parent=1 // pred_check
      _
    $region91: #{dat_gru_forward.1} parent=1 // pred_check_branch
      %4692 = sbr.rel (0) target = $region93
    $region92: #{dat_gru_forward.1} parent=1 // pred_region
      %4693 = dma.done [#allocation3], 32
    $region93: #{dat_gru_forward.1} parent=1 // pred_fallthru
      _
    // Predicated region
    $region94: #{dat_gru_forward.1} parent=1 // pred_check
      _
    $region95: #{dat_gru_forward.1} parent=1 // pred_check_branch
      %4695 = sbr.rel (0) target = $region97
    $region96: #{dat_gru_forward.1} parent=1 // pred_region
      %4696 = dma.done [#allocation5], 16
    $region97: #{dat_gru_forward.1} parent=1 // pred_fallthru
      _
    %4697 = vsyncpa [#allocation3], 1
    %4698 = vsyncpa [#allocation5], 1

</llo_original>
